<compile_context>
chip_gen: v7x
topology: tpu7x:2x2x1
jax: 0.10.0
libtpu: 0.0.40
codegen_flags: <defaults>
</compile_context>

<pallas_src>
import functools

import jax
import jax.numpy as jnp
from jax import lax
from jax.experimental import pallas as pl
from jax.experimental.pallas import tpu as pltpu

OUT_PAD = 128  # lane-dense padded output width (sliced back in the wrapper)


def _sigmoid(z):
    # 1/(1+exp(-z)) rewritten via tanh: EUP tanh + two cheap VPU ops, no divide.
    return 0.5 * jnp.tanh(0.5 * z) + 0.5


def _lstm_cell(gates, c):
    """gates: (M, 4n) pre-activations in blocks [i | f | g | o], n = c.shape[-1]."""
    n = c.shape[-1]
    i = _sigmoid(gates[:, 0 * n:1 * n])
    f = _sigmoid(gates[:, 1 * n:2 * n])
    g = jnp.tanh(gates[:, 2 * n:3 * n])
    o = _sigmoid(gates[:, 3 * n:4 * n])
    c_new = f * c + i * g
    return o * jnp.tanh(c_new), c_new


def _bilstm_kernel(x_ref, w_ref, b_ref, out_ref, y0_ref, *, seq_len):
    S = seq_len
    H8 = w_ref.shape[1]
    H = H8 // 8
    H2, H4 = 2 * H, 4 * H
    Din = x_ref.shape[1]
    TB = out_ref.shape[0]
    OP = out_ref.shape[1]
    f32, bf16 = jnp.float32, jnp.bfloat16

    # Resident weight slices (bf16 MXU operands) and f32 biases, hoisted out of all loops.
    w_in0 = w_ref[0:Din, :]                              # (Din, 8H) gate-interleaved
    w_hh0 = w_ref[Din:Din + H2, :]                       # (2H, 8H)  block-diagonal
    w_in1 = w_ref[Din + H2:Din + 2 * H2, :]              # (2H, 8H)  [fwd 4H | bwd 4H]
    w_hh1 = w_ref[Din + 2 * H2:Din + 2 * H2 + H, 0:H4]   # (H, 4H)
    wo_f = w_ref[Din + 5 * H:Din + 6 * H, 0:OP]          # (H, OUT_PAD)
    wo_b = w_ref[Din + 6 * H:Din + 7 * H, 0:OP]          # (H, OUT_PAD)
    b_in0 = b_ref[0:1, :]
    b_in1 = b_ref[1:2, :]
    b_out = b_ref[2:3, 0:OP]

    # ---- layer 0: ONE fused input projection over all timesteps & both directions ----
    x = x_ref[...].astype(bf16)                          # (TB*S, Din)
    xg0 = jnp.dot(x, w_in0, preferred_element_type=f32) + b_in0
    xg0 = xg0.reshape(TB, S, H8)

    # Lane mask selecting the forward-direction sub-columns of the interleaved layout
    # [i_f i_b | f_f f_b | g_f g_b | o_f o_b].
    col = lax.broadcasted_iota(jnp.int32, (1, H8), 1)
    fwd_cols = (col % H2) < H

    # ---- layer-0 recurrence: fwd step s and bwd step S-1-s interleaved; ONE
    #      block-diagonal (TB,2H)@(2H,8H) MXU dot per step; joint 64-lane cell math ----
    hc = jnp.zeros((TB, H2), f32)                        # [h_fwd | h_bwd]
    c = jnp.zeros((TB, H2), f32)
    for s in range(S):
        xg_s = jnp.where(fwd_cols, xg0[:, s, :], xg0[:, S - 1 - s, :])
        gates = xg_s + jnp.dot(hc.astype(bf16), w_hh0, preferred_element_type=f32)
        hc, c = _lstm_cell(gates, c)
        y0_ref[s, :, 0:H] = hc[:, 0:H]                   # fwd hidden at time s
        y0_ref[S - 1 - s, :, H:H2] = hc[:, H:H2]         # bwd hidden at time S-1-s

    # ---- layer 1: hoist BOTH directions' input projections off the critical path ----
    y0 = y0_ref[...].reshape(S * TB, H2)
    xg1 = jnp.dot(y0.astype(bf16), w_in1, preferred_element_type=f32) + b_in1
    xg1 = xg1.reshape(S, TB, H8)

    # forward direction: full scan, only the final hidden (t = S-1) feeds fc_out
    h = jnp.zeros((TB, H), f32)
    c = jnp.zeros((TB, H), f32)
    for t in range(S):
        gates = xg1[t, :, 0:H4] + jnp.dot(h.astype(bf16), w_hh1,
                                          preferred_element_type=f32)
        h, c = _lstm_cell(gates, c)
    h1f = h

    # backward direction at output index S-1 == its FIRST step (zero state)
    h1b, _ = _lstm_cell(xg1[S - 1, :, H4:H8], jnp.zeros((TB, H), f32))

    # ---- fc_out on concat([h1f, h1b]) without the concat; lane-dense padded slab ----
    out = (jnp.dot(h1f.astype(bf16), wo_f, preferred_element_type=f32)
           + jnp.dot(h1b.astype(bf16), wo_b, preferred_element_type=f32)
           + b_out)
    out_ref[...] = out.astype(out_ref.dtype)


def _pick_tb(B):
    """Largest batch tile that keeps the (TB, OUT_PAD) output block legal
    (TB % 8 == 0 or TB == B) AND yields >= 2 grid steps so the 'parallel' batch
    axis can shard across both v7x TensorCores."""
    for tb in (256, 128, 64, 32, 16, 8):
        if B % tb == 0 and B // tb >= 2:
            return tb
    return B


def _pack_params(p):
    """Pack the 14 per-direction weight/bias arrays into one bf16 matmul-operand slab
    and one f32 bias slab (kernel row offsets are static functions of Din and H)."""
    H = p["w_hh0f"].shape[0]
    H2, H4, H8 = 2 * H, 4 * H, 8 * H
    out_dim = p["wo"].shape[1]
    assert out_dim <= OUT_PAD

    def interleave(wf, wb):  # columns -> [i_f i_b | f_f f_b | g_f g_b | o_f o_b]
        blocks = []
        for k in range(4):
            blocks.append(wf[:, k * H:(k + 1) * H])
            blocks.append(wb[:, k * H:(k + 1) * H])
        return jnp.concatenate(blocks, axis=1)

    w_in0 = interleave(p["w_ih0f"], p["w_ih0b"])         # (Din, 8H)
    b_in0 = interleave(p["b0f"], p["b0b"])               # (1, 8H)

    w_hh0 = jnp.zeros((H2, H8), jnp.float32)             # block-diag, interleaved cols
    for k in range(4):
        w_hh0 = w_hh0.at[0:H, k * H2:k * H2 + H].set(p["w_hh0f"][:, k * H:(k + 1) * H])
        w_hh0 = w_hh0.at[H:H2, k * H2 + H:(k + 1) * H2].set(p["w_hh0b"][:, k * H:(k + 1) * H])

    w_in1 = jnp.concatenate([p["w_ih1f"], p["w_ih1b"]], axis=1)   # (2H, 8H)
    b_in1 = jnp.concatenate([p["b1f"], p["b1b"]], axis=1)         # (1, 8H)
    w_hh1 = jnp.zeros((H, H8), jnp.float32).at[:, :H4].set(p["w_hh1f"])
    wo = jnp.zeros((H2, H8), jnp.float32).at[:, :out_dim].set(p["wo"])
    bo = jnp.zeros((1, H8), jnp.float32).at[:, :out_dim].set(p["bo"])

    wslab = jnp.concatenate([w_in0, w_hh0, w_in1, w_hh1, wo], axis=0).astype(jnp.bfloat16)
    bslab = jnp.concatenate([b_in0, b_in1, bo], axis=0)   # (3, 8H) f32
    return wslab, bslab


def lstm_baseline(x, p):
    """x: (B, S, input_dim) f32 -> (B, output_dim) f32."""
    B, S, Din = x.shape
    H = p["w_hh0f"].shape[0]
    out_dim = p["wo"].shape[1]

    wslab, bslab = _pack_params(p)
    TB = _pick_tb(B)
    grid = (B // TB,)
    x_flat = x.reshape(B * S, Din)

    kernel = functools.partial(_bilstm_kernel, seq_len=S)

    out = pl.pallas_call(
        kernel,
        out_shape=jax.ShapeDtypeStruct((B, OUT_PAD), jnp.float32),
        grid=grid,
        in_specs=[
            pl.BlockSpec((TB * S, Din), lambda i: (i, 0)),
            pl.BlockSpec(wslab.shape, lambda i: (0, 0)),
            pl.BlockSpec(bslab.shape, lambda i: (0, 0)),
        ],
        out_specs=pl.BlockSpec((TB, OUT_PAD), lambda i: (i, 0)),
        scratch_shapes=[pltpu.VMEM((S, TB, 2 * H), jnp.float32)],
        compiler_params=pltpu.CompilerParams(
            dimension_semantics=("parallel",),
            vmem_limit_bytes=32 * 1024 * 1024,
        ),
    )(x_flat, wslab, bslab)
    return out[:, :out_dim]


def init_params(key, input_dim, hidden_dim, output_dim):
    """Weights in math layout (in_dim, out_dim); b_ih + b_hh merged into one bias."""
    H = hidden_dim
    scale = 1.0 / float(jnp.sqrt(jnp.float32(H)))
    ks = jax.random.split(key, 14)

    def u(k, shape):
        return jax.random.uniform(k, shape, jnp.float32, -scale, scale)

    return {
        # layer 0 (input_dim -> H), forward / reverse directions
        "w_ih0f": u(ks[0], (input_dim, 4 * H)),
        "w_hh0f": u(ks[1], (H, 4 * H)),
        "b0f":    u(ks[2], (1, 4 * H)),
        "w_ih0b": u(ks[3], (input_dim, 4 * H)),
        "w_hh0b": u(ks[4], (H, 4 * H)),
        "b0b":    u(ks[5], (1, 4 * H)),
        # layer 1 (2H -> H)
        "w_ih1f": u(ks[6], (2 * H, 4 * H)),
        "w_hh1f": u(ks[7], (H, 4 * H)),
        "b1f":    u(ks[8], (1, 4 * H)),
        "w_ih1b": u(ks[9], (2 * H, 4 * H)),
        "w_hh1b": u(ks[10], (H, 4 * H)),
        "b1b":    u(ks[11], (1, 4 * H)),
        # fc_out: Linear(2H, output_dim), math layout (in, out)
        "wo": u(ks[12], (2 * H, output_dim)),
        "bo": u(ks[13], (1, output_dim)),
    }


def reference_forward(x, p):
    """Pure-JAX f32 reference of the PyTorch bidirectional-LSTM forward (eval mode)."""
    B, S, _ = x.shape
    H = p["w_hh0f"].shape[0]

    def cell(xg, h, c, w_hh):
        g = xg + h @ w_hh
        i = jax.nn.sigmoid(g[:, :H])
        f = jax.nn.sigmoid(g[:, H:2 * H])
        gg = jnp.tanh(g[:, 2 * H:3 * H])
        o = jax.nn.sigmoid(g[:, 3 * H:])
        c = f * c + i * gg
        return o * jnp.tanh(c), c

    def run_dir(inp, w_ih, w_hh, b, reverse):
        h = jnp.zeros((B, H), jnp.float32)
        c = jnp.zeros((B, H), jnp.float32)
        out = [None] * S
        ts = range(S - 1, -1, -1) if reverse else range(S)
        for t in ts:
            xg = inp[:, t, :] @ w_ih + b
            h, c = cell(xg, h, c, w_hh)
            out[t] = h
        return jnp.stack(out, axis=1)

    y0f = run_dir(x, p["w_ih0f"], p["w_hh0f"], p["b0f"], False)
    y0b = run_dir(x, p["w_ih0b"], p["w_hh0b"], p["b0b"], True)
    y0 = jnp.concatenate([y0f, y0b], axis=-1)
    y1f = run_dir(y0, p["w_ih1f"], p["w_hh1f"], p["b1f"], False)
    y1b = run_dir(y0, p["w_ih1b"], p["w_hh1b"], p["b1b"], True)
    final = jnp.concatenate([y1f[:, -1, :], y1b[:, -1, :]], axis=-1)
    return final @ p["wo"] + p["bo"]


if __name__ == "__main__":
    # Small shapes consistent with LSTMBaseline's forward.
    batch, seq_length, input_dim = 2, 8, 4
    hidden_dim, output_dim = 32, 4

    key = jax.random.PRNGKey(0)
    kx, kp = jax.random.split(key)
    x = jax.random.normal(kx, (batch, seq_length, input_dim), dtype=jnp.float32)
    params = init_params(kp, input_dim, hidden_dim, output_dim)

    out = jax.block_until_ready(lstm_baseline(x, params))
    ref = jax.block_until_ready(reference_forward(x, params))

    assert out.shape == (batch, output_dim), out.shape
    # bf16 MXU operands (f32 accumulation / f32 cell state): tolerance relaxed vs the
    # pure-f32 1e-3 check; observed error is O(1e-3) at S=8, H=32.
    assert jnp.allclose(out, ref, atol=2e-2, rtol=2e-2), (out, ref)

    print("KERNEL_OK")
</pallas_src>

<mosaic_0001>
module attributes {stable_mosaic.version = 11 : i64} {
  func.func @_bilstm_kernel(%arg0: i32, %arg1: memref<16x4xf32, #tpu.memory_space<vmem>>, %arg2: memref<228x256xbf16, #tpu.memory_space<vmem>>, %arg3: memref<3x256xf32, #tpu.memory_space<vmem>>, %arg4: memref<2x128xf32, #tpu.memory_space<vmem>>, %arg5: memref<8x2x64xf32, #tpu.memory_space<vmem>>) attributes {dimension_semantics = [#tpu.dimension_semantics<parallel>], iteration_bounds = array<i64: 1>, scalar_prefetch = 0 : i64, scratch_operands = 1 : i64, tpu.core_type = #tpu.core_type<tc>, window_params = [{transform_indices = @transform_0, window_bounds = array<i64: 16, 4>}, {pipeline_mode = #tpu.pipeline_mode<synchronous>, transform_indices = @transform_1, window_bounds = array<i64: 228, 256>}, {pipeline_mode = #tpu.pipeline_mode<synchronous>, transform_indices = @transform_2, window_bounds = array<i64: 3, 256>}, {transform_indices = @transform_3, window_bounds = array<i64: 2, 128>}]} {
    %c0 = arith.constant 0 : index
    %c0_0 = arith.constant 0 : index
    %0 = vector.load %arg2[%c0, %c0_0] : memref<228x256xbf16, #tpu.memory_space<vmem>>, vector<4x256xbf16>
    %c4 = arith.constant 4 : index
    %c0_1 = arith.constant 0 : index
    %1 = vector.load %arg2[%c4, %c0_1] : memref<228x256xbf16, #tpu.memory_space<vmem>>, vector<64x256xbf16>
    %c68 = arith.constant 68 : index
    %c0_2 = arith.constant 0 : index
    %2 = vector.load %arg2[%c68, %c0_2] : memref<228x256xbf16, #tpu.memory_space<vmem>>, vector<64x256xbf16>
    %c132 = arith.constant 132 : index
    %c0_3 = arith.constant 0 : index
    %3 = vector.load %arg2[%c132, %c0_3] : memref<228x256xbf16, #tpu.memory_space<vmem>>, vector<32x128xbf16>
    %c164 = arith.constant 164 : index
    %c0_4 = arith.constant 0 : index
    %4 = vector.load %arg2[%c164, %c0_4] : memref<228x256xbf16, #tpu.memory_space<vmem>>, vector<32x128xbf16>
    %c196 = arith.constant 196 : index
    %c0_5 = arith.constant 0 : index
    %5 = vector.load %arg2[%c196, %c0_5] : memref<228x256xbf16, #tpu.memory_space<vmem>>, vector<32x128xbf16>
    %c0_6 = arith.constant 0 : index
    %c0_7 = arith.constant 0 : index
    %6 = vector.load %arg3[%c0_6, %c0_7] : memref<3x256xf32, #tpu.memory_space<vmem>>, vector<1x256xf32>
    %c1 = arith.constant 1 : index
    %c0_8 = arith.constant 0 : index
    %7 = vector.load %arg3[%c1, %c0_8] : memref<3x256xf32, #tpu.memory_space<vmem>>, vector<1x256xf32>
    %c2 = arith.constant 2 : index
    %c0_9 = arith.constant 0 : index
    %8 = vector.load %arg3[%c2, %c0_9] : memref<3x256xf32, #tpu.memory_space<vmem>>, vector<1x128xf32>
    %c0_10 = arith.constant 0 : index
    %c0_11 = arith.constant 0 : index
    %9 = vector.load %arg1[%c0_10, %c0_11] : memref<16x4xf32, #tpu.memory_space<vmem>>, vector<16x4xf32>
    %10 = arith.truncf %9 : vector<16x4xf32> to vector<16x4xbf16>
    %cst = arith.constant dense<0.000000e+00> : vector<16x256xf32>
    %11 = tpu.matmul %10, %0, %cst {dimension_numbers = #tpu.dot_dimension_numbers<[1], [0], [0], [1], [0, 0, 1, 1], [], []>} : vector<16x4xbf16>, vector<4x256xbf16>, vector<16x256xf32> -> vector<16x256xf32>
    %12 = vector.broadcast %6 : vector<1x256xf32> to vector<16x256xf32>
    %13 = arith.addf %11, %12 : vector<16x256xf32>
    %14 = vector.shape_cast %13 : vector<16x256xf32> to vector<2x8x256xf32>
    %15 = tpu.iota {dimensions = array<i32: 1>} : vector<1x256xi32>
    %c64_i32 = arith.constant 64 : i32
    %c0_i32 = arith.constant 0 : i32
    %16 = arith.cmpi eq, %c64_i32, %c0_i32 : i32
    %c1_i32 = arith.constant 1 : i32
    %17 = arith.select %16, %c1_i32, %c64_i32 : i32
    %18 = vector.broadcast %17 : i32 to vector<1x256xi32>
    %19 = arith.remsi %15, %18 : vector<1x256xi32>
    %c0_i32_12 = arith.constant 0 : i32
    %20 = vector.broadcast %c0_i32_12 : i32 to vector<1x256xi32>
    %21 = arith.cmpi ne, %19, %20 : vector<1x256xi32>
    %c0_i32_13 = arith.constant 0 : i32
    %22 = vector.broadcast %c0_i32_13 : i32 to vector<1x256xi32>
    %23 = arith.cmpi slt, %19, %22 : vector<1x256xi32>
    %c0_i32_14 = arith.constant 0 : i32
    %24 = arith.cmpi slt, %17, %c0_i32_14 : i32
    %25 = vector.broadcast %24 : i1 to vector<1x256xi1>
    %26 = vector.broadcast %25 : vector<1x256xi1> to vector<1x256xi1>
    %27 = arith.xori %23, %26 : vector<1x256xi1>
    %28 = arith.andi %27, %21 : vector<1x256xi1>
    %29 = vector.broadcast %17 : i32 to vector<1x256xi32>
    %30 = arith.addi %19, %29 : vector<1x256xi32>
    %31 = arith.select %28, %30, %19 : vector<1x256xi1>, vector<1x256xi32>
    %c32_i32 = arith.constant 32 : i32
    %32 = vector.broadcast %c32_i32 : i32 to vector<1x256xi32>
    %33 = arith.cmpi slt, %31, %32 : vector<1x256xi32>
    %cst_15 = arith.constant 0.000000e+00 : f32
    %34 = vector.broadcast %cst_15 : f32 to vector<2x64xf32>
    %cst_16 = arith.constant 0.000000e+00 : f32
    %35 = vector.broadcast %cst_16 : f32 to vector<2x64xf32>
    %36 = vector.extract_strided_slice %14 {offsets = [0, 0, 0], sizes = [2, 1, 256], strides = [1, 1, 1]} : vector<2x8x256xf32> to vector<2x1x256xf32>
    %37 = vector.shape_cast %36 : vector<2x1x256xf32> to vector<2x256xf32>
    %38 = vector.extract_strided_slice %14 {offsets = [0, 7, 0], sizes = [2, 1, 256], strides = [1, 1, 1]} : vector<2x8x256xf32> to vector<2x1x256xf32>
    %39 = vector.shape_cast %38 : vector<2x1x256xf32> to vector<2x256xf32>
    %40 = vector.shape_cast %33 : vector<1x256xi1> to vector<1x256xi1>
    %41 = vector.broadcast %40 : vector<1x256xi1> to vector<2x256xi1>
    %42 = arith.select %41, %37, %39 : vector<2x256xi1>, vector<2x256xf32>
    %43 = arith.truncf %34 : vector<2x64xf32> to vector<2x64xbf16>
    %cst_17 = arith.constant dense<0.000000e+00> : vector<2x256xf32>
    %44 = tpu.matmul %43, %1, %cst_17 {dimension_numbers = #tpu.dot_dimension_numbers<[1], [0], [0], [1], [0, 0, 1, 1], [], []>} : vector<2x64xbf16>, vector<64x256xbf16>, vector<2x256xf32> -> vector<2x256xf32>
    %45 = arith.addf %42, %44 : vector<2x256xf32>
    %46 = vector.extract_strided_slice %45 {offsets = [0, 0], sizes = [2, 64], strides = [1, 1]} : vector<2x256xf32> to vector<2x64xf32>
    %cst_18 = arith.constant 5.000000e-01 : f32
    %47 = vector.broadcast %cst_18 : f32 to vector<2x64xf32>
    %48 = arith.mulf %47, %46 : vector<2x64xf32>
    %49 = math.tanh %48 : vector<2x64xf32>
    %cst_19 = arith.constant 5.000000e-01 : f32
    %50 = vector.broadcast %cst_19 : f32 to vector<2x64xf32>
    %51 = arith.mulf %50, %49 : vector<2x64xf32>
    %cst_20 = arith.constant 5.000000e-01 : f32
    %52 = vector.broadcast %cst_20 : f32 to vector<2x64xf32>
    %53 = arith.addf %51, %52 : vector<2x64xf32>
    %54 = vector.extract_strided_slice %45 {offsets = [0, 64], sizes = [2, 64], strides = [1, 1]} : vector<2x256xf32> to vector<2x64xf32>
    %cst_21 = arith.constant 5.000000e-01 : f32
    %55 = vector.broadcast %cst_21 : f32 to vector<2x64xf32>
    %56 = arith.mulf %55, %54 : vector<2x64xf32>
    %57 = math.tanh %56 : vector<2x64xf32>
    %cst_22 = arith.constant 5.000000e-01 : f32
    %58 = vector.broadcast %cst_22 : f32 to vector<2x64xf32>
    %59 = arith.mulf %58, %57 : vector<2x64xf32>
    %cst_23 = arith.constant 5.000000e-01 : f32
    %60 = vector.broadcast %cst_23 : f32 to vector<2x64xf32>
    %61 = arith.addf %59, %60 : vector<2x64xf32>
    %62 = vector.extract_strided_slice %45 {offsets = [0, 128], sizes = [2, 64], strides = [1, 1]} : vector<2x256xf32> to vector<2x64xf32>
    %63 = math.tanh %62 : vector<2x64xf32>
    %64 = vector.extract_strided_slice %45 {offsets = [0, 192], sizes = [2, 64], strides = [1, 1]} : vector<2x256xf32> to vector<2x64xf32>
    %cst_24 = arith.constant 5.000000e-01 : f32
    %65 = vector.broadcast %cst_24 : f32 to vector<2x64xf32>
    %66 = arith.mulf %65, %64 : vector<2x64xf32>
    %67 = math.tanh %66 : vector<2x64xf32>
    %cst_25 = arith.constant 5.000000e-01 : f32
    %68 = vector.broadcast %cst_25 : f32 to vector<2x64xf32>
    %69 = arith.mulf %68, %67 : vector<2x64xf32>
    %cst_26 = arith.constant 5.000000e-01 : f32
    %70 = vector.broadcast %cst_26 : f32 to vector<2x64xf32>
    %71 = arith.addf %69, %70 : vector<2x64xf32>
    %72 = arith.mulf %61, %35 : vector<2x64xf32>
    %73 = arith.mulf %53, %63 : vector<2x64xf32>
    %74 = arith.addf %72, %73 : vector<2x64xf32>
    %75 = math.tanh %74 : vector<2x64xf32>
    %76 = arith.mulf %71, %75 : vector<2x64xf32>
    %77 = vector.extract_strided_slice %76 {offsets = [0, 0], sizes = [2, 32], strides = [1, 1]} : vector<2x64xf32> to vector<2x32xf32>
    %c0_27 = arith.constant 0 : index
    %c0_28 = arith.constant 0 : index
    %c0_29 = arith.constant 0 : index
    %78 = vector.load %arg5[%c0_27, %c0_28, %c0_29] : memref<8x2x64xf32, #tpu.memory_space<vmem>>, vector<1x2x32xf32>
    %79 = vector.shape_cast %78 : vector<1x2x32xf32> to vector<2x32xf32>
    %80 = vector.shape_cast %77 : vector<2x32xf32> to vector<1x2x32xf32>
    tpu.vector_store %arg5[%c0_27, %c0_28, %c0_29], %80 {strides = array<i32>} : memref<8x2x64xf32, #tpu.memory_space<vmem>>, vector<1x2x32xf32>,
    %81 = vector.extract_strided_slice %76 {offsets = [0, 32], sizes = [2, 32], strides = [1, 1]} : vector<2x64xf32> to vector<2x32xf32>
    %c7 = arith.constant 7 : index
    %c0_30 = arith.constant 0 : index
    %c32 = arith.constant 32 : index
    %82 = vector.load %arg5[%c7, %c0_30, %c32] : memref<8x2x64xf32, #tpu.memory_space<vmem>>, vector<1x2x32xf32>
    %83 = vector.shape_cast %82 : vector<1x2x32xf32> to vector<2x32xf32>
    %84 = vector.shape_cast %81 : vector<2x32xf32> to vector<1x2x32xf32>
    tpu.vector_store %arg5[%c7, %c0_30, %c32], %84 {strides = array<i32>} : memref<8x2x64xf32, #tpu.memory_space<vmem>>, vector<1x2x32xf32>,
    %85 = vector.extract_strided_slice %14 {offsets = [0, 1, 0], sizes = [2, 1, 256], strides = [1, 1, 1]} : vector<2x8x256xf32> to vector<2x1x256xf32>
    %86 = vector.shape_cast %85 : vector<2x1x256xf32> to vector<2x256xf32>
    %87 = vector.extract_strided_slice %14 {offsets = [0, 6, 0], sizes = [2, 1, 256], strides = [1, 1, 1]} : vector<2x8x256xf32> to vector<2x1x256xf32>
    %88 = vector.shape_cast %87 : vector<2x1x256xf32> to vector<2x256xf32>
    %89 = vector.shape_cast %33 : vector<1x256xi1> to vector<1x256xi1>
    %90 = vector.broadcast %89 : vector<1x256xi1> to vector<2x256xi1>
    %91 = arith.select %90, %86, %88 : vector<2x256xi1>, vector<2x256xf32>
    %92 = arith.truncf %76 : vector<2x64xf32> to vector<2x64xbf16>
    %cst_31 = arith.constant dense<0.000000e+00> : vector<2x256xf32>
    %93 = tpu.matmul %92, %1, %cst_31 {dimension_numbers = #tpu.dot_dimension_numbers<[1], [0], [0], [1], [0, 0, 1, 1], [], []>} : vector<2x64xbf16>, vector<64x256xbf16>, vector<2x256xf32> -> vector<2x256xf32>
    %94 = arith.addf %91, %93 : vector<2x256xf32>
    %95 = vector.extract_strided_slice %94 {offsets = [0, 0], sizes = [2, 64], strides = [1, 1]} : vector<2x256xf32> to vector<2x64xf32>
    %cst_32 = arith.constant 5.000000e-01 : f32
    %96 = vector.broadcast %cst_32 : f32 to vector<2x64xf32>
    %97 = arith.mulf %96, %95 : vector<2x64xf32>
    %98 = math.tanh %97 : vector<2x64xf32>
    %cst_33 = arith.constant 5.000000e-01 : f32
    %99 = vector.broadcast %cst_33 : f32 to vector<2x64xf32>
    %100 = arith.mulf %99, %98 : vector<2x64xf32>
    %cst_34 = arith.constant 5.000000e-01 : f32
    %101 = vector.broadcast %cst_34 : f32 to vector<2x64xf32>
    %102 = arith.addf %100, %101 : vector<2x64xf32>
    %103 = vector.extract_strided_slice %94 {offsets = [0, 64], sizes = [2, 64], strides = [1, 1]} : vector<2x256xf32> to vector<2x64xf32>
    %cst_35 = arith.constant 5.000000e-01 : f32
    %104 = vector.broadcast %cst_35 : f32 to vector<2x64xf32>
    %105 = arith.mulf %104, %103 : vector<2x64xf32>
    %106 = math.tanh %105 : vector<2x64xf32>
    %cst_36 = arith.constant 5.000000e-01 : f32
    %107 = vector.broadcast %cst_36 : f32 to vector<2x64xf32>
    %108 = arith.mulf %107, %106 : vector<2x64xf32>
    %cst_37 = arith.constant 5.000000e-01 : f32
    %109 = vector.broadcast %cst_37 : f32 to vector<2x64xf32>
    %110 = arith.addf %108, %109 : vector<2x64xf32>
    %111 = vector.extract_strided_slice %94 {offsets = [0, 128], sizes = [2, 64], strides = [1, 1]} : vector<2x256xf32> to vector<2x64xf32>
    %112 = math.tanh %111 : vector<2x64xf32>
    %113 = vector.extract_strided_slice %94 {offsets = [0, 192], sizes = [2, 64], strides = [1, 1]} : vector<2x256xf32> to vector<2x64xf32>
    %cst_38 = arith.constant 5.000000e-01 : f32
    %114 = vector.broadcast %cst_38 : f32 to vector<2x64xf32>
    %115 = arith.mulf %114, %113 : vector<2x64xf32>
    %116 = math.tanh %115 : vector<2x64xf32>
    %cst_39 = arith.constant 5.000000e-01 : f32
    %117 = vector.broadcast %cst_39 : f32 to vector<2x64xf32>
    %118 = arith.mulf %117, %116 : vector<2x64xf32>
    %cst_40 = arith.constant 5.000000e-01 : f32
    %119 = vector.broadcast %cst_40 : f32 to vector<2x64xf32>
    %120 = arith.addf %118, %119 : vector<2x64xf32>
    %121 = arith.mulf %110, %74 : vector<2x64xf32>
    %122 = arith.mulf %102, %112 : vector<2x64xf32>
    %123 = arith.addf %121, %122 : vector<2x64xf32>
    %124 = math.tanh %123 : vector<2x64xf32>
    %125 = arith.mulf %120, %124 : vector<2x64xf32>
    %126 = vector.extract_strided_slice %125 {offsets = [0, 0], sizes = [2, 32], strides = [1, 1]} : vector<2x64xf32> to vector<2x32xf32>
    %c1_41 = arith.constant 1 : index
    %c0_42 = arith.constant 0 : index
    %c0_43 = arith.constant 0 : index
    %127 = vector.load %arg5[%c1_41, %c0_42, %c0_43] : memref<8x2x64xf32, #tpu.memory_space<vmem>>, vector<1x2x32xf32>
    %128 = vector.shape_cast %127 : vector<1x2x32xf32> to vector<2x32xf32>
    %129 = vector.shape_cast %126 : vector<2x32xf32> to vector<1x2x32xf32>
    tpu.vector_store %arg5[%c1_41, %c0_42, %c0_43], %129 {strides = array<i32>} : memref<8x2x64xf32, #tpu.memory_space<vmem>>, vector<1x2x32xf32>,
    %130 = vector.extract_strided_slice %125 {offsets = [0, 32], sizes = [2, 32], strides = [1, 1]} : vector<2x64xf32> to vector<2x32xf32>
    %c6 = arith.constant 6 : index
    %c0_44 = arith.constant 0 : index
    %c32_45 = arith.constant 32 : index
    %131 = vector.load %arg5[%c6, %c0_44, %c32_45] : memref<8x2x64xf32, #tpu.memory_space<vmem>>, vector<1x2x32xf32>
    %132 = vector.shape_cast %131 : vector<1x2x32xf32> to vector<2x32xf32>
    %133 = vector.shape_cast %130 : vector<2x32xf32> to vector<1x2x32xf32>
    tpu.vector_store %arg5[%c6, %c0_44, %c32_45], %133 {strides = array<i32>} : memref<8x2x64xf32, #tpu.memory_space<vmem>>, vector<1x2x32xf32>,
    %134 = vector.extract_strided_slice %14 {offsets = [0, 2, 0], sizes = [2, 1, 256], strides = [1, 1, 1]} : vector<2x8x256xf32> to vector<2x1x256xf32>
    %135 = vector.shape_cast %134 : vector<2x1x256xf32> to vector<2x256xf32>
    %136 = vector.extract_strided_slice %14 {offsets = [0, 5, 0], sizes = [2, 1, 256], strides = [1, 1, 1]} : vector<2x8x256xf32> to vector<2x1x256xf32>
    %137 = vector.shape_cast %136 : vector<2x1x256xf32> to vector<2x256xf32>
    %138 = vector.shape_cast %33 : vector<1x256xi1> to vector<1x256xi1>
    %139 = vector.broadcast %138 : vector<1x256xi1> to vector<2x256xi1>
    %140 = arith.select %139, %135, %137 : vector<2x256xi1>, vector<2x256xf32>
    %141 = arith.truncf %125 : vector<2x64xf32> to vector<2x64xbf16>
    %cst_46 = arith.constant dense<0.000000e+00> : vector<2x256xf32>
    %142 = tpu.matmul %141, %1, %cst_46 {dimension_numbers = #tpu.dot_dimension_numbers<[1], [0], [0], [1], [0, 0, 1, 1], [], []>} : vector<2x64xbf16>, vector<64x256xbf16>, vector<2x256xf32> -> vector<2x256xf32>
    %143 = arith.addf %140, %142 : vector<2x256xf32>
    %144 = vector.extract_strided_slice %143 {offsets = [0, 0], sizes = [2, 64], strides = [1, 1]} : vector<2x256xf32> to vector<2x64xf32>
    %cst_47 = arith.constant 5.000000e-01 : f32
    %145 = vector.broadcast %cst_47 : f32 to vector<2x64xf32>
    %146 = arith.mulf %145, %144 : vector<2x64xf32>
    %147 = math.tanh %146 : vector<2x64xf32>
    %cst_48 = arith.constant 5.000000e-01 : f32
    %148 = vector.broadcast %cst_48 : f32 to vector<2x64xf32>
    %149 = arith.mulf %148, %147 : vector<2x64xf32>
    %cst_49 = arith.constant 5.000000e-01 : f32
    %150 = vector.broadcast %cst_49 : f32 to vector<2x64xf32>
    %151 = arith.addf %149, %150 : vector<2x64xf32>
    %152 = vector.extract_strided_slice %143 {offsets = [0, 64], sizes = [2, 64], strides = [1, 1]} : vector<2x256xf32> to vector<2x64xf32>
    %cst_50 = arith.constant 5.000000e-01 : f32
    %153 = vector.broadcast %cst_50 : f32 to vector<2x64xf32>
    %154 = arith.mulf %153, %152 : vector<2x64xf32>
    %155 = math.tanh %154 : vector<2x64xf32>
    %cst_51 = arith.constant 5.000000e-01 : f32
    %156 = vector.broadcast %cst_51 : f32 to vector<2x64xf32>
    %157 = arith.mulf %156, %155 : vector<2x64xf32>
    %cst_52 = arith.constant 5.000000e-01 : f32
    %158 = vector.broadcast %cst_52 : f32 to vector<2x64xf32>
    %159 = arith.addf %157, %158 : vector<2x64xf32>
    %160 = vector.extract_strided_slice %143 {offsets = [0, 128], sizes = [2, 64], strides = [1, 1]} : vector<2x256xf32> to vector<2x64xf32>
    %161 = math.tanh %160 : vector<2x64xf32>
    %162 = vector.extract_strided_slice %143 {offsets = [0, 192], sizes = [2, 64], strides = [1, 1]} : vector<2x256xf32> to vector<2x64xf32>
    %cst_53 = arith.constant 5.000000e-01 : f32
    %163 = vector.broadcast %cst_53 : f32 to vector<2x64xf32>
    %164 = arith.mulf %163, %162 : vector<2x64xf32>
    %165 = math.tanh %164 : vector<2x64xf32>
    %cst_54 = arith.constant 5.000000e-01 : f32
    %166 = vector.broadcast %cst_54 : f32 to vector<2x64xf32>
    %167 = arith.mulf %166, %165 : vector<2x64xf32>
    %cst_55 = arith.constant 5.000000e-01 : f32
    %168 = vector.broadcast %cst_55 : f32 to vector<2x64xf32>
    %169 = arith.addf %167, %168 : vector<2x64xf32>
    %170 = arith.mulf %159, %123 : vector<2x64xf32>
    %171 = arith.mulf %151, %161 : vector<2x64xf32>
    %172 = arith.addf %170, %171 : vector<2x64xf32>
    %173 = math.tanh %172 : vector<2x64xf32>
    %174 = arith.mulf %169, %173 : vector<2x64xf32>
    %175 = vector.extract_strided_slice %174 {offsets = [0, 0], sizes = [2, 32], strides = [1, 1]} : vector<2x64xf32> to vector<2x32xf32>
    %c2_56 = arith.constant 2 : index
    %c0_57 = arith.constant 0 : index
    %c0_58 = arith.constant 0 : index
    %176 = vector.load %arg5[%c2_56, %c0_57, %c0_58] : memref<8x2x64xf32, #tpu.memory_space<vmem>>, vector<1x2x32xf32>
    %177 = vector.shape_cast %176 : vector<1x2x32xf32> to vector<2x32xf32>
    %178 = vector.shape_cast %175 : vector<2x32xf32> to vector<1x2x32xf32>
    tpu.vector_store %arg5[%c2_56, %c0_57, %c0_58], %178 {strides = array<i32>} : memref<8x2x64xf32, #tpu.memory_space<vmem>>, vector<1x2x32xf32>,
    %179 = vector.extract_strided_slice %174 {offsets = [0, 32], sizes = [2, 32], strides = [1, 1]} : vector<2x64xf32> to vector<2x32xf32>
    %c5 = arith.constant 5 : index
    %c0_59 = arith.constant 0 : index
    %c32_60 = arith.constant 32 : index
    %180 = vector.load %arg5[%c5, %c0_59, %c32_60] : memref<8x2x64xf32, #tpu.memory_space<vmem>>, vector<1x2x32xf32>
    %181 = vector.shape_cast %180 : vector<1x2x32xf32> to vector<2x32xf32>
    %182 = vector.shape_cast %179 : vector<2x32xf32> to vector<1x2x32xf32>
    tpu.vector_store %arg5[%c5, %c0_59, %c32_60], %182 {strides = array<i32>} : memref<8x2x64xf32, #tpu.memory_space<vmem>>, vector<1x2x32xf32>,
    %183 = vector.extract_strided_slice %14 {offsets = [0, 3, 0], sizes = [2, 1, 256], strides = [1, 1, 1]} : vector<2x8x256xf32> to vector<2x1x256xf32>
    %184 = vector.shape_cast %183 : vector<2x1x256xf32> to vector<2x256xf32>
    %185 = vector.extract_strided_slice %14 {offsets = [0, 4, 0], sizes = [2, 1, 256], strides = [1, 1, 1]} : vector<2x8x256xf32> to vector<2x1x256xf32>
    %186 = vector.shape_cast %185 : vector<2x1x256xf32> to vector<2x256xf32>
    %187 = vector.shape_cast %33 : vector<1x256xi1> to vector<1x256xi1>
    %188 = vector.broadcast %187 : vector<1x256xi1> to vector<2x256xi1>
    %189 = arith.select %188, %184, %186 : vector<2x256xi1>, vector<2x256xf32>
    %190 = arith.truncf %174 : vector<2x64xf32> to vector<2x64xbf16>
    %cst_61 = arith.constant dense<0.000000e+00> : vector<2x256xf32>
    %191 = tpu.matmul %190, %1, %cst_61 {dimension_numbers = #tpu.dot_dimension_numbers<[1], [0], [0], [1], [0, 0, 1, 1], [], []>} : vector<2x64xbf16>, vector<64x256xbf16>, vector<2x256xf32> -> vector<2x256xf32>
    %192 = arith.addf %189, %191 : vector<2x256xf32>
    %193 = vector.extract_strided_slice %192 {offsets = [0, 0], sizes = [2, 64], strides = [1, 1]} : vector<2x256xf32> to vector<2x64xf32>
    %cst_62 = arith.constant 5.000000e-01 : f32
    %194 = vector.broadcast %cst_62 : f32 to vector<2x64xf32>
    %195 = arith.mulf %194, %193 : vector<2x64xf32>
    %196 = math.tanh %195 : vector<2x64xf32>
    %cst_63 = arith.constant 5.000000e-01 : f32
    %197 = vector.broadcast %cst_63 : f32 to vector<2x64xf32>
    %198 = arith.mulf %197, %196 : vector<2x64xf32>
    %cst_64 = arith.constant 5.000000e-01 : f32
    %199 = vector.broadcast %cst_64 : f32 to vector<2x64xf32>
    %200 = arith.addf %198, %199 : vector<2x64xf32>
    %201 = vector.extract_strided_slice %192 {offsets = [0, 64], sizes = [2, 64], strides = [1, 1]} : vector<2x256xf32> to vector<2x64xf32>
    %cst_65 = arith.constant 5.000000e-01 : f32
    %202 = vector.broadcast %cst_65 : f32 to vector<2x64xf32>
    %203 = arith.mulf %202, %201 : vector<2x64xf32>
    %204 = math.tanh %203 : vector<2x64xf32>
    %cst_66 = arith.constant 5.000000e-01 : f32
    %205 = vector.broadcast %cst_66 : f32 to vector<2x64xf32>
    %206 = arith.mulf %205, %204 : vector<2x64xf32>
    %cst_67 = arith.constant 5.000000e-01 : f32
    %207 = vector.broadcast %cst_67 : f32 to vector<2x64xf32>
    %208 = arith.addf %206, %207 : vector<2x64xf32>
    %209 = vector.extract_strided_slice %192 {offsets = [0, 128], sizes = [2, 64], strides = [1, 1]} : vector<2x256xf32> to vector<2x64xf32>
    %210 = math.tanh %209 : vector<2x64xf32>
    %211 = vector.extract_strided_slice %192 {offsets = [0, 192], sizes = [2, 64], strides = [1, 1]} : vector<2x256xf32> to vector<2x64xf32>
    %cst_68 = arith.constant 5.000000e-01 : f32
    %212 = vector.broadcast %cst_68 : f32 to vector<2x64xf32>
    %213 = arith.mulf %212, %211 : vector<2x64xf32>
    %214 = math.tanh %213 : vector<2x64xf32>
    %cst_69 = arith.constant 5.000000e-01 : f32
    %215 = vector.broadcast %cst_69 : f32 to vector<2x64xf32>
    %216 = arith.mulf %215, %214 : vector<2x64xf32>
    %cst_70 = arith.constant 5.000000e-01 : f32
    %217 = vector.broadcast %cst_70 : f32 to vector<2x64xf32>
    %218 = arith.addf %216, %217 : vector<2x64xf32>
    %219 = arith.mulf %208, %172 : vector<2x64xf32>
    %220 = arith.mulf %200, %210 : vector<2x64xf32>
    %221 = arith.addf %219, %220 : vector<2x64xf32>
    %222 = math.tanh %221 : vector<2x64xf32>
    %223 = arith.mulf %218, %222 : vector<2x64xf32>
    %224 = vector.extract_strided_slice %223 {offsets = [0, 0], sizes = [2, 32], strides = [1, 1]} : vector<2x64xf32> to vector<2x32xf32>
    %c3 = arith.constant 3 : index
    %c0_71 = arith.constant 0 : index
    %c0_72 = arith.constant 0 : index
    %225 = vector.load %arg5[%c3, %c0_71, %c0_72] : memref<8x2x64xf32, #tpu.memory_space<vmem>>, vector<1x2x32xf32>
    %226 = vector.shape_cast %225 : vector<1x2x32xf32> to vector<2x32xf32>
    %227 = vector.shape_cast %224 : vector<2x32xf32> to vector<1x2x32xf32>
    tpu.vector_store %arg5[%c3, %c0_71, %c0_72], %227 {strides = array<i32>} : memref<8x2x64xf32, #tpu.memory_space<vmem>>, vector<1x2x32xf32>,
    %228 = vector.extract_strided_slice %223 {offsets = [0, 32], sizes = [2, 32], strides = [1, 1]} : vector<2x64xf32> to vector<2x32xf32>
    %c4_73 = arith.constant 4 : index
    %c0_74 = arith.constant 0 : index
    %c32_75 = arith.constant 32 : index
    %229 = vector.load %arg5[%c4_73, %c0_74, %c32_75] : memref<8x2x64xf32, #tpu.memory_space<vmem>>, vector<1x2x32xf32>
    %230 = vector.shape_cast %229 : vector<1x2x32xf32> to vector<2x32xf32>
    %231 = vector.shape_cast %228 : vector<2x32xf32> to vector<1x2x32xf32>
    tpu.vector_store %arg5[%c4_73, %c0_74, %c32_75], %231 {strides = array<i32>} : memref<8x2x64xf32, #tpu.memory_space<vmem>>, vector<1x2x32xf32>,
    %232 = vector.extract_strided_slice %14 {offsets = [0, 4, 0], sizes = [2, 1, 256], strides = [1, 1, 1]} : vector<2x8x256xf32> to vector<2x1x256xf32>
    %233 = vector.shape_cast %232 : vector<2x1x256xf32> to vector<2x256xf32>
    %234 = vector.extract_strided_slice %14 {offsets = [0, 3, 0], sizes = [2, 1, 256], strides = [1, 1, 1]} : vector<2x8x256xf32> to vector<2x1x256xf32>
    %235 = vector.shape_cast %234 : vector<2x1x256xf32> to vector<2x256xf32>
    %236 = vector.shape_cast %33 : vector<1x256xi1> to vector<1x256xi1>
    %237 = vector.broadcast %236 : vector<1x256xi1> to vector<2x256xi1>
    %238 = arith.select %237, %233, %235 : vector<2x256xi1>, vector<2x256xf32>
    %239 = arith.truncf %223 : vector<2x64xf32> to vector<2x64xbf16>
    %cst_76 = arith.constant dense<0.000000e+00> : vector<2x256xf32>
    %240 = tpu.matmul %239, %1, %cst_76 {dimension_numbers = #tpu.dot_dimension_numbers<[1], [0], [0], [1], [0, 0, 1, 1], [], []>} : vector<2x64xbf16>, vector<64x256xbf16>, vector<2x256xf32> -> vector<2x256xf32>
    %241 = arith.addf %238, %240 : vector<2x256xf32>
    %242 = vector.extract_strided_slice %241 {offsets = [0, 0], sizes = [2, 64], strides = [1, 1]} : vector<2x256xf32> to vector<2x64xf32>
    %cst_77 = arith.constant 5.000000e-01 : f32
    %243 = vector.broadcast %cst_77 : f32 to vector<2x64xf32>
    %244 = arith.mulf %243, %242 : vector<2x64xf32>
    %245 = math.tanh %244 : vector<2x64xf32>
    %cst_78 = arith.constant 5.000000e-01 : f32
    %246 = vector.broadcast %cst_78 : f32 to vector<2x64xf32>
    %247 = arith.mulf %246, %245 : vector<2x64xf32>
    %cst_79 = arith.constant 5.000000e-01 : f32
    %248 = vector.broadcast %cst_79 : f32 to vector<2x64xf32>
    %249 = arith.addf %247, %248 : vector<2x64xf32>
    %250 = vector.extract_strided_slice %241 {offsets = [0, 64], sizes = [2, 64], strides = [1, 1]} : vector<2x256xf32> to vector<2x64xf32>
    %cst_80 = arith.constant 5.000000e-01 : f32
    %251 = vector.broadcast %cst_80 : f32 to vector<2x64xf32>
    %252 = arith.mulf %251, %250 : vector<2x64xf32>
    %253 = math.tanh %252 : vector<2x64xf32>
    %cst_81 = arith.constant 5.000000e-01 : f32
    %254 = vector.broadcast %cst_81 : f32 to vector<2x64xf32>
    %255 = arith.mulf %254, %253 : vector<2x64xf32>
    %cst_82 = arith.constant 5.000000e-01 : f32
    %256 = vector.broadcast %cst_82 : f32 to vector<2x64xf32>
    %257 = arith.addf %255, %256 : vector<2x64xf32>
    %258 = vector.extract_strided_slice %241 {offsets = [0, 128], sizes = [2, 64], strides = [1, 1]} : vector<2x256xf32> to vector<2x64xf32>
    %259 = math.tanh %258 : vector<2x64xf32>
    %260 = vector.extract_strided_slice %241 {offsets = [0, 192], sizes = [2, 64], strides = [1, 1]} : vector<2x256xf32> to vector<2x64xf32>
    %cst_83 = arith.constant 5.000000e-01 : f32
    %261 = vector.broadcast %cst_83 : f32 to vector<2x64xf32>
    %262 = arith.mulf %261, %260 : vector<2x64xf32>
    %263 = math.tanh %262 : vector<2x64xf32>
    %cst_84 = arith.constant 5.000000e-01 : f32
    %264 = vector.broadcast %cst_84 : f32 to vector<2x64xf32>
    %265 = arith.mulf %264, %263 : vector<2x64xf32>
    %cst_85 = arith.constant 5.000000e-01 : f32
    %266 = vector.broadcast %cst_85 : f32 to vector<2x64xf32>
    %267 = arith.addf %265, %266 : vector<2x64xf32>
    %268 = arith.mulf %257, %221 : vector<2x64xf32>
    %269 = arith.mulf %249, %259 : vector<2x64xf32>
    %270 = arith.addf %268, %269 : vector<2x64xf32>
    %271 = math.tanh %270 : vector<2x64xf32>
    %272 = arith.mulf %267, %271 : vector<2x64xf32>
    %273 = vector.extract_strided_slice %272 {offsets = [0, 0], sizes = [2, 32], strides = [1, 1]} : vector<2x64xf32> to vector<2x32xf32>
    %c4_86 = arith.constant 4 : index
    %c0_87 = arith.constant 0 : index
    %c0_88 = arith.constant 0 : index
    %274 = vector.load %arg5[%c4_86, %c0_87, %c0_88] : memref<8x2x64xf32, #tpu.memory_space<vmem>>, vector<1x2x32xf32>
    %275 = vector.shape_cast %274 : vector<1x2x32xf32> to vector<2x32xf32>
    %276 = vector.shape_cast %273 : vector<2x32xf32> to vector<1x2x32xf32>
    tpu.vector_store %arg5[%c4_86, %c0_87, %c0_88], %276 {strides = array<i32>} : memref<8x2x64xf32, #tpu.memory_space<vmem>>, vector<1x2x32xf32>,
    %277 = vector.extract_strided_slice %272 {offsets = [0, 32], sizes = [2, 32], strides = [1, 1]} : vector<2x64xf32> to vector<2x32xf32>
    %c3_89 = arith.constant 3 : index
    %c0_90 = arith.constant 0 : index
    %c32_91 = arith.constant 32 : index
    %278 = vector.load %arg5[%c3_89, %c0_90, %c32_91] : memref<8x2x64xf32, #tpu.memory_space<vmem>>, vector<1x2x32xf32>
    %279 = vector.shape_cast %278 : vector<1x2x32xf32> to vector<2x32xf32>
    %280 = vector.shape_cast %277 : vector<2x32xf32> to vector<1x2x32xf32>
    tpu.vector_store %arg5[%c3_89, %c0_90, %c32_91], %280 {strides = array<i32>} : memref<8x2x64xf32, #tpu.memory_space<vmem>>, vector<1x2x32xf32>,
    %281 = vector.extract_strided_slice %14 {offsets = [0, 5, 0], sizes = [2, 1, 256], strides = [1, 1, 1]} : vector<2x8x256xf32> to vector<2x1x256xf32>
    %282 = vector.shape_cast %281 : vector<2x1x256xf32> to vector<2x256xf32>
    %283 = vector.extract_strided_slice %14 {offsets = [0, 2, 0], sizes = [2, 1, 256], strides = [1, 1, 1]} : vector<2x8x256xf32> to vector<2x1x256xf32>
    %284 = vector.shape_cast %283 : vector<2x1x256xf32> to vector<2x256xf32>
    %285 = vector.shape_cast %33 : vector<1x256xi1> to vector<1x256xi1>
    %286 = vector.broadcast %285 : vector<1x256xi1> to vector<2x256xi1>
    %287 = arith.select %286, %282, %284 : vector<2x256xi1>, vector<2x256xf32>
    %288 = arith.truncf %272 : vector<2x64xf32> to vector<2x64xbf16>
    %cst_92 = arith.constant dense<0.000000e+00> : vector<2x256xf32>
    %289 = tpu.matmul %288, %1, %cst_92 {dimension_numbers = #tpu.dot_dimension_numbers<[1], [0], [0], [1], [0, 0, 1, 1], [], []>} : vector<2x64xbf16>, vector<64x256xbf16>, vector<2x256xf32> -> vector<2x256xf32>
    %290 = arith.addf %287, %289 : vector<2x256xf32>
    %291 = vector.extract_strided_slice %290 {offsets = [0, 0], sizes = [2, 64], strides = [1, 1]} : vector<2x256xf32> to vector<2x64xf32>
    %cst_93 = arith.constant 5.000000e-01 : f32
    %292 = vector.broadcast %cst_93 : f32 to vector<2x64xf32>
    %293 = arith.mulf %292, %291 : vector<2x64xf32>
    %294 = math.tanh %293 : vector<2x64xf32>
    %cst_94 = arith.constant 5.000000e-01 : f32
    %295 = vector.broadcast %cst_94 : f32 to vector<2x64xf32>
    %296 = arith.mulf %295, %294 : vector<2x64xf32>
    %cst_95 = arith.constant 5.000000e-01 : f32
    %297 = vector.broadcast %cst_95 : f32 to vector<2x64xf32>
    %298 = arith.addf %296, %297 : vector<2x64xf32>
    %299 = vector.extract_strided_slice %290 {offsets = [0, 64], sizes = [2, 64], strides = [1, 1]} : vector<2x256xf32> to vector<2x64xf32>
    %cst_96 = arith.constant 5.000000e-01 : f32
    %300 = vector.broadcast %cst_96 : f32 to vector<2x64xf32>
    %301 = arith.mulf %300, %299 : vector<2x64xf32>
    %302 = math.tanh %301 : vector<2x64xf32>
    %cst_97 = arith.constant 5.000000e-01 : f32
    %303 = vector.broadcast %cst_97 : f32 to vector<2x64xf32>
    %304 = arith.mulf %303, %302 : vector<2x64xf32>
    %cst_98 = arith.constant 5.000000e-01 : f32
    %305 = vector.broadcast %cst_98 : f32 to vector<2x64xf32>
    %306 = arith.addf %304, %305 : vector<2x64xf32>
    %307 = vector.extract_strided_slice %290 {offsets = [0, 128], sizes = [2, 64], strides = [1, 1]} : vector<2x256xf32> to vector<2x64xf32>
    %308 = math.tanh %307 : vector<2x64xf32>
    %309 = vector.extract_strided_slice %290 {offsets = [0, 192], sizes = [2, 64], strides = [1, 1]} : vector<2x256xf32> to vector<2x64xf32>
    %cst_99 = arith.constant 5.000000e-01 : f32
    %310 = vector.broadcast %cst_99 : f32 to vector<2x64xf32>
    %311 = arith.mulf %310, %309 : vector<2x64xf32>
    %312 = math.tanh %311 : vector<2x64xf32>
    %cst_100 = arith.constant 5.000000e-01 : f32
    %313 = vector.broadcast %cst_100 : f32 to vector<2x64xf32>
    %314 = arith.mulf %313, %312 : vector<2x64xf32>
    %cst_101 = arith.constant 5.000000e-01 : f32
    %315 = vector.broadcast %cst_101 : f32 to vector<2x64xf32>
    %316 = arith.addf %314, %315 : vector<2x64xf32>
    %317 = arith.mulf %306, %270 : vector<2x64xf32>
    %318 = arith.mulf %298, %308 : vector<2x64xf32>
    %319 = arith.addf %317, %318 : vector<2x64xf32>
    %320 = math.tanh %319 : vector<2x64xf32>
    %321 = arith.mulf %316, %320 : vector<2x64xf32>
    %322 = vector.extract_strided_slice %321 {offsets = [0, 0], sizes = [2, 32], strides = [1, 1]} : vector<2x64xf32> to vector<2x32xf32>
    %c5_102 = arith.constant 5 : index
    %c0_103 = arith.constant 0 : index
    %c0_104 = arith.constant 0 : index
    %323 = vector.load %arg5[%c5_102, %c0_103, %c0_104] : memref<8x2x64xf32, #tpu.memory_space<vmem>>, vector<1x2x32xf32>
    %324 = vector.shape_cast %323 : vector<1x2x32xf32> to vector<2x32xf32>
    %325 = vector.shape_cast %322 : vector<2x32xf32> to vector<1x2x32xf32>
    tpu.vector_store %arg5[%c5_102, %c0_103, %c0_104], %325 {strides = array<i32>} : memref<8x2x64xf32, #tpu.memory_space<vmem>>, vector<1x2x32xf32>,
    %326 = vector.extract_strided_slice %321 {offsets = [0, 32], sizes = [2, 32], strides = [1, 1]} : vector<2x64xf32> to vector<2x32xf32>
    %c2_105 = arith.constant 2 : index
    %c0_106 = arith.constant 0 : index
    %c32_107 = arith.constant 32 : index
    %327 = vector.load %arg5[%c2_105, %c0_106, %c32_107] : memref<8x2x64xf32, #tpu.memory_space<vmem>>, vector<1x2x32xf32>
    %328 = vector.shape_cast %327 : vector<1x2x32xf32> to vector<2x32xf32>
    %329 = vector.shape_cast %326 : vector<2x32xf32> to vector<1x2x32xf32>
    tpu.vector_store %arg5[%c2_105, %c0_106, %c32_107], %329 {strides = array<i32>} : memref<8x2x64xf32, #tpu.memory_space<vmem>>, vector<1x2x32xf32>,
    %330 = vector.extract_strided_slice %14 {offsets = [0, 6, 0], sizes = [2, 1, 256], strides = [1, 1, 1]} : vector<2x8x256xf32> to vector<2x1x256xf32>
    %331 = vector.shape_cast %330 : vector<2x1x256xf32> to vector<2x256xf32>
    %332 = vector.extract_strided_slice %14 {offsets = [0, 1, 0], sizes = [2, 1, 256], strides = [1, 1, 1]} : vector<2x8x256xf32> to vector<2x1x256xf32>
    %333 = vector.shape_cast %332 : vector<2x1x256xf32> to vector<2x256xf32>
    %334 = vector.shape_cast %33 : vector<1x256xi1> to vector<1x256xi1>
    %335 = vector.broadcast %334 : vector<1x256xi1> to vector<2x256xi1>
    %336 = arith.select %335, %331, %333 : vector<2x256xi1>, vector<2x256xf32>
    %337 = arith.truncf %321 : vector<2x64xf32> to vector<2x64xbf16>
    %cst_108 = arith.constant dense<0.000000e+00> : vector<2x256xf32>
    %338 = tpu.matmul %337, %1, %cst_108 {dimension_numbers = #tpu.dot_dimension_numbers<[1], [0], [0], [1], [0, 0, 1, 1], [], []>} : vector<2x64xbf16>, vector<64x256xbf16>, vector<2x256xf32> -> vector<2x256xf32>
    %339 = arith.addf %336, %338 : vector<2x256xf32>
    %340 = vector.extract_strided_slice %339 {offsets = [0, 0], sizes = [2, 64], strides = [1, 1]} : vector<2x256xf32> to vector<2x64xf32>
    %cst_109 = arith.constant 5.000000e-01 : f32
    %341 = vector.broadcast %cst_109 : f32 to vector<2x64xf32>
    %342 = arith.mulf %341, %340 : vector<2x64xf32>
    %343 = math.tanh %342 : vector<2x64xf32>
    %cst_110 = arith.constant 5.000000e-01 : f32
    %344 = vector.broadcast %cst_110 : f32 to vector<2x64xf32>
    %345 = arith.mulf %344, %343 : vector<2x64xf32>
    %cst_111 = arith.constant 5.000000e-01 : f32
    %346 = vector.broadcast %cst_111 : f32 to vector<2x64xf32>
    %347 = arith.addf %345, %346 : vector<2x64xf32>
    %348 = vector.extract_strided_slice %339 {offsets = [0, 64], sizes = [2, 64], strides = [1, 1]} : vector<2x256xf32> to vector<2x64xf32>
    %cst_112 = arith.constant 5.000000e-01 : f32
    %349 = vector.broadcast %cst_112 : f32 to vector<2x64xf32>
    %350 = arith.mulf %349, %348 : vector<2x64xf32>
    %351 = math.tanh %350 : vector<2x64xf32>
    %cst_113 = arith.constant 5.000000e-01 : f32
    %352 = vector.broadcast %cst_113 : f32 to vector<2x64xf32>
    %353 = arith.mulf %352, %351 : vector<2x64xf32>
    %cst_114 = arith.constant 5.000000e-01 : f32
    %354 = vector.broadcast %cst_114 : f32 to vector<2x64xf32>
    %355 = arith.addf %353, %354 : vector<2x64xf32>
    %356 = vector.extract_strided_slice %339 {offsets = [0, 128], sizes = [2, 64], strides = [1, 1]} : vector<2x256xf32> to vector<2x64xf32>
    %357 = math.tanh %356 : vector<2x64xf32>
    %358 = vector.extract_strided_slice %339 {offsets = [0, 192], sizes = [2, 64], strides = [1, 1]} : vector<2x256xf32> to vector<2x64xf32>
    %cst_115 = arith.constant 5.000000e-01 : f32
    %359 = vector.broadcast %cst_115 : f32 to vector<2x64xf32>
    %360 = arith.mulf %359, %358 : vector<2x64xf32>
    %361 = math.tanh %360 : vector<2x64xf32>
    %cst_116 = arith.constant 5.000000e-01 : f32
    %362 = vector.broadcast %cst_116 : f32 to vector<2x64xf32>
    %363 = arith.mulf %362, %361 : vector<2x64xf32>
    %cst_117 = arith.constant 5.000000e-01 : f32
    %364 = vector.broadcast %cst_117 : f32 to vector<2x64xf32>
    %365 = arith.addf %363, %364 : vector<2x64xf32>
    %366 = arith.mulf %355, %319 : vector<2x64xf32>
    %367 = arith.mulf %347, %357 : vector<2x64xf32>
    %368 = arith.addf %366, %367 : vector<2x64xf32>
    %369 = math.tanh %368 : vector<2x64xf32>
    %370 = arith.mulf %365, %369 : vector<2x64xf32>
    %371 = vector.extract_strided_slice %370 {offsets = [0, 0], sizes = [2, 32], strides = [1, 1]} : vector<2x64xf32> to vector<2x32xf32>
    %c6_118 = arith.constant 6 : index
    %c0_119 = arith.constant 0 : index
    %c0_120 = arith.constant 0 : index
    %372 = vector.load %arg5[%c6_118, %c0_119, %c0_120] : memref<8x2x64xf32, #tpu.memory_space<vmem>>, vector<1x2x32xf32>
    %373 = vector.shape_cast %372 : vector<1x2x32xf32> to vector<2x32xf32>
    %374 = vector.shape_cast %371 : vector<2x32xf32> to vector<1x2x32xf32>
    tpu.vector_store %arg5[%c6_118, %c0_119, %c0_120], %374 {strides = array<i32>} : memref<8x2x64xf32, #tpu.memory_space<vmem>>, vector<1x2x32xf32>,
    %375 = vector.extract_strided_slice %370 {offsets = [0, 32], sizes = [2, 32], strides = [1, 1]} : vector<2x64xf32> to vector<2x32xf32>
    %c1_121 = arith.constant 1 : index
    %c0_122 = arith.constant 0 : index
    %c32_123 = arith.constant 32 : index
    %376 = vector.load %arg5[%c1_121, %c0_122, %c32_123] : memref<8x2x64xf32, #tpu.memory_space<vmem>>, vector<1x2x32xf32>
    %377 = vector.shape_cast %376 : vector<1x2x32xf32> to vector<2x32xf32>
    %378 = vector.shape_cast %375 : vector<2x32xf32> to vector<1x2x32xf32>
    tpu.vector_store %arg5[%c1_121, %c0_122, %c32_123], %378 {strides = array<i32>} : memref<8x2x64xf32, #tpu.memory_space<vmem>>, vector<1x2x32xf32>,
    %379 = vector.extract_strided_slice %14 {offsets = [0, 7, 0], sizes = [2, 1, 256], strides = [1, 1, 1]} : vector<2x8x256xf32> to vector<2x1x256xf32>
    %380 = vector.shape_cast %379 : vector<2x1x256xf32> to vector<2x256xf32>
    %381 = vector.extract_strided_slice %14 {offsets = [0, 0, 0], sizes = [2, 1, 256], strides = [1, 1, 1]} : vector<2x8x256xf32> to vector<2x1x256xf32>
    %382 = vector.shape_cast %381 : vector<2x1x256xf32> to vector<2x256xf32>
    %383 = vector.shape_cast %33 : vector<1x256xi1> to vector<1x256xi1>
    %384 = vector.broadcast %383 : vector<1x256xi1> to vector<2x256xi1>
    %385 = arith.select %384, %380, %382 : vector<2x256xi1>, vector<2x256xf32>
    %386 = arith.truncf %370 : vector<2x64xf32> to vector<2x64xbf16>
    %cst_124 = arith.constant dense<0.000000e+00> : vector<2x256xf32>
    %387 = tpu.matmul %386, %1, %cst_124 {dimension_numbers = #tpu.dot_dimension_numbers<[1], [0], [0], [1], [0, 0, 1, 1], [], []>} : vector<2x64xbf16>, vector<64x256xbf16>, vector<2x256xf32> -> vector<2x256xf32>
    %388 = arith.addf %385, %387 : vector<2x256xf32>
    %389 = vector.extract_strided_slice %388 {offsets = [0, 0], sizes = [2, 64], strides = [1, 1]} : vector<2x256xf32> to vector<2x64xf32>
    %cst_125 = arith.constant 5.000000e-01 : f32
    %390 = vector.broadcast %cst_125 : f32 to vector<2x64xf32>
    %391 = arith.mulf %390, %389 : vector<2x64xf32>
    %392 = math.tanh %391 : vector<2x64xf32>
    %cst_126 = arith.constant 5.000000e-01 : f32
    %393 = vector.broadcast %cst_126 : f32 to vector<2x64xf32>
    %394 = arith.mulf %393, %392 : vector<2x64xf32>
    %cst_127 = arith.constant 5.000000e-01 : f32
    %395 = vector.broadcast %cst_127 : f32 to vector<2x64xf32>
    %396 = arith.addf %394, %395 : vector<2x64xf32>
    %397 = vector.extract_strided_slice %388 {offsets = [0, 64], sizes = [2, 64], strides = [1, 1]} : vector<2x256xf32> to vector<2x64xf32>
    %cst_128 = arith.constant 5.000000e-01 : f32
    %398 = vector.broadcast %cst_128 : f32 to vector<2x64xf32>
    %399 = arith.mulf %398, %397 : vector<2x64xf32>
    %400 = math.tanh %399 : vector<2x64xf32>
    %cst_129 = arith.constant 5.000000e-01 : f32
    %401 = vector.broadcast %cst_129 : f32 to vector<2x64xf32>
    %402 = arith.mulf %401, %400 : vector<2x64xf32>
    %cst_130 = arith.constant 5.000000e-01 : f32
    %403 = vector.broadcast %cst_130 : f32 to vector<2x64xf32>
    %404 = arith.addf %402, %403 : vector<2x64xf32>
    %405 = vector.extract_strided_slice %388 {offsets = [0, 128], sizes = [2, 64], strides = [1, 1]} : vector<2x256xf32> to vector<2x64xf32>
    %406 = math.tanh %405 : vector<2x64xf32>
    %407 = vector.extract_strided_slice %388 {offsets = [0, 192], sizes = [2, 64], strides = [1, 1]} : vector<2x256xf32> to vector<2x64xf32>
    %cst_131 = arith.constant 5.000000e-01 : f32
    %408 = vector.broadcast %cst_131 : f32 to vector<2x64xf32>
    %409 = arith.mulf %408, %407 : vector<2x64xf32>
    %410 = math.tanh %409 : vector<2x64xf32>
    %cst_132 = arith.constant 5.000000e-01 : f32
    %411 = vector.broadcast %cst_132 : f32 to vector<2x64xf32>
    %412 = arith.mulf %411, %410 : vector<2x64xf32>
    %cst_133 = arith.constant 5.000000e-01 : f32
    %413 = vector.broadcast %cst_133 : f32 to vector<2x64xf32>
    %414 = arith.addf %412, %413 : vector<2x64xf32>
    %415 = arith.mulf %404, %368 : vector<2x64xf32>
    %416 = arith.mulf %396, %406 : vector<2x64xf32>
    %417 = arith.addf %415, %416 : vector<2x64xf32>
    %418 = math.tanh %417 : vector<2x64xf32>
    %419 = arith.mulf %414, %418 : vector<2x64xf32>
    %420 = vector.extract_strided_slice %419 {offsets = [0, 0], sizes = [2, 32], strides = [1, 1]} : vector<2x64xf32> to vector<2x32xf32>
    %c7_134 = arith.constant 7 : index
    %c0_135 = arith.constant 0 : index
    %c0_136 = arith.constant 0 : index
    %421 = vector.load %arg5[%c7_134, %c0_135, %c0_136] : memref<8x2x64xf32, #tpu.memory_space<vmem>>, vector<1x2x32xf32>
    %422 = vector.shape_cast %421 : vector<1x2x32xf32> to vector<2x32xf32>
    %423 = vector.shape_cast %420 : vector<2x32xf32> to vector<1x2x32xf32>
    tpu.vector_store %arg5[%c7_134, %c0_135, %c0_136], %423 {strides = array<i32>} : memref<8x2x64xf32, #tpu.memory_space<vmem>>, vector<1x2x32xf32>,
    %424 = vector.extract_strided_slice %419 {offsets = [0, 32], sizes = [2, 32], strides = [1, 1]} : vector<2x64xf32> to vector<2x32xf32>
    %c0_137 = arith.constant 0 : index
    %c0_138 = arith.constant 0 : index
    %c32_139 = arith.constant 32 : index
    %425 = vector.load %arg5[%c0_137, %c0_138, %c32_139] : memref<8x2x64xf32, #tpu.memory_space<vmem>>, vector<1x2x32xf32>
    %426 = vector.shape_cast %425 : vector<1x2x32xf32> to vector<2x32xf32>
    %427 = vector.shape_cast %424 : vector<2x32xf32> to vector<1x2x32xf32>
    tpu.vector_store %arg5[%c0_137, %c0_138, %c32_139], %427 {strides = array<i32>} : memref<8x2x64xf32, #tpu.memory_space<vmem>>, vector<1x2x32xf32>,
    %c0_140 = arith.constant 0 : index
    %c0_141 = arith.constant 0 : index
    %c0_142 = arith.constant 0 : index
    %428 = vector.load %arg5[%c0_140, %c0_141, %c0_142] : memref<8x2x64xf32, #tpu.memory_space<vmem>>, vector<8x2x64xf32>
    %429 = vector.shape_cast %428 : vector<8x2x64xf32> to vector<16x64xf32>
    %430 = arith.truncf %429 : vector<16x64xf32> to vector<16x64xbf16>
    %cst_143 = arith.constant dense<0.000000e+00> : vector<16x256xf32>
    %431 = tpu.matmul %430, %2, %cst_143 {dimension_numbers = #tpu.dot_dimension_numbers<[1], [0], [0], [1], [0, 0, 1, 1], [], []>} : vector<16x64xbf16>, vector<64x256xbf16>, vector<16x256xf32> -> vector<16x256xf32>
    %432 = vector.broadcast %7 : vector<1x256xf32> to vector<16x256xf32>
    %433 = arith.addf %431, %432 : vector<16x256xf32>
    %434 = vector.shape_cast %433 : vector<16x256xf32> to vector<8x2x256xf32>
    %cst_144 = arith.constant 0.000000e+00 : f32
    %435 = vector.broadcast %cst_144 : f32 to vector<2x32xf32>
    %cst_145 = arith.constant 0.000000e+00 : f32
    %436 = vector.broadcast %cst_145 : f32 to vector<2x32xf32>
    %437 = vector.extract_strided_slice %434 {offsets = [0, 0, 0], sizes = [1, 2, 128], strides = [1, 1, 1]} : vector<8x2x256xf32> to vector<1x2x128xf32>
    %438 = vector.shape_cast %437 : vector<1x2x128xf32> to vector<2x128xf32>
    %439 = arith.truncf %435 : vector<2x32xf32> to vector<2x32xbf16>
    %cst_146 = arith.constant dense<0.000000e+00> : vector<2x128xf32>
    %440 = tpu.matmul %439, %3, %cst_146 {dimension_numbers = #tpu.dot_dimension_numbers<[1], [0], [0], [1], [0, 0, 1, 1], [], []>} : vector<2x32xbf16>, vector<32x128xbf16>, vector<2x128xf32> -> vector<2x128xf32>
    %441 = arith.addf %438, %440 : vector<2x128xf32>
    %442 = vector.extract_strided_slice %441 {offsets = [0, 0], sizes = [2, 32], strides = [1, 1]} : vector<2x128xf32> to vector<2x32xf32>
    %cst_147 = arith.constant 5.000000e-01 : f32
    %443 = vector.broadcast %cst_147 : f32 to vector<2x32xf32>
    %444 = arith.mulf %443, %442 : vector<2x32xf32>
    %445 = math.tanh %444 : vector<2x32xf32>
    %cst_148 = arith.constant 5.000000e-01 : f32
    %446 = vector.broadcast %cst_148 : f32 to vector<2x32xf32>
    %447 = arith.mulf %446, %445 : vector<2x32xf32>
    %cst_149 = arith.constant 5.000000e-01 : f32
    %448 = vector.broadcast %cst_149 : f32 to vector<2x32xf32>
    %449 = arith.addf %447, %448 : vector<2x32xf32>
    %450 = vector.extract_strided_slice %441 {offsets = [0, 32], sizes = [2, 32], strides = [1, 1]} : vector<2x128xf32> to vector<2x32xf32>
    %cst_150 = arith.constant 5.000000e-01 : f32
    %451 = vector.broadcast %cst_150 : f32 to vector<2x32xf32>
    %452 = arith.mulf %451, %450 : vector<2x32xf32>
    %453 = math.tanh %452 : vector<2x32xf32>
    %cst_151 = arith.constant 5.000000e-01 : f32
    %454 = vector.broadcast %cst_151 : f32 to vector<2x32xf32>
    %455 = arith.mulf %454, %453 : vector<2x32xf32>
    %cst_152 = arith.constant 5.000000e-01 : f32
    %456 = vector.broadcast %cst_152 : f32 to vector<2x32xf32>
    %457 = arith.addf %455, %456 : vector<2x32xf32>
    %458 = vector.extract_strided_slice %441 {offsets = [0, 64], sizes = [2, 32], strides = [1, 1]} : vector<2x128xf32> to vector<2x32xf32>
    %459 = math.tanh %458 : vector<2x32xf32>
    %460 = vector.extract_strided_slice %441 {offsets = [0, 96], sizes = [2, 32], strides = [1, 1]} : vector<2x128xf32> to vector<2x32xf32>
    %cst_153 = arith.constant 5.000000e-01 : f32
    %461 = vector.broadcast %cst_153 : f32 to vector<2x32xf32>
    %462 = arith.mulf %461, %460 : vector<2x32xf32>
    %463 = math.tanh %462 : vector<2x32xf32>
    %cst_154 = arith.constant 5.000000e-01 : f32
    %464 = vector.broadcast %cst_154 : f32 to vector<2x32xf32>
    %465 = arith.mulf %464, %463 : vector<2x32xf32>
    %cst_155 = arith.constant 5.000000e-01 : f32
    %466 = vector.broadcast %cst_155 : f32 to vector<2x32xf32>
    %467 = arith.addf %465, %466 : vector<2x32xf32>
    %468 = arith.mulf %457, %436 : vector<2x32xf32>
    %469 = arith.mulf %449, %459 : vector<2x32xf32>
    %470 = arith.addf %468, %469 : vector<2x32xf32>
    %471 = math.tanh %470 : vector<2x32xf32>
    %472 = arith.mulf %467, %471 : vector<2x32xf32>
    %473 = vector.extract_strided_slice %434 {offsets = [1, 0, 0], sizes = [1, 2, 128], strides = [1, 1, 1]} : vector<8x2x256xf32> to vector<1x2x128xf32>
    %474 = vector.shape_cast %473 : vector<1x2x128xf32> to vector<2x128xf32>
    %475 = arith.truncf %472 : vector<2x32xf32> to vector<2x32xbf16>
    %cst_156 = arith.constant dense<0.000000e+00> : vector<2x128xf32>
    %476 = tpu.matmul %475, %3, %cst_156 {dimension_numbers = #tpu.dot_dimension_numbers<[1], [0], [0], [1], [0, 0, 1, 1], [], []>} : vector<2x32xbf16>, vector<32x128xbf16>, vector<2x128xf32> -> vector<2x128xf32>
    %477 = arith.addf %474, %476 : vector<2x128xf32>
    %478 = vector.extract_strided_slice %477 {offsets = [0, 0], sizes = [2, 32], strides = [1, 1]} : vector<2x128xf32> to vector<2x32xf32>
    %cst_157 = arith.constant 5.000000e-01 : f32
    %479 = vector.broadcast %cst_157 : f32 to vector<2x32xf32>
    %480 = arith.mulf %479, %478 : vector<2x32xf32>
    %481 = math.tanh %480 : vector<2x32xf32>
    %cst_158 = arith.constant 5.000000e-01 : f32
    %482 = vector.broadcast %cst_158 : f32 to vector<2x32xf32>
    %483 = arith.mulf %482, %481 : vector<2x32xf32>
    %cst_159 = arith.constant 5.000000e-01 : f32
    %484 = vector.broadcast %cst_159 : f32 to vector<2x32xf32>
    %485 = arith.addf %483, %484 : vector<2x32xf32>
    %486 = vector.extract_strided_slice %477 {offsets = [0, 32], sizes = [2, 32], strides = [1, 1]} : vector<2x128xf32> to vector<2x32xf32>
    %cst_160 = arith.constant 5.000000e-01 : f32
    %487 = vector.broadcast %cst_160 : f32 to vector<2x32xf32>
    %488 = arith.mulf %487, %486 : vector<2x32xf32>
    %489 = math.tanh %488 : vector<2x32xf32>
    %cst_161 = arith.constant 5.000000e-01 : f32
    %490 = vector.broadcast %cst_161 : f32 to vector<2x32xf32>
    %491 = arith.mulf %490, %489 : vector<2x32xf32>
    %cst_162 = arith.constant 5.000000e-01 : f32
    %492 = vector.broadcast %cst_162 : f32 to vector<2x32xf32>
    %493 = arith.addf %491, %492 : vector<2x32xf32>
    %494 = vector.extract_strided_slice %477 {offsets = [0, 64], sizes = [2, 32], strides = [1, 1]} : vector<2x128xf32> to vector<2x32xf32>
    %495 = math.tanh %494 : vector<2x32xf32>
    %496 = vector.extract_strided_slice %477 {offsets = [0, 96], sizes = [2, 32], strides = [1, 1]} : vector<2x128xf32> to vector<2x32xf32>
    %cst_163 = arith.constant 5.000000e-01 : f32
    %497 = vector.broadcast %cst_163 : f32 to vector<2x32xf32>
    %498 = arith.mulf %497, %496 : vector<2x32xf32>
    %499 = math.tanh %498 : vector<2x32xf32>
    %cst_164 = arith.constant 5.000000e-01 : f32
    %500 = vector.broadcast %cst_164 : f32 to vector<2x32xf32>
    %501 = arith.mulf %500, %499 : vector<2x32xf32>
    %cst_165 = arith.constant 5.000000e-01 : f32
    %502 = vector.broadcast %cst_165 : f32 to vector<2x32xf32>
    %503 = arith.addf %501, %502 : vector<2x32xf32>
    %504 = arith.mulf %493, %470 : vector<2x32xf32>
    %505 = arith.mulf %485, %495 : vector<2x32xf32>
    %506 = arith.addf %504, %505 : vector<2x32xf32>
    %507 = math.tanh %506 : vector<2x32xf32>
    %508 = arith.mulf %503, %507 : vector<2x32xf32>
    %509 = vector.extract_strided_slice %434 {offsets = [2, 0, 0], sizes = [1, 2, 128], strides = [1, 1, 1]} : vector<8x2x256xf32> to vector<1x2x128xf32>
    %510 = vector.shape_cast %509 : vector<1x2x128xf32> to vector<2x128xf32>
    %511 = arith.truncf %508 : vector<2x32xf32> to vector<2x32xbf16>
    %cst_166 = arith.constant dense<0.000000e+00> : vector<2x128xf32>
    %512 = tpu.matmul %511, %3, %cst_166 {dimension_numbers = #tpu.dot_dimension_numbers<[1], [0], [0], [1], [0, 0, 1, 1], [], []>} : vector<2x32xbf16>, vector<32x128xbf16>, vector<2x128xf32> -> vector<2x128xf32>
    %513 = arith.addf %510, %512 : vector<2x128xf32>
    %514 = vector.extract_strided_slice %513 {offsets = [0, 0], sizes = [2, 32], strides = [1, 1]} : vector<2x128xf32> to vector<2x32xf32>
    %cst_167 = arith.constant 5.000000e-01 : f32
    %515 = vector.broadcast %cst_167 : f32 to vector<2x32xf32>
    %516 = arith.mulf %515, %514 : vector<2x32xf32>
    %517 = math.tanh %516 : vector<2x32xf32>
    %cst_168 = arith.constant 5.000000e-01 : f32
    %518 = vector.broadcast %cst_168 : f32 to vector<2x32xf32>
    %519 = arith.mulf %518, %517 : vector<2x32xf32>
    %cst_169 = arith.constant 5.000000e-01 : f32
    %520 = vector.broadcast %cst_169 : f32 to vector<2x32xf32>
    %521 = arith.addf %519, %520 : vector<2x32xf32>
    %522 = vector.extract_strided_slice %513 {offsets = [0, 32], sizes = [2, 32], strides = [1, 1]} : vector<2x128xf32> to vector<2x32xf32>
    %cst_170 = arith.constant 5.000000e-01 : f32
    %523 = vector.broadcast %cst_170 : f32 to vector<2x32xf32>
    %524 = arith.mulf %523, %522 : vector<2x32xf32>
    %525 = math.tanh %524 : vector<2x32xf32>
    %cst_171 = arith.constant 5.000000e-01 : f32
    %526 = vector.broadcast %cst_171 : f32 to vector<2x32xf32>
    %527 = arith.mulf %526, %525 : vector<2x32xf32>
    %cst_172 = arith.constant 5.000000e-01 : f32
    %528 = vector.broadcast %cst_172 : f32 to vector<2x32xf32>
    %529 = arith.addf %527, %528 : vector<2x32xf32>
    %530 = vector.extract_strided_slice %513 {offsets = [0, 64], sizes = [2, 32], strides = [1, 1]} : vector<2x128xf32> to vector<2x32xf32>
    %531 = math.tanh %530 : vector<2x32xf32>
    %532 = vector.extract_strided_slice %513 {offsets = [0, 96], sizes = [2, 32], strides = [1, 1]} : vector<2x128xf32> to vector<2x32xf32>
    %cst_173 = arith.constant 5.000000e-01 : f32
    %533 = vector.broadcast %cst_173 : f32 to vector<2x32xf32>
    %534 = arith.mulf %533, %532 : vector<2x32xf32>
    %535 = math.tanh %534 : vector<2x32xf32>
    %cst_174 = arith.constant 5.000000e-01 : f32
    %536 = vector.broadcast %cst_174 : f32 to vector<2x32xf32>
    %537 = arith.mulf %536, %535 : vector<2x32xf32>
    %cst_175 = arith.constant 5.000000e-01 : f32
    %538 = vector.broadcast %cst_175 : f32 to vector<2x32xf32>
    %539 = arith.addf %537, %538 : vector<2x32xf32>
    %540 = arith.mulf %529, %506 : vector<2x32xf32>
    %541 = arith.mulf %521, %531 : vector<2x32xf32>
    %542 = arith.addf %540, %541 : vector<2x32xf32>
    %543 = math.tanh %542 : vector<2x32xf32>
    %544 = arith.mulf %539, %543 : vector<2x32xf32>
    %545 = vector.extract_strided_slice %434 {offsets = [3, 0, 0], sizes = [1, 2, 128], strides = [1, 1, 1]} : vector<8x2x256xf32> to vector<1x2x128xf32>
    %546 = vector.shape_cast %545 : vector<1x2x128xf32> to vector<2x128xf32>
    %547 = arith.truncf %544 : vector<2x32xf32> to vector<2x32xbf16>
    %cst_176 = arith.constant dense<0.000000e+00> : vector<2x128xf32>
    %548 = tpu.matmul %547, %3, %cst_176 {dimension_numbers = #tpu.dot_dimension_numbers<[1], [0], [0], [1], [0, 0, 1, 1], [], []>} : vector<2x32xbf16>, vector<32x128xbf16>, vector<2x128xf32> -> vector<2x128xf32>
    %549 = arith.addf %546, %548 : vector<2x128xf32>
    %550 = vector.extract_strided_slice %549 {offsets = [0, 0], sizes = [2, 32], strides = [1, 1]} : vector<2x128xf32> to vector<2x32xf32>
    %cst_177 = arith.constant 5.000000e-01 : f32
    %551 = vector.broadcast %cst_177 : f32 to vector<2x32xf32>
    %552 = arith.mulf %551, %550 : vector<2x32xf32>
    %553 = math.tanh %552 : vector<2x32xf32>
    %cst_178 = arith.constant 5.000000e-01 : f32
    %554 = vector.broadcast %cst_178 : f32 to vector<2x32xf32>
    %555 = arith.mulf %554, %553 : vector<2x32xf32>
    %cst_179 = arith.constant 5.000000e-01 : f32
    %556 = vector.broadcast %cst_179 : f32 to vector<2x32xf32>
    %557 = arith.addf %555, %556 : vector<2x32xf32>
    %558 = vector.extract_strided_slice %549 {offsets = [0, 32], sizes = [2, 32], strides = [1, 1]} : vector<2x128xf32> to vector<2x32xf32>
    %cst_180 = arith.constant 5.000000e-01 : f32
    %559 = vector.broadcast %cst_180 : f32 to vector<2x32xf32>
    %560 = arith.mulf %559, %558 : vector<2x32xf32>
    %561 = math.tanh %560 : vector<2x32xf32>
    %cst_181 = arith.constant 5.000000e-01 : f32
    %562 = vector.broadcast %cst_181 : f32 to vector<2x32xf32>
    %563 = arith.mulf %562, %561 : vector<2x32xf32>
    %cst_182 = arith.constant 5.000000e-01 : f32
    %564 = vector.broadcast %cst_182 : f32 to vector<2x32xf32>
    %565 = arith.addf %563, %564 : vector<2x32xf32>
    %566 = vector.extract_strided_slice %549 {offsets = [0, 64], sizes = [2, 32], strides = [1, 1]} : vector<2x128xf32> to vector<2x32xf32>
    %567 = math.tanh %566 : vector<2x32xf32>
    %568 = vector.extract_strided_slice %549 {offsets = [0, 96], sizes = [2, 32], strides = [1, 1]} : vector<2x128xf32> to vector<2x32xf32>
    %cst_183 = arith.constant 5.000000e-01 : f32
    %569 = vector.broadcast %cst_183 : f32 to vector<2x32xf32>
    %570 = arith.mulf %569, %568 : vector<2x32xf32>
    %571 = math.tanh %570 : vector<2x32xf32>
    %cst_184 = arith.constant 5.000000e-01 : f32
    %572 = vector.broadcast %cst_184 : f32 to vector<2x32xf32>
    %573 = arith.mulf %572, %571 : vector<2x32xf32>
    %cst_185 = arith.constant 5.000000e-01 : f32
    %574 = vector.broadcast %cst_185 : f32 to vector<2x32xf32>
    %575 = arith.addf %573, %574 : vector<2x32xf32>
    %576 = arith.mulf %565, %542 : vector<2x32xf32>
    %577 = arith.mulf %557, %567 : vector<2x32xf32>
    %578 = arith.addf %576, %577 : vector<2x32xf32>
    %579 = math.tanh %578 : vector<2x32xf32>
    %580 = arith.mulf %575, %579 : vector<2x32xf32>
    %581 = vector.extract_strided_slice %434 {offsets = [4, 0, 0], sizes = [1, 2, 128], strides = [1, 1, 1]} : vector<8x2x256xf32> to vector<1x2x128xf32>
    %582 = vector.shape_cast %581 : vector<1x2x128xf32> to vector<2x128xf32>
    %583 = arith.truncf %580 : vector<2x32xf32> to vector<2x32xbf16>
    %cst_186 = arith.constant dense<0.000000e+00> : vector<2x128xf32>
    %584 = tpu.matmul %583, %3, %cst_186 {dimension_numbers = #tpu.dot_dimension_numbers<[1], [0], [0], [1], [0, 0, 1, 1], [], []>} : vector<2x32xbf16>, vector<32x128xbf16>, vector<2x128xf32> -> vector<2x128xf32>
    %585 = arith.addf %582, %584 : vector<2x128xf32>
    %586 = vector.extract_strided_slice %585 {offsets = [0, 0], sizes = [2, 32], strides = [1, 1]} : vector<2x128xf32> to vector<2x32xf32>
    %cst_187 = arith.constant 5.000000e-01 : f32
    %587 = vector.broadcast %cst_187 : f32 to vector<2x32xf32>
    %588 = arith.mulf %587, %586 : vector<2x32xf32>
    %589 = math.tanh %588 : vector<2x32xf32>
    %cst_188 = arith.constant 5.000000e-01 : f32
    %590 = vector.broadcast %cst_188 : f32 to vector<2x32xf32>
    %591 = arith.mulf %590, %589 : vector<2x32xf32>
    %cst_189 = arith.constant 5.000000e-01 : f32
    %592 = vector.broadcast %cst_189 : f32 to vector<2x32xf32>
    %593 = arith.addf %591, %592 : vector<2x32xf32>
    %594 = vector.extract_strided_slice %585 {offsets = [0, 32], sizes = [2, 32], strides = [1, 1]} : vector<2x128xf32> to vector<2x32xf32>
    %cst_190 = arith.constant 5.000000e-01 : f32
    %595 = vector.broadcast %cst_190 : f32 to vector<2x32xf32>
    %596 = arith.mulf %595, %594 : vector<2x32xf32>
    %597 = math.tanh %596 : vector<2x32xf32>
    %cst_191 = arith.constant 5.000000e-01 : f32
    %598 = vector.broadcast %cst_191 : f32 to vector<2x32xf32>
    %599 = arith.mulf %598, %597 : vector<2x32xf32>
    %cst_192 = arith.constant 5.000000e-01 : f32
    %600 = vector.broadcast %cst_192 : f32 to vector<2x32xf32>
    %601 = arith.addf %599, %600 : vector<2x32xf32>
    %602 = vector.extract_strided_slice %585 {offsets = [0, 64], sizes = [2, 32], strides = [1, 1]} : vector<2x128xf32> to vector<2x32xf32>
    %603 = math.tanh %602 : vector<2x32xf32>
    %604 = vector.extract_strided_slice %585 {offsets = [0, 96], sizes = [2, 32], strides = [1, 1]} : vector<2x128xf32> to vector<2x32xf32>
    %cst_193 = arith.constant 5.000000e-01 : f32
    %605 = vector.broadcast %cst_193 : f32 to vector<2x32xf32>
    %606 = arith.mulf %605, %604 : vector<2x32xf32>
    %607 = math.tanh %606 : vector<2x32xf32>
    %cst_194 = arith.constant 5.000000e-01 : f32
    %608 = vector.broadcast %cst_194 : f32 to vector<2x32xf32>
    %609 = arith.mulf %608, %607 : vector<2x32xf32>
    %cst_195 = arith.constant 5.000000e-01 : f32
    %610 = vector.broadcast %cst_195 : f32 to vector<2x32xf32>
    %611 = arith.addf %609, %610 : vector<2x32xf32>
    %612 = arith.mulf %601, %578 : vector<2x32xf32>
    %613 = arith.mulf %593, %603 : vector<2x32xf32>
    %614 = arith.addf %612, %613 : vector<2x32xf32>
    %615 = math.tanh %614 : vector<2x32xf32>
    %616 = arith.mulf %611, %615 : vector<2x32xf32>
    %617 = vector.extract_strided_slice %434 {offsets = [5, 0, 0], sizes = [1, 2, 128], strides = [1, 1, 1]} : vector<8x2x256xf32> to vector<1x2x128xf32>
    %618 = vector.shape_cast %617 : vector<1x2x128xf32> to vector<2x128xf32>
    %619 = arith.truncf %616 : vector<2x32xf32> to vector<2x32xbf16>
    %cst_196 = arith.constant dense<0.000000e+00> : vector<2x128xf32>
    %620 = tpu.matmul %619, %3, %cst_196 {dimension_numbers = #tpu.dot_dimension_numbers<[1], [0], [0], [1], [0, 0, 1, 1], [], []>} : vector<2x32xbf16>, vector<32x128xbf16>, vector<2x128xf32> -> vector<2x128xf32>
    %621 = arith.addf %618, %620 : vector<2x128xf32>
    %622 = vector.extract_strided_slice %621 {offsets = [0, 0], sizes = [2, 32], strides = [1, 1]} : vector<2x128xf32> to vector<2x32xf32>
    %cst_197 = arith.constant 5.000000e-01 : f32
    %623 = vector.broadcast %cst_197 : f32 to vector<2x32xf32>
    %624 = arith.mulf %623, %622 : vector<2x32xf32>
    %625 = math.tanh %624 : vector<2x32xf32>
    %cst_198 = arith.constant 5.000000e-01 : f32
    %626 = vector.broadcast %cst_198 : f32 to vector<2x32xf32>
    %627 = arith.mulf %626, %625 : vector<2x32xf32>
    %cst_199 = arith.constant 5.000000e-01 : f32
    %628 = vector.broadcast %cst_199 : f32 to vector<2x32xf32>
    %629 = arith.addf %627, %628 : vector<2x32xf32>
    %630 = vector.extract_strided_slice %621 {offsets = [0, 32], sizes = [2, 32], strides = [1, 1]} : vector<2x128xf32> to vector<2x32xf32>
    %cst_200 = arith.constant 5.000000e-01 : f32
    %631 = vector.broadcast %cst_200 : f32 to vector<2x32xf32>
    %632 = arith.mulf %631, %630 : vector<2x32xf32>
    %633 = math.tanh %632 : vector<2x32xf32>
    %cst_201 = arith.constant 5.000000e-01 : f32
    %634 = vector.broadcast %cst_201 : f32 to vector<2x32xf32>
    %635 = arith.mulf %634, %633 : vector<2x32xf32>
    %cst_202 = arith.constant 5.000000e-01 : f32
    %636 = vector.broadcast %cst_202 : f32 to vector<2x32xf32>
    %637 = arith.addf %635, %636 : vector<2x32xf32>
    %638 = vector.extract_strided_slice %621 {offsets = [0, 64], sizes = [2, 32], strides = [1, 1]} : vector<2x128xf32> to vector<2x32xf32>
    %639 = math.tanh %638 : vector<2x32xf32>
    %640 = vector.extract_strided_slice %621 {offsets = [0, 96], sizes = [2, 32], strides = [1, 1]} : vector<2x128xf32> to vector<2x32xf32>
    %cst_203 = arith.constant 5.000000e-01 : f32
    %641 = vector.broadcast %cst_203 : f32 to vector<2x32xf32>
    %642 = arith.mulf %641, %640 : vector<2x32xf32>
    %643 = math.tanh %642 : vector<2x32xf32>
    %cst_204 = arith.constant 5.000000e-01 : f32
    %644 = vector.broadcast %cst_204 : f32 to vector<2x32xf32>
    %645 = arith.mulf %644, %643 : vector<2x32xf32>
    %cst_205 = arith.constant 5.000000e-01 : f32
    %646 = vector.broadcast %cst_205 : f32 to vector<2x32xf32>
    %647 = arith.addf %645, %646 : vector<2x32xf32>
    %648 = arith.mulf %637, %614 : vector<2x32xf32>
    %649 = arith.mulf %629, %639 : vector<2x32xf32>
    %650 = arith.addf %648, %649 : vector<2x32xf32>
    %651 = math.tanh %650 : vector<2x32xf32>
    %652 = arith.mulf %647, %651 : vector<2x32xf32>
    %653 = vector.extract_strided_slice %434 {offsets = [6, 0, 0], sizes = [1, 2, 128], strides = [1, 1, 1]} : vector<8x2x256xf32> to vector<1x2x128xf32>
    %654 = vector.shape_cast %653 : vector<1x2x128xf32> to vector<2x128xf32>
    %655 = arith.truncf %652 : vector<2x32xf32> to vector<2x32xbf16>
    %cst_206 = arith.constant dense<0.000000e+00> : vector<2x128xf32>
    %656 = tpu.matmul %655, %3, %cst_206 {dimension_numbers = #tpu.dot_dimension_numbers<[1], [0], [0], [1], [0, 0, 1, 1], [], []>} : vector<2x32xbf16>, vector<32x128xbf16>, vector<2x128xf32> -> vector<2x128xf32>
    %657 = arith.addf %654, %656 : vector<2x128xf32>
    %658 = vector.extract_strided_slice %657 {offsets = [0, 0], sizes = [2, 32], strides = [1, 1]} : vector<2x128xf32> to vector<2x32xf32>
    %cst_207 = arith.constant 5.000000e-01 : f32
    %659 = vector.broadcast %cst_207 : f32 to vector<2x32xf32>
    %660 = arith.mulf %659, %658 : vector<2x32xf32>
    %661 = math.tanh %660 : vector<2x32xf32>
    %cst_208 = arith.constant 5.000000e-01 : f32
    %662 = vector.broadcast %cst_208 : f32 to vector<2x32xf32>
    %663 = arith.mulf %662, %661 : vector<2x32xf32>
    %cst_209 = arith.constant 5.000000e-01 : f32
    %664 = vector.broadcast %cst_209 : f32 to vector<2x32xf32>
    %665 = arith.addf %663, %664 : vector<2x32xf32>
    %666 = vector.extract_strided_slice %657 {offsets = [0, 32], sizes = [2, 32], strides = [1, 1]} : vector<2x128xf32> to vector<2x32xf32>
    %cst_210 = arith.constant 5.000000e-01 : f32
    %667 = vector.broadcast %cst_210 : f32 to vector<2x32xf32>
    %668 = arith.mulf %667, %666 : vector<2x32xf32>
    %669 = math.tanh %668 : vector<2x32xf32>
    %cst_211 = arith.constant 5.000000e-01 : f32
    %670 = vector.broadcast %cst_211 : f32 to vector<2x32xf32>
    %671 = arith.mulf %670, %669 : vector<2x32xf32>
    %cst_212 = arith.constant 5.000000e-01 : f32
    %672 = vector.broadcast %cst_212 : f32 to vector<2x32xf32>
    %673 = arith.addf %671, %672 : vector<2x32xf32>
    %674 = vector.extract_strided_slice %657 {offsets = [0, 64], sizes = [2, 32], strides = [1, 1]} : vector<2x128xf32> to vector<2x32xf32>
    %675 = math.tanh %674 : vector<2x32xf32>
    %676 = vector.extract_strided_slice %657 {offsets = [0, 96], sizes = [2, 32], strides = [1, 1]} : vector<2x128xf32> to vector<2x32xf32>
    %cst_213 = arith.constant 5.000000e-01 : f32
    %677 = vector.broadcast %cst_213 : f32 to vector<2x32xf32>
    %678 = arith.mulf %677, %676 : vector<2x32xf32>
    %679 = math.tanh %678 : vector<2x32xf32>
    %cst_214 = arith.constant 5.000000e-01 : f32
    %680 = vector.broadcast %cst_214 : f32 to vector<2x32xf32>
    %681 = arith.mulf %680, %679 : vector<2x32xf32>
    %cst_215 = arith.constant 5.000000e-01 : f32
    %682 = vector.broadcast %cst_215 : f32 to vector<2x32xf32>
    %683 = arith.addf %681, %682 : vector<2x32xf32>
    %684 = arith.mulf %673, %650 : vector<2x32xf32>
    %685 = arith.mulf %665, %675 : vector<2x32xf32>
    %686 = arith.addf %684, %685 : vector<2x32xf32>
    %687 = math.tanh %686 : vector<2x32xf32>
    %688 = arith.mulf %683, %687 : vector<2x32xf32>
    %689 = vector.extract_strided_slice %434 {offsets = [7, 0, 0], sizes = [1, 2, 128], strides = [1, 1, 1]} : vector<8x2x256xf32> to vector<1x2x128xf32>
    %690 = vector.shape_cast %689 : vector<1x2x128xf32> to vector<2x128xf32>
    %691 = arith.truncf %688 : vector<2x32xf32> to vector<2x32xbf16>
    %cst_216 = arith.constant dense<0.000000e+00> : vector<2x128xf32>
    %692 = tpu.matmul %691, %3, %cst_216 {dimension_numbers = #tpu.dot_dimension_numbers<[1], [0], [0], [1], [0, 0, 1, 1], [], []>} : vector<2x32xbf16>, vector<32x128xbf16>, vector<2x128xf32> -> vector<2x128xf32>
    %693 = arith.addf %690, %692 : vector<2x128xf32>
    %694 = vector.extract_strided_slice %693 {offsets = [0, 0], sizes = [2, 32], strides = [1, 1]} : vector<2x128xf32> to vector<2x32xf32>
    %cst_217 = arith.constant 5.000000e-01 : f32
    %695 = vector.broadcast %cst_217 : f32 to vector<2x32xf32>
    %696 = arith.mulf %695, %694 : vector<2x32xf32>
    %697 = math.tanh %696 : vector<2x32xf32>
    %cst_218 = arith.constant 5.000000e-01 : f32
    %698 = vector.broadcast %cst_218 : f32 to vector<2x32xf32>
    %699 = arith.mulf %698, %697 : vector<2x32xf32>
    %cst_219 = arith.constant 5.000000e-01 : f32
    %700 = vector.broadcast %cst_219 : f32 to vector<2x32xf32>
    %701 = arith.addf %699, %700 : vector<2x32xf32>
    %702 = vector.extract_strided_slice %693 {offsets = [0, 32], sizes = [2, 32], strides = [1, 1]} : vector<2x128xf32> to vector<2x32xf32>
    %cst_220 = arith.constant 5.000000e-01 : f32
    %703 = vector.broadcast %cst_220 : f32 to vector<2x32xf32>
    %704 = arith.mulf %703, %702 : vector<2x32xf32>
    %705 = math.tanh %704 : vector<2x32xf32>
    %cst_221 = arith.constant 5.000000e-01 : f32
    %706 = vector.broadcast %cst_221 : f32 to vector<2x32xf32>
    %707 = arith.mulf %706, %705 : vector<2x32xf32>
    %cst_222 = arith.constant 5.000000e-01 : f32
    %708 = vector.broadcast %cst_222 : f32 to vector<2x32xf32>
    %709 = arith.addf %707, %708 : vector<2x32xf32>
    %710 = vector.extract_strided_slice %693 {offsets = [0, 64], sizes = [2, 32], strides = [1, 1]} : vector<2x128xf32> to vector<2x32xf32>
    %711 = math.tanh %710 : vector<2x32xf32>
    %712 = vector.extract_strided_slice %693 {offsets = [0, 96], sizes = [2, 32], strides = [1, 1]} : vector<2x128xf32> to vector<2x32xf32>
    %cst_223 = arith.constant 5.000000e-01 : f32
    %713 = vector.broadcast %cst_223 : f32 to vector<2x32xf32>
    %714 = arith.mulf %713, %712 : vector<2x32xf32>
    %715 = math.tanh %714 : vector<2x32xf32>
    %cst_224 = arith.constant 5.000000e-01 : f32
    %716 = vector.broadcast %cst_224 : f32 to vector<2x32xf32>
    %717 = arith.mulf %716, %715 : vector<2x32xf32>
    %cst_225 = arith.constant 5.000000e-01 : f32
    %718 = vector.broadcast %cst_225 : f32 to vector<2x32xf32>
    %719 = arith.addf %717, %718 : vector<2x32xf32>
    %720 = arith.mulf %709, %686 : vector<2x32xf32>
    %721 = arith.mulf %701, %711 : vector<2x32xf32>
    %722 = arith.addf %720, %721 : vector<2x32xf32>
    %723 = math.tanh %722 : vector<2x32xf32>
    %724 = arith.mulf %719, %723 : vector<2x32xf32>
    %725 = vector.extract_strided_slice %434 {offsets = [7, 0, 128], sizes = [1, 2, 128], strides = [1, 1, 1]} : vector<8x2x256xf32> to vector<1x2x128xf32>
    %726 = vector.shape_cast %725 : vector<1x2x128xf32> to vector<2x128xf32>
    %cst_226 = arith.constant 0.000000e+00 : f32
    %727 = vector.broadcast %cst_226 : f32 to vector<2x32xf32>
    %728 = vector.extract_strided_slice %726 {offsets = [0, 0], sizes = [2, 32], strides = [1, 1]} : vector<2x128xf32> to vector<2x32xf32>
    %cst_227 = arith.constant 5.000000e-01 : f32
    %729 = vector.broadcast %cst_227 : f32 to vector<2x32xf32>
    %730 = arith.mulf %729, %728 : vector<2x32xf32>
    %731 = math.tanh %730 : vector<2x32xf32>
    %cst_228 = arith.constant 5.000000e-01 : f32
    %732 = vector.broadcast %cst_228 : f32 to vector<2x32xf32>
    %733 = arith.mulf %732, %731 : vector<2x32xf32>
    %cst_229 = arith.constant 5.000000e-01 : f32
    %734 = vector.broadcast %cst_229 : f32 to vector<2x32xf32>
    %735 = arith.addf %733, %734 : vector<2x32xf32>
    %736 = vector.extract_strided_slice %726 {offsets = [0, 32], sizes = [2, 32], strides = [1, 1]} : vector<2x128xf32> to vector<2x32xf32>
    %cst_230 = arith.constant 5.000000e-01 : f32
    %737 = vector.broadcast %cst_230 : f32 to vector<2x32xf32>
    %738 = arith.mulf %737, %736 : vector<2x32xf32>
    %739 = math.tanh %738 : vector<2x32xf32>
    %cst_231 = arith.constant 5.000000e-01 : f32
    %740 = vector.broadcast %cst_231 : f32 to vector<2x32xf32>
    %741 = arith.mulf %740, %739 : vector<2x32xf32>
    %cst_232 = arith.constant 5.000000e-01 : f32
    %742 = vector.broadcast %cst_232 : f32 to vector<2x32xf32>
    %743 = arith.addf %741, %742 : vector<2x32xf32>
    %744 = vector.extract_strided_slice %726 {offsets = [0, 64], sizes = [2, 32], strides = [1, 1]} : vector<2x128xf32> to vector<2x32xf32>
    %745 = math.tanh %744 : vector<2x32xf32>
    %746 = vector.extract_strided_slice %726 {offsets = [0, 96], sizes = [2, 32], strides = [1, 1]} : vector<2x128xf32> to vector<2x32xf32>
    %cst_233 = arith.constant 5.000000e-01 : f32
    %747 = vector.broadcast %cst_233 : f32 to vector<2x32xf32>
    %748 = arith.mulf %747, %746 : vector<2x32xf32>
    %749 = math.tanh %748 : vector<2x32xf32>
    %cst_234 = arith.constant 5.000000e-01 : f32
    %750 = vector.broadcast %cst_234 : f32 to vector<2x32xf32>
    %751 = arith.mulf %750, %749 : vector<2x32xf32>
    %cst_235 = arith.constant 5.000000e-01 : f32
    %752 = vector.broadcast %cst_235 : f32 to vector<2x32xf32>
    %753 = arith.addf %751, %752 : vector<2x32xf32>
    %754 = arith.mulf %743, %727 : vector<2x32xf32>
    %755 = arith.mulf %735, %745 : vector<2x32xf32>
    %756 = arith.addf %754, %755 : vector<2x32xf32>
    %757 = math.tanh %756 : vector<2x32xf32>
    %758 = arith.mulf %753, %757 : vector<2x32xf32>
    %759 = arith.truncf %724 : vector<2x32xf32> to vector<2x32xbf16>
    %cst_236 = arith.constant dense<0.000000e+00> : vector<2x128xf32>
    %760 = tpu.matmul %759, %4, %cst_236 {dimension_numbers = #tpu.dot_dimension_numbers<[1], [0], [0], [1], [0, 0, 1, 1], [], []>} : vector<2x32xbf16>, vector<32x128xbf16>, vector<2x128xf32> -> vector<2x128xf32>
    %761 = arith.truncf %758 : vector<2x32xf32> to vector<2x32xbf16>
    %cst_237 = arith.constant dense<0.000000e+00> : vector<2x128xf32>
    %762 = tpu.matmul %761, %5, %cst_237 {dimension_numbers = #tpu.dot_dimension_numbers<[1], [0], [0], [1], [0, 0, 1, 1], [], []>} : vector<2x32xbf16>, vector<32x128xbf16>, vector<2x128xf32> -> vector<2x128xf32>
    %763 = arith.addf %760, %762 : vector<2x128xf32>
    %764 = vector.broadcast %8 : vector<1x128xf32> to vector<2x128xf32>
    %765 = arith.addf %763, %764 : vector<2x128xf32>
    %c0_238 = arith.constant 0 : index
    %c0_239 = arith.constant 0 : index
    %766 = vector.load %arg4[%c0_238, %c0_239] : memref<2x128xf32, #tpu.memory_space<vmem>>, vector<2x128xf32>
    tpu.vector_store %arg4[%c0_238, %c0_239], %765 {strides = array<i32>} : memref<2x128xf32, #tpu.memory_space<vmem>>, vector<2x128xf32>,
    return
  }
  func.func @transform_0(%arg0: i32) -> (i32, i32) {
    %c0_i32 = arith.constant 0 : i32
    %c0_i32_0 = arith.constant 0 : i32
    return %arg0, %c0_i32 : i32, i32
  }
  func.func @transform_1(%arg0: i32) -> (i32, i32) {
    %c0_i32 = arith.constant 0 : i32
    %c0_i32_0 = arith.constant 0 : i32
    %c0_i32_1 = arith.constant 0 : i32
    return %c0_i32, %c0_i32_0 : i32, i32
  }
  func.func @transform_2(%arg0: i32) -> (i32, i32) {
    %c0_i32 = arith.constant 0 : i32
    %c0_i32_0 = arith.constant 0 : i32
    %c0_i32_1 = arith.constant 0 : i32
    return %c0_i32, %c0_i32_0 : i32, i32
  }
  func.func @transform_3(%arg0: i32) -> (i32, i32) {
    %c0_i32 = arith.constant 0 : i32
    %c0_i32_0 = arith.constant 0 : i32
    return %arg0, %c0_i32 : i32, i32
  }
}

</mosaic_0001>

<llo_original>
// kernel: tpu_custom_call.1
$region0: #{tpu_custom_call.1}
  #allocation0 [shape = 'u32[]', space=smem, size = 0x4, offset = 0x4, fixed_abs, tag = 'smem constant byte address 0x4 - core index']
  #allocation1 [shape = 'u32[144,128]{1,0:T(1,128)}', space=vmem, size = 0x12000, scoped, tag = 'internal scratch']
  #allocation2 [shape = 'f32[8,2,64]{2,1,0:T(2,128)}', space=vmem, size = 0x2000, scoped, tag = 'scratch operand']
  %s0 = inlined_call_operand.vmem [shape: f32[16,4], index: 0, kind: input, shape index: {}]
  %s1 = inlined_call_operand.hbm [shape: bf16[228,256], index: 1, kind: input, shape index: {}]
  %s2 = inlined_call_operand.vmem [shape: f32[3,256], index: 2, kind: input, shape index: {}]
  %s3 = inlined_call_operand.hbm [shape: f32[2,128], index: 3, kind: output, shape index: {}]
  %s4 = sld [smem:[#allocation0]]
  $region26: #{tpu_custom_call.1} parent=0
    _
  %s6 = ssub.s32 1, %s4
  %s7 = scalar_select 0, %s6, %s4
  $region1: #{tpu_custom_call.1} parent=0
    #allocation3 [shape = 'u8[118784]{0}', space=vmem, size = 0x1d000, scoped, tag = 'input window, operand 1, single buffered']
    #allocation4 [shape = 's32[1]{0}', space=sflag, size = 0x4, scoped, tag = 'scoped memory for tpu_custom_call.1']
    #allocation5 [shape = 's32[1]{0}', space=sflag, size = 0x4, scoped, tag = 'scoped memory for tpu_custom_call.1']
    #allocation6 [shape = 'u8[1024]{0}', space=vmem, size = 0x400, scoped, tag = 'output window, operand 0, single buffered']
    %8 = vsyncpa [#allocation4], 0
    %9 = vsyncpa [#allocation5], 0
    // Predicated region
    $region2: #{tpu_custom_call.1} parent=1 // pred_check
      _
    $region3: #{tpu_custom_call.1} parent=1 // pred_check_branch
      %11 = sbr.rel (0) target = $region5
    $region4: #{tpu_custom_call.1} parent=1 // pred_region
      _
    $region5: #{tpu_custom_call.1} parent=1 // pred_fallthru
      _
    // Predicated region
    $region6: #{tpu_custom_call.1} parent=1 // pred_check
      _
    $region7: #{tpu_custom_call.1} parent=1 // pred_check_branch
      %13 = sbr.rel (0) target = $region9
    $region8: #{tpu_custom_call.1} parent=1 // pred_region
      %s15 = ssub.s32 3712, 3712
      %16 = vsyncadd [#allocation4], %s15
      %s17 = sshll.u32 [#allocation3], 4
      %s18 = int_to_ptr.vmem [resolvable:$true] %s17
      %23 = dma.hbm_to_vmem [thread:$0]  %s1, 3712, %s18, [#allocation4], 128, 128, 8
    $region9: #{tpu_custom_call.1} parent=1 // pred_fallthru
      _
    // Predicated region
    $region10: #{tpu_custom_call.1} parent=1 // pred_check
      _
    $region11: #{tpu_custom_call.1} parent=1 // pred_check_branch
      %25 = sbr.rel (0) target = $region13
    $region12: #{tpu_custom_call.1} parent=1 // pred_region
      _
    $region13: #{tpu_custom_call.1} parent=1 // pred_fallthru
      _
    // Predicated region
    $region14: #{tpu_custom_call.1} parent=1 // pred_check
      _
    $region15: #{tpu_custom_call.1} parent=1 // pred_check_branch
      %27 = sbr.rel (0) target = $region17
    $region16: #{tpu_custom_call.1} parent=1 // pred_region
      %28 = dma.done [#allocation4], 3712
    $region17: #{tpu_custom_call.1} parent=1 // pred_fallthru
      _
    %v30 = vld [vmem:[#allocation3] sm:$0x33]
    %v31 = vld [vmem:[#allocation3] sm:$0xcc]
    %v32 = vld [vmem:[#allocation3 + $0x8] sm:$0xff]
    %v33 = vld [vmem:[#allocation3 + $0x10] sm:$0xff]
    %v34 = vld [vmem:[#allocation3 + $0x18] sm:$0xff]
    %v35 = vld [vmem:[#allocation3 + $0x20] sm:$0xff]
    %v36 = vld [vmem:[#allocation3 + $0x28] sm:$0xff]
    %v37 = vld [vmem:[#allocation3 + $0x30] sm:$0xff]
    %v38 = vld [vmem:[#allocation3 + $0x38] sm:$0xff]
    %v39 = vld [vmem:[#allocation3 + $0x40] sm:$0x33]
    %v40 = vld [vmem:[#allocation3 + $0x40] sm:$0xcc]
    %v41 = vld [vmem:[#allocation3 + $0x48] sm:$0xff]
    %v42 = vld [vmem:[#allocation3 + $0x50] sm:$0xff]
    %v43 = vld [vmem:[#allocation3 + $0x58] sm:$0xff]
    %v44 = vld [vmem:[#allocation3 + $0x60] sm:$0xff]
    %v45 = vld [vmem:[#allocation3 + $0x68] sm:$0xff]
    %v46 = vld [vmem:[#allocation3 + $0x70] sm:$0xff]
    %v47 = vld [vmem:[#allocation3 + $0x78] sm:$0xff]
    %v48 = vld [vmem:[#allocation3 + $0x80] sm:$0x33]
    %v49 = vld [vmem:[#allocation3 + $0x80] sm:$0xc]
    %v50 = vld [vmem:[#allocation3 + $0x88] sm:$0xf]
    %v51 = vld [vmem:[#allocation3 + $0x90] sm:$0xf]
    %v52 = vld [vmem:[#allocation3 + $0x98] sm:$0xf]
    %v53 = vld [vmem:[#allocation3 + $0xa0] sm:$0x3]
    %v54 = vld [vmem:[#allocation3 + $0xa0] sm:$0xc]
    %v55 = vld [vmem:[#allocation3 + $0xa8] sm:$0xf]
    %v56 = vld [vmem:[#allocation3 + $0xb0] sm:$0xf]
    %v57 = vld [vmem:[#allocation3 + $0xb8] sm:$0xf]
    %v58 = vld [vmem:[#allocation3 + $0xc0] sm:$0x3]
    %v59 = vld [vmem:[#allocation3 + $0xc0] sm:$0xc]
    %v60 = vld [vmem:[#allocation3 + $0xc8] sm:$0xf]
    %v61 = vld [vmem:[#allocation3 + $0xd0] sm:$0xf]
    %v62 = vld [vmem:[#allocation3 + $0xd8] sm:$0xf]
    %v63 = vld [vmem:[#allocation3 + $0xe0] sm:$0x3]
    %v64 = vld [vmem:[%s2] ss:$4 sm:$0x3]
    %s65 = scalar_lea.vmem %s2, 1
    %v66 = vld [vmem:[%s65] ss:$4 sm:$0x3]
    %v67 = vld [vmem:[%s2 + $0x2] sm:$0x1]
    %v68 = vld [vmem:[%s0] sm:$0xff]
    %v69 = vld [vmem:[%s0 + $0x8] sm:$0xff]
    %v70 = vpack.c.bf16 %v69, %v68
    %v72 = vlaneseq
    %v73 = vshrl.u32 %v72, 7
    %v74 = vsub.s32 0, %v73
    %v75 = vrot.slane %v64, %v74
    %v76 = vlaneseq
    %v77 = vshrl.u32 %v76, 7
    %v78 = vsub.s32 1, %v77
    %v79 = vrot.slane %v64, %v78
    %v83 = vunpack.c.l.b16 %v30
    %v84 = vunpack.c.h.b16 %v30
    %v85 = vpack.c.b16 %v83, %v83
    %v86 = vpack.c.b16 %v84, %v84
    %vm87 = vcmask 31744
    %v89 = vsel %vm87, %v70, 0
    %vm91 = vcmask 1041408
    %v93 = vsel %vm91, %v85, 0
    %v96 = vsel %vm91, %v86, 0
    %98 = vmatprep.subr.bf16.mxu0 %v96
    %99 = vmatpush1.bf16.msra.mxu0 %v93
    %100 = vmatprep.subr.bf16.mxu0 0
    %101 = vmatpush1.bf16.msra.mxu0 0
    %102 = vmatprep.subr.bf16.mxu0 0
    %103 = vmatpush1.bf16.msra.mxu0 0
    %104 = vmatprep.subr.bf16.mxu0 0
    %105 = vmatpush1.bf16.msra.mxu0 0
    %106 = vmatprep.subr.bf16.mxu0 0
    %107 = vmatpush1.bf16.msra.mxu0 0
    %108 = vmatprep.subr.bf16.mxu0 0
    %109 = vmatpush1.bf16.msra.mxu0 0
    %110 = vmatprep.subr.bf16.mxu0 0
    %111 = vmatpush1.bf16.msra.mxu0 0
    %112 = vmatprep.subr.bf16.mxu0 0
    %113 = vmatpush1.bf16.msra.mxu0 0
    %114 = vmatprep.subr.bf16.mxu0 0
    %115 = vmatpush1.bf16.msra.mxu0 0
    %116 = vmatprep.subr.bf16.mxu0 0
    %117 = vmatpush1.bf16.msra.mxu0 0
    %118 = vmatprep.subr.bf16.mxu0 0
    %119 = vmatpush1.bf16.msra.mxu0 0
    %120 = vmatprep.subr.bf16.mxu0 0
    %121 = vmatpush1.bf16.msra.mxu0 0
    %122 = vmatprep.subr.bf16.mxu0 0
    %123 = vmatpush1.bf16.msra.mxu0 0
    %124 = vmatprep.subr.bf16.mxu0 0
    %125 = vmatpush1.bf16.msra.mxu0 0
    %126 = vmatprep.subr.bf16.mxu0 0
    %127 = vmatpush1.bf16.msra.mxu0 0
    %128 = vmatprep.subr.bf16.mxu0 0
    %129 = vmatpush1.bf16.msra.mxu0 0
    %130 = vmatprep.mubr.bf16.mxu0 0
    %131 = vmatmul.mubr.bf16.gmra.mrb[0].mxu0 %v89
    %v132 = vpop.f32.mrb[0].mxu0
    %v133 = vadd.f32 %v75, %v132
    %v134 = vpop.f32.mrb[0].mxu0
    %v135 = vadd.f32 %v79, %v134
    %v136 = vpop.f32.mrb[0].mxu0
    %v137 = vadd.f32 %v75, %v136
    %v138 = vpop.f32.mrb[0].mxu0
    %v139 = vadd.f32 %v79, %v138
    %140 = vdwg.mxu0
    %v141 = vlaneseq
    %v142 = vand.u32 %v141, 127
    %v143 = vadd.s32 %v142, 128
    %vm144 = vcmp.lt.s32.totalorder %v142, 0
    %v145 = vsub.s32 0, %v142
    %v146 = vsel %vm144, %v145, %v142
    %v147 = vshrl.u32 %v146, 6
    %v148 = vand.u32 %v146, 63
    %v149 = vsub.s32 0, %v148
    %v150 = vsel %vm144, %v149, %v148
    %vm151 = vcmp.lt.s32.totalorder %v143, 0
    %v152 = vsub.s32 0, %v143
    %v153 = vsel %vm151, %v152, %v143
    %v154 = vshrl.u32 %v153, 6
    %v155 = vand.u32 %v153, 63
    %v156 = vsub.s32 0, %v155
    %v157 = vsel %vm151, %v156, %v155
    %vm158 = vcmp.ne.s32.totalorder %v150, 0
    %vm159 = vcmp.ne.s32.totalorder %v157, 0
    %vm160 = vcmp.lt.s32.totalorder %v150, 0
    %vm161 = vcmp.lt.s32.totalorder %v157, 0
    %vm162 = vmand %vm160, %vm158
    %vm163 = vmand %vm161, %vm159
    %v164 = vadd.s32 %v150, 64
    %v165 = vadd.s32 %v157, 64
    %v166 = vsel %vm162, %v164, %v150
    %v167 = vsel %vm163, %v165, %v157
    %vm168 = vcmp.lt.s32.totalorder %v166, 32
    %vm169 = vcmp.lt.s32.totalorder %v167, 32
    %v170 = vsel %vm168, 1, 0
    %v171 = vsel %vm169, 1, 0
    %vm172 = vcmp.eq.s32.totalorder %v170, 1
    %vm173 = vcmp.eq.s32.totalorder %v171, 1
    %v178 = vrot.slane %v137, 7
    %vm179 = vcmask 1041409
    %v180 = vsel %vm179, %v178, %v133
    %v181 = vrot.slane %v139, 7
    %v182 = vsel %vm179, %v181, %v135
    %v185 = vrot.slane %v133, 7
    %v186 = vrot.slane %v137, 6
    %v187 = vsel %vm179, %v186, %v185
    %v188 = vrot.slane %v135, 7
    %v189 = vrot.slane %v139, 6
    %v190 = vsel %vm179, %v189, %v188
    %v193 = vsel %vm172, %v180, %v187
    %v194 = vsel %vm173, %v182, %v190
    %v204 = vunpack.c.l.b16 %v31
    %v205 = vunpack.c.h.b16 %v31
    %v206 = vunpack.c.l.b16 %v32
    %v207 = vunpack.c.h.b16 %v32
    %v208 = vunpack.c.l.b16 %v33
    %v209 = vunpack.c.h.b16 %v33
    %v210 = vunpack.c.l.b16 %v34
    %v211 = vunpack.c.h.b16 %v34
    %v212 = vunpack.c.l.b16 %v35
    %v213 = vunpack.c.h.b16 %v35
    %v214 = vunpack.c.l.b16 %v36
    %v215 = vunpack.c.h.b16 %v36
    %v216 = vunpack.c.l.b16 %v37
    %v217 = vunpack.c.h.b16 %v37
    %v218 = vunpack.c.l.b16 %v38
    %v219 = vunpack.c.h.b16 %v38
    %v220 = vunpack.c.l.b16 %v39
    %v221 = vunpack.c.h.b16 %v39
    %v222 = vpack.c.b16 %v206, %v204
    %v223 = vpack.c.b16 %v207, %v205
    %v224 = vpack.c.b16 %v210, %v208
    %v225 = vpack.c.b16 %v211, %v209
    %v226 = vpack.c.b16 %v214, %v212
    %v227 = vpack.c.b16 %v215, %v213
    %v228 = vpack.c.b16 %v218, %v216
    %v229 = vpack.c.b16 %v219, %v217
    %v230 = vpack.c.b16 %v220, %v220
    %v231 = vpack.c.b16 %v221, %v221
    %vm232 = vcmask 1045504
    %v233 = vrot.slane %v222, 2
    %v234 = vrot.slane %v224, 2
    %v235 = vsel %vm232, %v233, %v234
    %v236 = vrot.slane %v223, 2
    %v237 = vrot.slane %v225, 2
    %v238 = vsel %vm232, %v236, %v237
    %v239 = vrot.slane %v226, 2
    %v240 = vsel %vm232, %v234, %v239
    %v241 = vrot.slane %v227, 2
    %v242 = vsel %vm232, %v237, %v241
    %v243 = vrot.slane %v228, 2
    %v244 = vsel %vm232, %v239, %v243
    %v245 = vrot.slane %v229, 2
    %v246 = vsel %vm232, %v241, %v245
    %v247 = vrot.slane %v230, 2
    %v248 = vsel %vm232, %v243, %v247
    %v249 = vrot.slane %v231, 2
    %v250 = vsel %vm232, %v245, %v249
    %vm259 = vcmask 523264
    %v261 = vsel %vm259, 0, 0
    %263 = vmatprep.subr.bf16.mxu0 %v238
    %264 = vmatpush1.bf16.msra.mxu0 %v235
    %265 = vmatprep.subr.bf16.mxu0 %v242
    %266 = vmatpush1.bf16.msra.mxu0 %v240
    %267 = vmatprep.subr.bf16.mxu0 %v246
    %268 = vmatpush1.bf16.msra.mxu0 %v244
    %269 = vmatprep.subr.bf16.mxu0 %v250
    %270 = vmatpush1.bf16.msra.mxu0 %v248
    %271 = vmatprep.subr.bf16.mxu0 0
    %272 = vmatpush1.bf16.msra.mxu0 0
    %273 = vmatprep.subr.bf16.mxu0 0
    %274 = vmatpush1.bf16.msra.mxu0 0
    %275 = vmatprep.subr.bf16.mxu0 0
    %276 = vmatpush1.bf16.msra.mxu0 0
    %277 = vmatprep.subr.bf16.mxu0 0
    %278 = vmatpush1.bf16.msra.mxu0 0
    %279 = vmatprep.subr.bf16.mxu0 0
    %280 = vmatpush1.bf16.msra.mxu0 0
    %281 = vmatprep.subr.bf16.mxu0 0
    %282 = vmatpush1.bf16.msra.mxu0 0
    %283 = vmatprep.subr.bf16.mxu0 0
    %284 = vmatpush1.bf16.msra.mxu0 0
    %285 = vmatprep.subr.bf16.mxu0 0
    %286 = vmatpush1.bf16.msra.mxu0 0
    %287 = vmatprep.subr.bf16.mxu0 0
    %288 = vmatpush1.bf16.msra.mxu0 0
    %289 = vmatprep.subr.bf16.mxu0 0
    %290 = vmatpush1.bf16.msra.mxu0 0
    %291 = vmatprep.subr.bf16.mxu0 0
    %292 = vmatpush1.bf16.msra.mxu0 0
    %293 = vmatprep.subr.bf16.mxu0 0
    %294 = vmatpush1.bf16.msra.mxu0 0
    %295 = vmatprep.mubr.bf16.mxu0 0
    %296 = vmatmul.mubr.bf16.gmra.mrb[0].mxu0 %v261
    %v297 = vpop.f32.mrb[0].mxu0
    %v298 = vadd.f32 0.0, %v297
    %v299 = vpop.f32.mrb[0].mxu0
    %v300 = vadd.f32 0.0, %v299
    %v301 = vpop.f32.mrb[0].mxu0
    %v302 = vpop.f32.mrb[0].mxu0
    %303 = vdwg.mxu0
    %v304 = vadd.f32 %v193, %v298
    %v305 = vadd.f32 %v194, %v300
    %v306 = vmul.f32 %v304, 0.5
    %v307 = vtanh.pop %v306
    %v308 = vmul.f32 %v307, 0.5
    %v309 = vadd.f32 %v308, 0.5
    %v310 = vtanh.pop %v305
    %v311 = vmul.f32 %v305, 0.5
    %v312 = vtanh.pop %v311
    %v313 = vmul.f32 %v312, 0.5
    %v314 = vadd.f32 %v313, 0.5
    %v315 = vmul.f32 %v309, 0.0
    %v316 = vmul.f32 %v309, %v310
    %318 = vrot.lane.b32.xlu0 %v316, 64
    %v319 = vpop.permute.xlu0 %318
    %v321 = vadd.f32 %v315, %v319
    %v322 = vtanh.pop %v321
    %v323 = vmul.f32 %v314, %v322
    %325 = vrot.lane.b32.xlu0 %v323, 64
    %v326 = vpop.permute.xlu0 %325
    %vm328 = vcmask 254976
    %329 = vst.msk [vmem:[#allocation2] sm:$0x3] %vm328, %v326
    %s330 = scalar_lea.vmem [#allocation2], 14
    %vm331 = vcmask 517376
    %332 = vst.msk [vmem:[%s330] sm:$0x3] %vm331, %v326
    %v333 = vrot.slane %v133, 1
    %v334 = vsel %vm179, %v137, %v333
    %v335 = vrot.slane %v135, 1
    %v336 = vsel %vm179, %v139, %v335
    %v339 = vrot.slane %v133, 6
    %v340 = vrot.slane %v137, 5
    %v341 = vsel %vm179, %v340, %v339
    %v342 = vrot.slane %v135, 6
    %v343 = vrot.slane %v139, 5
    %v344 = vsel %vm179, %v343, %v342
    %v347 = vsel %vm172, %v334, %v341
    %v348 = vsel %vm173, %v336, %v344
    %v349 = vpack.c.bf16 %v323, %v323
    %351 = vrot.lane.b32.xlu0 %v349, 64
    %v352 = vpop.permute.xlu0 %351
    %v354 = vsel %vm259, %v352, 0
    %356 = vmatprep.subr.bf16.mxu0 %v238
    %357 = vmatpush1.bf16.msra.mxu0 %v235
    %358 = vmatprep.subr.bf16.mxu0 %v242
    %359 = vmatpush1.bf16.msra.mxu0 %v240
    %360 = vmatprep.subr.bf16.mxu0 %v246
    %361 = vmatpush1.bf16.msra.mxu0 %v244
    %362 = vmatprep.subr.bf16.mxu0 %v250
    %363 = vmatpush1.bf16.msra.mxu0 %v248
    %364 = vmatprep.subr.bf16.mxu0 0
    %365 = vmatpush1.bf16.msra.mxu0 0
    %366 = vmatprep.subr.bf16.mxu0 0
    %367 = vmatpush1.bf16.msra.mxu0 0
    %368 = vmatprep.subr.bf16.mxu0 0
    %369 = vmatpush1.bf16.msra.mxu0 0
    %370 = vmatprep.subr.bf16.mxu0 0
    %371 = vmatpush1.bf16.msra.mxu0 0
    %372 = vmatprep.subr.bf16.mxu0 0
    %373 = vmatpush1.bf16.msra.mxu0 0
    %374 = vmatprep.subr.bf16.mxu0 0
    %375 = vmatpush1.bf16.msra.mxu0 0
    %376 = vmatprep.subr.bf16.mxu0 0
    %377 = vmatpush1.bf16.msra.mxu0 0
    %378 = vmatprep.subr.bf16.mxu0 0
    %379 = vmatpush1.bf16.msra.mxu0 0
    %380 = vmatprep.subr.bf16.mxu0 0
    %381 = vmatpush1.bf16.msra.mxu0 0
    %382 = vmatprep.subr.bf16.mxu0 0
    %383 = vmatpush1.bf16.msra.mxu0 0
    %384 = vmatprep.subr.bf16.mxu0 0
    %385 = vmatpush1.bf16.msra.mxu0 0
    %386 = vmatprep.subr.bf16.mxu0 0
    %387 = vmatpush1.bf16.msra.mxu0 0
    %388 = vmatprep.mubr.bf16.mxu0 0
    %389 = vmatmul.mubr.bf16.gmra.mrb[0].mxu0 %v354
    %v390 = vpop.f32.mrb[0].mxu0
    %v391 = vadd.f32 0.0, %v390
    %v392 = vpop.f32.mrb[0].mxu0
    %v393 = vadd.f32 0.0, %v392
    %v394 = vpop.f32.mrb[0].mxu0
    %v395 = vpop.f32.mrb[0].mxu0
    %396 = vdwg.mxu0
    %v397 = vadd.f32 %v347, %v391
    %v398 = vadd.f32 %v348, %v393
    %v399 = vmul.f32 %v397, 0.5
    %v400 = vtanh.pop %v399
    %v401 = vmul.f32 %v400, 0.5
    %v402 = vadd.f32 %v401, 0.5
    %v403 = vtanh.pop %v398
    %v404 = vmul.f32 %v398, 0.5
    %v405 = vtanh.pop %v404
    %v406 = vmul.f32 %v405, 0.5
    %v407 = vadd.f32 %v406, 0.5
    %v408 = vmul.f32 %v402, %v321
    %v409 = vmul.f32 %v402, %v403
    %411 = vrot.lane.b32.xlu0 %v409, 64
    %v412 = vpop.permute.xlu0 %411
    %v414 = vadd.f32 %v408, %v412
    %v415 = vtanh.pop %v414
    %v416 = vmul.f32 %v407, %v415
    %418 = vrot.lane.b32.xlu0 %v416, 64
    %v419 = vpop.permute.xlu0 %418
    %s421 = scalar_lea.vmem [#allocation2], 2
    %422 = vst.msk [vmem:[%s421] sm:$0x3] %vm328, %v419
    %s423 = scalar_lea.vmem [#allocation2], 12
    %424 = vst.msk [vmem:[%s423] sm:$0x3] %vm331, %v419
    %v425 = vrot.slane %v133, 2
    %v426 = vrot.slane %v137, 1
    %v427 = vsel %vm179, %v426, %v425
    %v428 = vrot.slane %v135, 2
    %v429 = vrot.slane %v139, 1
    %v430 = vsel %vm179, %v429, %v428
    %v433 = vrot.slane %v133, 5
    %v434 = vrot.slane %v137, 4
    %v435 = vsel %vm179, %v434, %v433
    %v436 = vrot.slane %v135, 5
    %v437 = vrot.slane %v139, 4
    %v438 = vsel %vm179, %v437, %v436
    %v441 = vsel %vm172, %v427, %v435
    %v442 = vsel %vm173, %v430, %v438
    %v443 = vpack.c.bf16 %v416, %v416
    %445 = vrot.lane.b32.xlu0 %v443, 64
    %v446 = vpop.permute.xlu0 %445
    %v448 = vsel %vm259, %v446, 0
    %450 = vmatprep.subr.bf16.mxu0 %v238
    %451 = vmatpush1.bf16.msra.mxu0 %v235
    %452 = vmatprep.subr.bf16.mxu0 %v242
    %453 = vmatpush1.bf16.msra.mxu0 %v240
    %454 = vmatprep.subr.bf16.mxu0 %v246
    %455 = vmatpush1.bf16.msra.mxu0 %v244
    %456 = vmatprep.subr.bf16.mxu0 %v250
    %457 = vmatpush1.bf16.msra.mxu0 %v248
    %458 = vmatprep.subr.bf16.mxu0 0
    %459 = vmatpush1.bf16.msra.mxu0 0
    %460 = vmatprep.subr.bf16.mxu0 0
    %461 = vmatpush1.bf16.msra.mxu0 0
    %462 = vmatprep.subr.bf16.mxu0 0
    %463 = vmatpush1.bf16.msra.mxu0 0
    %464 = vmatprep.subr.bf16.mxu0 0
    %465 = vmatpush1.bf16.msra.mxu0 0
    %466 = vmatprep.subr.bf16.mxu0 0
    %467 = vmatpush1.bf16.msra.mxu0 0
    %468 = vmatprep.subr.bf16.mxu0 0
    %469 = vmatpush1.bf16.msra.mxu0 0
    %470 = vmatprep.subr.bf16.mxu0 0
    %471 = vmatpush1.bf16.msra.mxu0 0
    %472 = vmatprep.subr.bf16.mxu0 0
    %473 = vmatpush1.bf16.msra.mxu0 0
    %474 = vmatprep.subr.bf16.mxu0 0
    %475 = vmatpush1.bf16.msra.mxu0 0
    %476 = vmatprep.subr.bf16.mxu0 0
    %477 = vmatpush1.bf16.msra.mxu0 0
    %478 = vmatprep.subr.bf16.mxu0 0
    %479 = vmatpush1.bf16.msra.mxu0 0
    %480 = vmatprep.subr.bf16.mxu0 0
    %481 = vmatpush1.bf16.msra.mxu0 0
    %482 = vmatprep.mubr.bf16.mxu0 0
    %483 = vmatmul.mubr.bf16.gmra.mrb[0].mxu0 %v448
    %v484 = vpop.f32.mrb[0].mxu0
    %v485 = vadd.f32 0.0, %v484
    %v486 = vpop.f32.mrb[0].mxu0
    %v487 = vadd.f32 0.0, %v486
    %v488 = vpop.f32.mrb[0].mxu0
    %v489 = vpop.f32.mrb[0].mxu0
    %490 = vdwg.mxu0
    %v491 = vadd.f32 %v441, %v485
    %v492 = vadd.f32 %v442, %v487
    %v493 = vmul.f32 %v491, 0.5
    %v494 = vtanh.pop %v493
    %v495 = vmul.f32 %v494, 0.5
    %v496 = vadd.f32 %v495, 0.5
    %v497 = vtanh.pop %v492
    %v498 = vmul.f32 %v492, 0.5
    %v499 = vtanh.pop %v498
    %v500 = vmul.f32 %v499, 0.5
    %v501 = vadd.f32 %v500, 0.5
    %v502 = vmul.f32 %v496, %v414
    %v503 = vmul.f32 %v496, %v497
    %505 = vrot.lane.b32.xlu0 %v503, 64
    %v506 = vpop.permute.xlu0 %505
    %v508 = vadd.f32 %v502, %v506
    %v509 = vtanh.pop %v508
    %v510 = vmul.f32 %v501, %v509
    %512 = vrot.lane.b32.xlu0 %v510, 64
    %v513 = vpop.permute.xlu0 %512
    %s515 = scalar_lea.vmem [#allocation2], 4
    %516 = vst.msk [vmem:[%s515] sm:$0x3] %vm328, %v513
    %s517 = scalar_lea.vmem [#allocation2], 10
    %518 = vst.msk [vmem:[%s517] sm:$0x3] %vm331, %v513
    %v519 = vrot.slane %v133, 3
    %v520 = vrot.slane %v137, 2
    %v521 = vsel %vm179, %v520, %v519
    %v522 = vrot.slane %v135, 3
    %v523 = vrot.slane %v139, 2
    %v524 = vsel %vm179, %v523, %v522
    %v527 = vrot.slane %v133, 4
    %v528 = vrot.slane %v137, 3
    %v529 = vsel %vm179, %v528, %v527
    %v530 = vrot.slane %v135, 4
    %v531 = vrot.slane %v139, 3
    %v532 = vsel %vm179, %v531, %v530
    %v535 = vsel %vm172, %v521, %v529
    %v536 = vsel %vm173, %v524, %v532
    %v537 = vpack.c.bf16 %v510, %v510
    %539 = vrot.lane.b32.xlu0 %v537, 64
    %v540 = vpop.permute.xlu0 %539
    %v542 = vsel %vm259, %v540, 0
    %544 = vmatprep.subr.bf16.mxu0 %v238
    %545 = vmatpush1.bf16.msra.mxu0 %v235
    %546 = vmatprep.subr.bf16.mxu0 %v242
    %547 = vmatpush1.bf16.msra.mxu0 %v240
    %548 = vmatprep.subr.bf16.mxu0 %v246
    %549 = vmatpush1.bf16.msra.mxu0 %v244
    %550 = vmatprep.subr.bf16.mxu0 %v250
    %551 = vmatpush1.bf16.msra.mxu0 %v248
    %552 = vmatprep.subr.bf16.mxu0 0
    %553 = vmatpush1.bf16.msra.mxu0 0
    %554 = vmatprep.subr.bf16.mxu0 0
    %555 = vmatpush1.bf16.msra.mxu0 0
    %556 = vmatprep.subr.bf16.mxu0 0
    %557 = vmatpush1.bf16.msra.mxu0 0
    %558 = vmatprep.subr.bf16.mxu0 0
    %559 = vmatpush1.bf16.msra.mxu0 0
    %560 = vmatprep.subr.bf16.mxu0 0
    %561 = vmatpush1.bf16.msra.mxu0 0
    %562 = vmatprep.subr.bf16.mxu0 0
    %563 = vmatpush1.bf16.msra.mxu0 0
    %564 = vmatprep.subr.bf16.mxu0 0
    %565 = vmatpush1.bf16.msra.mxu0 0
    %566 = vmatprep.subr.bf16.mxu0 0
    %567 = vmatpush1.bf16.msra.mxu0 0
    %568 = vmatprep.subr.bf16.mxu0 0
    %569 = vmatpush1.bf16.msra.mxu0 0
    %570 = vmatprep.subr.bf16.mxu0 0
    %571 = vmatpush1.bf16.msra.mxu0 0
    %572 = vmatprep.subr.bf16.mxu0 0
    %573 = vmatpush1.bf16.msra.mxu0 0
    %574 = vmatprep.subr.bf16.mxu0 0
    %575 = vmatpush1.bf16.msra.mxu0 0
    %576 = vmatprep.mubr.bf16.mxu0 0
    %577 = vmatmul.mubr.bf16.gmra.mrb[0].mxu0 %v542
    %v578 = vpop.f32.mrb[0].mxu0
    %v579 = vadd.f32 0.0, %v578
    %v580 = vpop.f32.mrb[0].mxu0
    %v581 = vadd.f32 0.0, %v580
    %v582 = vpop.f32.mrb[0].mxu0
    %v583 = vpop.f32.mrb[0].mxu0
    %584 = vdwg.mxu0
    %v585 = vadd.f32 %v535, %v579
    %v586 = vadd.f32 %v536, %v581
    %v587 = vmul.f32 %v585, 0.5
    %v588 = vtanh.pop %v587
    %v589 = vmul.f32 %v588, 0.5
    %v590 = vadd.f32 %v589, 0.5
    %v591 = vtanh.pop %v586
    %v592 = vmul.f32 %v586, 0.5
    %v593 = vtanh.pop %v592
    %v594 = vmul.f32 %v593, 0.5
    %v595 = vadd.f32 %v594, 0.5
    %v596 = vmul.f32 %v590, %v508
    %v597 = vmul.f32 %v590, %v591
    %599 = vrot.lane.b32.xlu0 %v597, 64
    %v600 = vpop.permute.xlu0 %599
    %v602 = vadd.f32 %v596, %v600
    %v603 = vtanh.pop %v602
    %v604 = vmul.f32 %v595, %v603
    %606 = vrot.lane.b32.xlu0 %v604, 64
    %v607 = vpop.permute.xlu0 %606
    %s609 = scalar_lea.vmem [#allocation2], 6
    %610 = vst.msk [vmem:[%s609] sm:$0x3] %vm328, %v607
    %s611 = scalar_lea.vmem [#allocation2], 8
    %612 = vst.msk [vmem:[%s611] sm:$0x3] %vm331, %v607
    %v613 = vsel %vm172, %v529, %v521
    %v614 = vsel %vm173, %v532, %v524
    %v615 = vpack.c.bf16 %v604, %v604
    %617 = vrot.lane.b32.xlu0 %v615, 64
    %v618 = vpop.permute.xlu0 %617
    %v620 = vsel %vm259, %v618, 0
    %622 = vmatprep.subr.bf16.mxu0 %v238
    %623 = vmatpush1.bf16.msra.mxu0 %v235
    %624 = vmatprep.subr.bf16.mxu0 %v242
    %625 = vmatpush1.bf16.msra.mxu0 %v240
    %626 = vmatprep.subr.bf16.mxu0 %v246
    %627 = vmatpush1.bf16.msra.mxu0 %v244
    %628 = vmatprep.subr.bf16.mxu0 %v250
    %629 = vmatpush1.bf16.msra.mxu0 %v248
    %630 = vmatprep.subr.bf16.mxu0 0
    %631 = vmatpush1.bf16.msra.mxu0 0
    %632 = vmatprep.subr.bf16.mxu0 0
    %633 = vmatpush1.bf16.msra.mxu0 0
    %634 = vmatprep.subr.bf16.mxu0 0
    %635 = vmatpush1.bf16.msra.mxu0 0
    %636 = vmatprep.subr.bf16.mxu0 0
    %637 = vmatpush1.bf16.msra.mxu0 0
    %638 = vmatprep.subr.bf16.mxu0 0
    %639 = vmatpush1.bf16.msra.mxu0 0
    %640 = vmatprep.subr.bf16.mxu0 0
    %641 = vmatpush1.bf16.msra.mxu0 0
    %642 = vmatprep.subr.bf16.mxu0 0
    %643 = vmatpush1.bf16.msra.mxu0 0
    %644 = vmatprep.subr.bf16.mxu0 0
    %645 = vmatpush1.bf16.msra.mxu0 0
    %646 = vmatprep.subr.bf16.mxu0 0
    %647 = vmatpush1.bf16.msra.mxu0 0
    %648 = vmatprep.subr.bf16.mxu0 0
    %649 = vmatpush1.bf16.msra.mxu0 0
    %650 = vmatprep.subr.bf16.mxu0 0
    %651 = vmatpush1.bf16.msra.mxu0 0
    %652 = vmatprep.subr.bf16.mxu0 0
    %653 = vmatpush1.bf16.msra.mxu0 0
    %654 = vmatprep.mubr.bf16.mxu0 0
    %655 = vmatmul.mubr.bf16.gmra.mrb[0].mxu0 %v620
    %v656 = vpop.f32.mrb[0].mxu0
    %v657 = vadd.f32 0.0, %v656
    %v658 = vpop.f32.mrb[0].mxu0
    %v659 = vadd.f32 0.0, %v658
    %v660 = vpop.f32.mrb[0].mxu0
    %v661 = vpop.f32.mrb[0].mxu0
    %662 = vdwg.mxu0
    %v663 = vadd.f32 %v613, %v657
    %v664 = vadd.f32 %v614, %v659
    %v665 = vmul.f32 %v663, 0.5
    %v666 = vtanh.pop %v665
    %v667 = vmul.f32 %v666, 0.5
    %v668 = vadd.f32 %v667, 0.5
    %v669 = vtanh.pop %v664
    %v670 = vmul.f32 %v664, 0.5
    %v671 = vtanh.pop %v670
    %v672 = vmul.f32 %v671, 0.5
    %v673 = vadd.f32 %v672, 0.5
    %v674 = vmul.f32 %v668, %v602
    %v675 = vmul.f32 %v668, %v669
    %677 = vrot.lane.b32.xlu0 %v675, 64
    %v678 = vpop.permute.xlu0 %677
    %v680 = vadd.f32 %v674, %v678
    %v681 = vtanh.pop %v680
    %v682 = vmul.f32 %v673, %v681
    %684 = vrot.lane.b32.xlu0 %v682, 64
    %v685 = vpop.permute.xlu0 %684
    %687 = vst.msk [vmem:[%s611] sm:$0x3] %vm328, %v685
    %688 = vst.msk [vmem:[%s609] sm:$0x3] %vm331, %v685
    %v689 = vsel %vm172, %v435, %v427
    %v690 = vsel %vm173, %v438, %v430
    %v691 = vpack.c.bf16 %v682, %v682
    %693 = vrot.lane.b32.xlu0 %v691, 64
    %v694 = vpop.permute.xlu0 %693
    %v696 = vsel %vm259, %v694, 0
    %698 = vmatprep.subr.bf16.mxu0 %v238
    %699 = vmatpush1.bf16.msra.mxu0 %v235
    %700 = vmatprep.subr.bf16.mxu0 %v242
    %701 = vmatpush1.bf16.msra.mxu0 %v240
    %702 = vmatprep.subr.bf16.mxu0 %v246
    %703 = vmatpush1.bf16.msra.mxu0 %v244
    %704 = vmatprep.subr.bf16.mxu0 %v250
    %705 = vmatpush1.bf16.msra.mxu0 %v248
    %706 = vmatprep.subr.bf16.mxu0 0
    %707 = vmatpush1.bf16.msra.mxu0 0
    %708 = vmatprep.subr.bf16.mxu0 0
    %709 = vmatpush1.bf16.msra.mxu0 0
    %710 = vmatprep.subr.bf16.mxu0 0
    %711 = vmatpush1.bf16.msra.mxu0 0
    %712 = vmatprep.subr.bf16.mxu0 0
    %713 = vmatpush1.bf16.msra.mxu0 0
    %714 = vmatprep.subr.bf16.mxu0 0
    %715 = vmatpush1.bf16.msra.mxu0 0
    %716 = vmatprep.subr.bf16.mxu0 0
    %717 = vmatpush1.bf16.msra.mxu0 0
    %718 = vmatprep.subr.bf16.mxu0 0
    %719 = vmatpush1.bf16.msra.mxu0 0
    %720 = vmatprep.subr.bf16.mxu0 0
    %721 = vmatpush1.bf16.msra.mxu0 0
    %722 = vmatprep.subr.bf16.mxu0 0
    %723 = vmatpush1.bf16.msra.mxu0 0
    %724 = vmatprep.subr.bf16.mxu0 0
    %725 = vmatpush1.bf16.msra.mxu0 0
    %726 = vmatprep.subr.bf16.mxu0 0
    %727 = vmatpush1.bf16.msra.mxu0 0
    %728 = vmatprep.subr.bf16.mxu0 0
    %729 = vmatpush1.bf16.msra.mxu0 0
    %730 = vmatprep.mubr.bf16.mxu0 0
    %731 = vmatmul.mubr.bf16.gmra.mrb[0].mxu0 %v696
    %v732 = vpop.f32.mrb[0].mxu0
    %v733 = vadd.f32 0.0, %v732
    %v734 = vpop.f32.mrb[0].mxu0
    %v735 = vadd.f32 0.0, %v734
    %v736 = vpop.f32.mrb[0].mxu0
    %v737 = vpop.f32.mrb[0].mxu0
    %738 = vdwg.mxu0
    %v739 = vadd.f32 %v689, %v733
    %v740 = vadd.f32 %v690, %v735
    %v741 = vmul.f32 %v739, 0.5
    %v742 = vtanh.pop %v741
    %v743 = vmul.f32 %v742, 0.5
    %v744 = vadd.f32 %v743, 0.5
    %v745 = vtanh.pop %v740
    %v746 = vmul.f32 %v740, 0.5
    %v747 = vtanh.pop %v746
    %v748 = vmul.f32 %v747, 0.5
    %v749 = vadd.f32 %v748, 0.5
    %v750 = vmul.f32 %v744, %v680
    %v751 = vmul.f32 %v744, %v745
    %753 = vrot.lane.b32.xlu0 %v751, 64
    %v754 = vpop.permute.xlu0 %753
    %v756 = vadd.f32 %v750, %v754
    %v757 = vtanh.pop %v756
    %v758 = vmul.f32 %v749, %v757
    %760 = vrot.lane.b32.xlu0 %v758, 64
    %v761 = vpop.permute.xlu0 %760
    %763 = vst.msk [vmem:[%s517] sm:$0x3] %vm328, %v761
    %764 = vst.msk [vmem:[%s515] sm:$0x3] %vm331, %v761
    %v765 = vsel %vm172, %v341, %v334
    %v766 = vsel %vm173, %v344, %v336
    %v767 = vpack.c.bf16 %v758, %v758
    %769 = vrot.lane.b32.xlu0 %v767, 64
    %v770 = vpop.permute.xlu0 %769
    %v772 = vsel %vm259, %v770, 0
    %774 = vmatprep.subr.bf16.mxu0 %v238
    %775 = vmatpush1.bf16.msra.mxu0 %v235
    %776 = vmatprep.subr.bf16.mxu0 %v242
    %777 = vmatpush1.bf16.msra.mxu0 %v240
    %778 = vmatprep.subr.bf16.mxu0 %v246
    %779 = vmatpush1.bf16.msra.mxu0 %v244
    %780 = vmatprep.subr.bf16.mxu0 %v250
    %781 = vmatpush1.bf16.msra.mxu0 %v248
    %782 = vmatprep.subr.bf16.mxu0 0
    %783 = vmatpush1.bf16.msra.mxu0 0
    %784 = vmatprep.subr.bf16.mxu0 0
    %785 = vmatpush1.bf16.msra.mxu0 0
    %786 = vmatprep.subr.bf16.mxu0 0
    %787 = vmatpush1.bf16.msra.mxu0 0
    %788 = vmatprep.subr.bf16.mxu0 0
    %789 = vmatpush1.bf16.msra.mxu0 0
    %790 = vmatprep.subr.bf16.mxu0 0
    %791 = vmatpush1.bf16.msra.mxu0 0
    %792 = vmatprep.subr.bf16.mxu0 0
    %793 = vmatpush1.bf16.msra.mxu0 0
    %794 = vmatprep.subr.bf16.mxu0 0
    %795 = vmatpush1.bf16.msra.mxu0 0
    %796 = vmatprep.subr.bf16.mxu0 0
    %797 = vmatpush1.bf16.msra.mxu0 0
    %798 = vmatprep.subr.bf16.mxu0 0
    %799 = vmatpush1.bf16.msra.mxu0 0
    %800 = vmatprep.subr.bf16.mxu0 0
    %801 = vmatpush1.bf16.msra.mxu0 0
    %802 = vmatprep.subr.bf16.mxu0 0
    %803 = vmatpush1.bf16.msra.mxu0 0
    %804 = vmatprep.subr.bf16.mxu0 0
    %805 = vmatpush1.bf16.msra.mxu0 0
    %806 = vmatprep.mubr.bf16.mxu0 0
    %807 = vmatmul.mubr.bf16.gmra.mrb[0].mxu0 %v772
    %v808 = vpop.f32.mrb[0].mxu0
    %v809 = vadd.f32 0.0, %v808
    %v810 = vpop.f32.mrb[0].mxu0
    %v811 = vadd.f32 0.0, %v810
    %v812 = vpop.f32.mrb[0].mxu0
    %v813 = vpop.f32.mrb[0].mxu0
    %814 = vdwg.mxu0
    %v815 = vadd.f32 %v765, %v809
    %v816 = vadd.f32 %v766, %v811
    %v817 = vmul.f32 %v815, 0.5
    %v818 = vtanh.pop %v817
    %v819 = vmul.f32 %v818, 0.5
    %v820 = vadd.f32 %v819, 0.5
    %v821 = vtanh.pop %v816
    %v822 = vmul.f32 %v816, 0.5
    %v823 = vtanh.pop %v822
    %v824 = vmul.f32 %v823, 0.5
    %v825 = vadd.f32 %v824, 0.5
    %v826 = vmul.f32 %v820, %v756
    %v827 = vmul.f32 %v820, %v821
    %829 = vrot.lane.b32.xlu0 %v827, 64
    %v830 = vpop.permute.xlu0 %829
    %v832 = vadd.f32 %v826, %v830
    %v833 = vtanh.pop %v832
    %v834 = vmul.f32 %v825, %v833
    %836 = vrot.lane.b32.xlu0 %v834, 64
    %v837 = vpop.permute.xlu0 %836
    %839 = vst.msk [vmem:[%s423] sm:$0x3] %vm328, %v837
    %840 = vst.msk [vmem:[%s421] sm:$0x3] %vm331, %v837
    %v841 = vsel %vm172, %v187, %v180
    %v842 = vsel %vm173, %v190, %v182
    %v843 = vpack.c.bf16 %v834, %v834
    %845 = vrot.lane.b32.xlu0 %v843, 64
    %v846 = vpop.permute.xlu0 %845
    %v848 = vsel %vm259, %v846, 0
    %850 = vmatprep.subr.bf16.mxu0 %v238
    %851 = vmatpush1.bf16.msra.mxu0 %v235
    %852 = vmatprep.subr.bf16.mxu0 %v242
    %853 = vmatpush1.bf16.msra.mxu0 %v240
    %854 = vmatprep.subr.bf16.mxu0 %v246
    %855 = vmatpush1.bf16.msra.mxu0 %v244
    %856 = vmatprep.subr.bf16.mxu0 %v250
    %857 = vmatpush1.bf16.msra.mxu0 %v248
    %858 = vmatprep.subr.bf16.mxu0 0
    %859 = vmatpush1.bf16.msra.mxu0 0
    %860 = vmatprep.subr.bf16.mxu0 0
    %861 = vmatpush1.bf16.msra.mxu0 0
    %862 = vmatprep.subr.bf16.mxu0 0
    %863 = vmatpush1.bf16.msra.mxu0 0
    %864 = vmatprep.subr.bf16.mxu0 0
    %865 = vmatpush1.bf16.msra.mxu0 0
    %866 = vmatprep.subr.bf16.mxu0 0
    %867 = vmatpush1.bf16.msra.mxu0 0
    %868 = vmatprep.subr.bf16.mxu0 0
    %869 = vmatpush1.bf16.msra.mxu0 0
    %870 = vmatprep.subr.bf16.mxu0 0
    %871 = vmatpush1.bf16.msra.mxu0 0
    %872 = vmatprep.subr.bf16.mxu0 0
    %873 = vmatpush1.bf16.msra.mxu0 0
    %874 = vmatprep.subr.bf16.mxu0 0
    %875 = vmatpush1.bf16.msra.mxu0 0
    %876 = vmatprep.subr.bf16.mxu0 0
    %877 = vmatpush1.bf16.msra.mxu0 0
    %878 = vmatprep.subr.bf16.mxu0 0
    %879 = vmatpush1.bf16.msra.mxu0 0
    %880 = vmatprep.subr.bf16.mxu0 0
    %881 = vmatpush1.bf16.msra.mxu0 0
    %882 = vmatprep.mubr.bf16.mxu0 0
    %883 = vmatmul.mubr.bf16.gmra.mrb[0].mxu0 %v848
    %v884 = vpop.f32.mrb[0].mxu0
    %v885 = vadd.f32 0.0, %v884
    %v886 = vpop.f32.mrb[0].mxu0
    %v887 = vadd.f32 0.0, %v886
    %v888 = vpop.f32.mrb[0].mxu0
    %v889 = vpop.f32.mrb[0].mxu0
    %890 = vdwg.mxu0
    %v891 = vadd.f32 %v841, %v885
    %v892 = vadd.f32 %v842, %v887
    %v893 = vmul.f32 %v891, 0.5
    %v894 = vtanh.pop %v893
    %v895 = vmul.f32 %v894, 0.5
    %v896 = vadd.f32 %v895, 0.5
    %v897 = vtanh.pop %v892
    %v898 = vmul.f32 %v892, 0.5
    %v899 = vtanh.pop %v898
    %v900 = vmul.f32 %v899, 0.5
    %v901 = vadd.f32 %v900, 0.5
    %v902 = vmul.f32 %v896, %v832
    %v903 = vmul.f32 %v896, %v897
    %905 = vrot.lane.b32.xlu0 %v903, 64
    %v906 = vpop.permute.xlu0 %905
    %v908 = vadd.f32 %v902, %v906
    %v909 = vtanh.pop %v908
    %v910 = vmul.f32 %v901, %v909
    %912 = vrot.lane.b32.xlu0 %v910, 64
    %v913 = vpop.permute.xlu0 %912
    %915 = vst.msk [vmem:[%s330] sm:$0x3] %vm328, %v913
    %916 = vst.msk [vmem:[#allocation2] sm:$0x3] %vm331, %v913
    %v917 = vld [vmem:[#allocation2] sm:$0x3]
    %v918 = vld [vmem:[#allocation2 + $0x2] sm:$0x3]
    %v919 = vld [vmem:[#allocation2 + $0x4] sm:$0x3]
    %v920 = vld [vmem:[#allocation2 + $0x6] sm:$0x3]
    %v921 = vld [vmem:[#allocation2 + $0x8] sm:$0x3]
    %v922 = vld [vmem:[#allocation2 + $0xa] sm:$0x3]
    %v923 = vld [vmem:[#allocation2 + $0xc] sm:$0x3]
    %v924 = vld [vmem:[#allocation2 + $0xe] sm:$0x3]
    %v933 = vcombine.low %v917, %v918
    %v934 = vcombine.low %v919, %v920
    %v936 = vunpack.c.l.s4 1983009808
    %v937 = vunpack.c.0.s8 %v936
    %v938 = vlaneseq
    %v939 = vshrl.u32 %v938, 7
    %v940 = vsub.s32 %v937, %v939
    %v941 = vrot.slane %v933, %v940
    %v943 = vunpack.c.l.s4 1983009808
    %v944 = vunpack.c.0.s8 %v943
    %v945 = vlaneseq
    %v946 = vshrl.u32 %v945, 7
    %v947 = vsub.s32 %v944, %v946
    %v948 = vrot.slane %v934, %v947
    %v949 = vcombine.low %v941, %v948
    %v950 = vcombine.low %v921, %v922
    %v951 = vcombine.low %v923, %v924
    %v953 = vunpack.c.l.s4 1983009808
    %v954 = vunpack.c.0.s8 %v953
    %v955 = vlaneseq
    %v956 = vshrl.u32 %v955, 7
    %v957 = vsub.s32 %v954, %v956
    %v958 = vrot.slane %v950, %v957
    %v960 = vunpack.c.l.s4 1983009808
    %v961 = vunpack.c.0.s8 %v960
    %v962 = vlaneseq
    %v963 = vshrl.u32 %v962, 7
    %v964 = vsub.s32 %v961, %v963
    %v965 = vrot.slane %v951, %v964
    %v966 = vcombine.low %v958, %v965
    %v969 = vpack.c.bf16 %v966, %v949
    %v971 = vlaneseq
    %v972 = vshrl.u32 %v971, 7
    %v973 = vsub.s32 0, %v972
    %v974 = vrot.slane %v66, %v973
    %v975 = vlaneseq
    %v976 = vshrl.u32 %v975, 7
    %v977 = vsub.s32 1, %v976
    %v978 = vrot.slane %v66, %v977
    %v990 = vunpack.c.l.b16 %v40
    %v991 = vunpack.c.h.b16 %v40
    %v992 = vunpack.c.l.b16 %v41
    %v993 = vunpack.c.h.b16 %v41
    %v994 = vunpack.c.l.b16 %v42
    %v995 = vunpack.c.h.b16 %v42
    %v996 = vunpack.c.l.b16 %v43
    %v997 = vunpack.c.h.b16 %v43
    %v998 = vunpack.c.l.b16 %v44
    %v999 = vunpack.c.h.b16 %v44
    %v1000 = vunpack.c.l.b16 %v45
    %v1001 = vunpack.c.h.b16 %v45
    %v1002 = vunpack.c.l.b16 %v46
    %v1003 = vunpack.c.h.b16 %v46
    %v1004 = vunpack.c.l.b16 %v47
    %v1005 = vunpack.c.h.b16 %v47
    %v1006 = vunpack.c.l.b16 %v48
    %v1007 = vunpack.c.h.b16 %v48
    %v1008 = vpack.c.b16 %v992, %v990
    %v1009 = vpack.c.b16 %v993, %v991
    %v1010 = vpack.c.b16 %v996, %v994
    %v1011 = vpack.c.b16 %v997, %v995
    %v1012 = vpack.c.b16 %v1000, %v998
    %v1013 = vpack.c.b16 %v1001, %v999
    %v1014 = vpack.c.b16 %v1004, %v1002
    %v1015 = vpack.c.b16 %v1005, %v1003
    %v1016 = vpack.c.b16 %v1006, %v1006
    %v1017 = vpack.c.b16 %v1007, %v1007
    %v1018 = vrot.slane %v1008, 2
    %v1019 = vrot.slane %v1010, 2
    %v1020 = vsel %vm232, %v1018, %v1019
    %v1021 = vrot.slane %v1009, 2
    %v1022 = vrot.slane %v1011, 2
    %v1023 = vsel %vm232, %v1021, %v1022
    %v1024 = vrot.slane %v1012, 2
    %v1025 = vsel %vm232, %v1019, %v1024
    %v1026 = vrot.slane %v1013, 2
    %v1027 = vsel %vm232, %v1022, %v1026
    %v1028 = vrot.slane %v1014, 2
    %v1029 = vsel %vm232, %v1024, %v1028
    %v1030 = vrot.slane %v1015, 2
    %v1031 = vsel %vm232, %v1026, %v1030
    %v1032 = vrot.slane %v1016, 2
    %v1033 = vsel %vm232, %v1028, %v1032
    %v1034 = vrot.slane %v1017, 2
    %v1035 = vsel %vm232, %v1030, %v1034
    %v1045 = vsel %vm259, %v969, 0
    %1047 = vmatprep.subr.bf16.mxu0 %v1023
    %1048 = vmatpush1.bf16.msra.mxu0 %v1020
    %1049 = vmatprep.subr.bf16.mxu0 %v1027
    %1050 = vmatpush1.bf16.msra.mxu0 %v1025
    %1051 = vmatprep.subr.bf16.mxu0 %v1031
    %1052 = vmatpush1.bf16.msra.mxu0 %v1029
    %1053 = vmatprep.subr.bf16.mxu0 %v1035
    %1054 = vmatpush1.bf16.msra.mxu0 %v1033
    %1055 = vmatprep.subr.bf16.mxu0 0
    %1056 = vmatpush1.bf16.msra.mxu0 0
    %1057 = vmatprep.subr.bf16.mxu0 0
    %1058 = vmatpush1.bf16.msra.mxu0 0
    %1059 = vmatprep.subr.bf16.mxu0 0
    %1060 = vmatpush1.bf16.msra.mxu0 0
    %1061 = vmatprep.subr.bf16.mxu0 0
    %1062 = vmatpush1.bf16.msra.mxu0 0
    %1063 = vmatprep.subr.bf16.mxu0 0
    %1064 = vmatpush1.bf16.msra.mxu0 0
    %1065 = vmatprep.subr.bf16.mxu0 0
    %1066 = vmatpush1.bf16.msra.mxu0 0
    %1067 = vmatprep.subr.bf16.mxu0 0
    %1068 = vmatpush1.bf16.msra.mxu0 0
    %1069 = vmatprep.subr.bf16.mxu0 0
    %1070 = vmatpush1.bf16.msra.mxu0 0
    %1071 = vmatprep.subr.bf16.mxu0 0
    %1072 = vmatpush1.bf16.msra.mxu0 0
    %1073 = vmatprep.subr.bf16.mxu0 0
    %1074 = vmatpush1.bf16.msra.mxu0 0
    %1075 = vmatprep.subr.bf16.mxu0 0
    %1076 = vmatpush1.bf16.msra.mxu0 0
    %1077 = vmatprep.subr.bf16.mxu0 0
    %1078 = vmatpush1.bf16.msra.mxu0 0
    %1079 = vmatprep.mubr.bf16.mxu0 0
    %1080 = vmatmul.mubr.bf16.gmra.mrb[0].mxu0 %v1045
    %v1081 = vpop.f32.mrb[0].mxu0
    %v1082 = vadd.f32 %v974, %v1081
    %v1083 = vpop.f32.mrb[0].mxu0
    %v1084 = vadd.f32 %v978, %v1083
    %v1085 = vpop.f32.mrb[0].mxu0
    %v1086 = vadd.f32 %v974, %v1085
    %v1087 = vpop.f32.mrb[0].mxu0
    %v1088 = vadd.f32 %v978, %v1087
    %1089 = vdwg.mxu0
    %v1094 = vcombine.low %v1082, %v1084
    %v1095 = vcombine.high %v1082, %v1084
    %v1097 = vunpack.c.l.s4 1983009808
    %v1098 = vunpack.c.0.s8 %v1097
    %v1099 = vlaneseq
    %v1100 = vshrl.u32 %v1099, 7
    %v1101 = vsub.s32 %v1098, %v1100
    %v1102 = vrot.slane %v1094, %v1101
    %v1104 = vunpack.c.l.s4 1983009808
    %v1105 = vunpack.c.0.s8 %v1104
    %v1106 = vlaneseq
    %v1107 = vshrl.u32 %v1106, 7
    %v1108 = vsub.s32 %v1105, %v1107
    %v1109 = vrot.slane %v1095, %v1108
    %v1110 = vcombine.high %v1102, %v1102
    %v1111 = vcombine.high %v1109, %v1109
    %v1112 = vcombine.low %v1086, %v1088
    %v1113 = vcombine.high %v1086, %v1088
    %v1115 = vunpack.c.l.s4 1983009808
    %v1116 = vunpack.c.0.s8 %v1115
    %v1117 = vlaneseq
    %v1118 = vshrl.u32 %v1117, 7
    %v1119 = vsub.s32 %v1116, %v1118
    %v1120 = vrot.slane %v1112, %v1119
    %v1122 = vunpack.c.l.s4 1983009808
    %v1123 = vunpack.c.0.s8 %v1122
    %v1124 = vlaneseq
    %v1125 = vshrl.u32 %v1124, 7
    %v1126 = vsub.s32 %v1123, %v1125
    %v1127 = vrot.slane %v1113, %v1126
    %v1128 = vcombine.high %v1120, %v1120
    %v1129 = vcombine.high %v1127, %v1127
    %v1143 = vunpack.c.l.b16 %v49
    %v1144 = vunpack.c.l.b16 %v50
    %v1145 = vunpack.c.l.b16 %v51
    %v1146 = vunpack.c.l.b16 %v52
    %v1147 = vunpack.c.l.b16 %v53
    %v1148 = vpack.c.b16 %v1144, %v1143
    %v1149 = vpack.c.b16 %v1146, %v1145
    %v1150 = vpack.c.b16 %v1147, %v1147
    %v1151 = vrot.slane %v1148, 2
    %v1152 = vrot.slane %v1149, 2
    %v1153 = vsel %vm232, %v1151, %v1152
    %v1154 = vrot.slane %v1150, 2
    %v1155 = vsel %vm232, %v1152, %v1154
    %vm1158 = vcmask 261120
    %v1159 = vsel %vm1158, 0, 0
    %1161 = vmatprep.subr.bf16.mxu0 0
    %1162 = vmatpush1.bf16.msra.mxu0 %v1153
    %1163 = vmatprep.subr.bf16.mxu0 0
    %1164 = vmatpush1.bf16.msra.mxu0 %v1155
    %1165 = vmatprep.subr.bf16.mxu0 0
    %1166 = vmatpush1.bf16.msra.mxu0 0
    %1167 = vmatprep.subr.bf16.mxu0 0
    %1168 = vmatpush1.bf16.msra.mxu0 0
    %1169 = vmatprep.subr.bf16.mxu0 0
    %1170 = vmatpush1.bf16.msra.mxu0 0
    %1171 = vmatprep.subr.bf16.mxu0 0
    %1172 = vmatpush1.bf16.msra.mxu0 0
    %1173 = vmatprep.subr.bf16.mxu0 0
    %1174 = vmatpush1.bf16.msra.mxu0 0
    %1175 = vmatprep.subr.bf16.mxu0 0
    %1176 = vmatpush1.bf16.msra.mxu0 0
    %1177 = vmatprep.subr.bf16.mxu0 0
    %1178 = vmatpush1.bf16.msra.mxu0 0
    %1179 = vmatprep.subr.bf16.mxu0 0
    %1180 = vmatpush1.bf16.msra.mxu0 0
    %1181 = vmatprep.subr.bf16.mxu0 0
    %1182 = vmatpush1.bf16.msra.mxu0 0
    %1183 = vmatprep.subr.bf16.mxu0 0
    %1184 = vmatpush1.bf16.msra.mxu0 0
    %1185 = vmatprep.subr.bf16.mxu0 0
    %1186 = vmatpush1.bf16.msra.mxu0 0
    %1187 = vmatprep.subr.bf16.mxu0 0
    %1188 = vmatpush1.bf16.msra.mxu0 0
    %1189 = vmatprep.subr.bf16.mxu0 0
    %1190 = vmatpush1.bf16.msra.mxu0 0
    %1191 = vmatprep.subr.bf16.mxu0 0
    %1192 = vmatpush1.bf16.msra.mxu0 0
    %1193 = vmatprep.mubr.bf16.mxu0 0
    %1194 = vmatmul.mubr.bf16.gmra.mrb[0].mxu0 %v1159
    %v1195 = vpop.f32.mrb[0].mxu0
    %v1196 = vadd.f32 0.0, %v1195
    %v1197 = vpop.f32.mrb[0].mxu0
    %v1198 = vpop.f32.mrb[0].mxu0
    %v1199 = vpop.f32.mrb[0].mxu0
    %1200 = vdwg.mxu0
    %v1201 = vadd.f32 %v1102, %v1196
    %v1202 = vmul.f32 %v1201, 0.5
    %v1203 = vtanh.pop %v1202
    %v1204 = vmul.f32 %v1203, 0.5
    %v1205 = vadd.f32 %v1204, 0.5
    %v1206 = vtanh.pop %v1201
    %v1207 = vmul.f32 %v1205, 0.0
    %1209 = vrot.lane.b32.xlu0 %v1206, 64
    %v1210 = vpop.permute.xlu0 %1209
    %v1212 = vmul.f32 %v1205, %v1210
    %1214 = vrot.lane.b32.xlu0 %v1212, 32
    %v1215 = vpop.permute.xlu0 %1214
    %v1217 = vadd.f32 %v1207, %v1215
    %v1218 = vtanh.pop %v1217
    %1220 = vrot.lane.b32.xlu0 %v1218, 64
    %v1221 = vpop.permute.xlu0 %1220
    %v1223 = vmul.f32 %v1205, %v1221
    %v1224 = vpack.c.bf16 %v1223, %v1223
    %1226 = vrot.lane.b32.xlu0 %v1224, 32
    %v1227 = vpop.permute.xlu0 %1226
    %v1229 = vsel %vm1158, %v1227, 0
    %1231 = vmatprep.subr.bf16.mxu0 0
    %1232 = vmatpush1.bf16.msra.mxu0 %v1153
    %1233 = vmatprep.subr.bf16.mxu0 0
    %1234 = vmatpush1.bf16.msra.mxu0 %v1155
    %1235 = vmatprep.subr.bf16.mxu0 0
    %1236 = vmatpush1.bf16.msra.mxu0 0
    %1237 = vmatprep.subr.bf16.mxu0 0
    %1238 = vmatpush1.bf16.msra.mxu0 0
    %1239 = vmatprep.subr.bf16.mxu0 0
    %1240 = vmatpush1.bf16.msra.mxu0 0
    %1241 = vmatprep.subr.bf16.mxu0 0
    %1242 = vmatpush1.bf16.msra.mxu0 0
    %1243 = vmatprep.subr.bf16.mxu0 0
    %1244 = vmatpush1.bf16.msra.mxu0 0
    %1245 = vmatprep.subr.bf16.mxu0 0
    %1246 = vmatpush1.bf16.msra.mxu0 0
    %1247 = vmatprep.subr.bf16.mxu0 0
    %1248 = vmatpush1.bf16.msra.mxu0 0
    %1249 = vmatprep.subr.bf16.mxu0 0
    %1250 = vmatpush1.bf16.msra.mxu0 0
    %1251 = vmatprep.subr.bf16.mxu0 0
    %1252 = vmatpush1.bf16.msra.mxu0 0
    %1253 = vmatprep.subr.bf16.mxu0 0
    %1254 = vmatpush1.bf16.msra.mxu0 0
    %1255 = vmatprep.subr.bf16.mxu0 0
    %1256 = vmatpush1.bf16.msra.mxu0 0
    %1257 = vmatprep.subr.bf16.mxu0 0
    %1258 = vmatpush1.bf16.msra.mxu0 0
    %1259 = vmatprep.subr.bf16.mxu0 0
    %1260 = vmatpush1.bf16.msra.mxu0 0
    %1261 = vmatprep.subr.bf16.mxu0 0
    %1262 = vmatpush1.bf16.msra.mxu0 0
    %1263 = vmatprep.mubr.bf16.mxu0 0
    %1264 = vmatmul.mubr.bf16.gmra.mrb[0].mxu0 %v1229
    %v1265 = vpop.f32.mrb[0].mxu0
    %v1266 = vadd.f32 0.0, %v1265
    %v1267 = vpop.f32.mrb[0].mxu0
    %v1268 = vpop.f32.mrb[0].mxu0
    %v1269 = vpop.f32.mrb[0].mxu0
    %1270 = vdwg.mxu0
    %v1271 = vadd.f32 %v1110, %v1266
    %v1272 = vmul.f32 %v1271, 0.5
    %v1273 = vtanh.pop %v1272
    %v1274 = vmul.f32 %v1273, 0.5
    %v1275 = vadd.f32 %v1274, 0.5
    %v1276 = vtanh.pop %v1271
    %v1277 = vmul.f32 %v1275, %v1217
    %1279 = vrot.lane.b32.xlu0 %v1276, 64
    %v1280 = vpop.permute.xlu0 %1279
    %v1282 = vmul.f32 %v1275, %v1280
    %1284 = vrot.lane.b32.xlu0 %v1282, 32
    %v1285 = vpop.permute.xlu0 %1284
    %v1287 = vadd.f32 %v1277, %v1285
    %v1288 = vtanh.pop %v1287
    %1290 = vrot.lane.b32.xlu0 %v1288, 64
    %v1291 = vpop.permute.xlu0 %1290
    %v1293 = vmul.f32 %v1275, %v1291
    %v1294 = vpack.c.bf16 %v1293, %v1293
    %1296 = vrot.lane.b32.xlu0 %v1294, 32
    %v1297 = vpop.permute.xlu0 %1296
    %v1299 = vsel %vm1158, %v1297, 0
    %1301 = vmatprep.subr.bf16.mxu0 0
    %1302 = vmatpush1.bf16.msra.mxu0 %v1153
    %1303 = vmatprep.subr.bf16.mxu0 0
    %1304 = vmatpush1.bf16.msra.mxu0 %v1155
    %1305 = vmatprep.subr.bf16.mxu0 0
    %1306 = vmatpush1.bf16.msra.mxu0 0
    %1307 = vmatprep.subr.bf16.mxu0 0
    %1308 = vmatpush1.bf16.msra.mxu0 0
    %1309 = vmatprep.subr.bf16.mxu0 0
    %1310 = vmatpush1.bf16.msra.mxu0 0
    %1311 = vmatprep.subr.bf16.mxu0 0
    %1312 = vmatpush1.bf16.msra.mxu0 0
    %1313 = vmatprep.subr.bf16.mxu0 0
    %1314 = vmatpush1.bf16.msra.mxu0 0
    %1315 = vmatprep.subr.bf16.mxu0 0
    %1316 = vmatpush1.bf16.msra.mxu0 0
    %1317 = vmatprep.subr.bf16.mxu0 0
    %1318 = vmatpush1.bf16.msra.mxu0 0
    %1319 = vmatprep.subr.bf16.mxu0 0
    %1320 = vmatpush1.bf16.msra.mxu0 0
    %1321 = vmatprep.subr.bf16.mxu0 0
    %1322 = vmatpush1.bf16.msra.mxu0 0
    %1323 = vmatprep.subr.bf16.mxu0 0
    %1324 = vmatpush1.bf16.msra.mxu0 0
    %1325 = vmatprep.subr.bf16.mxu0 0
    %1326 = vmatpush1.bf16.msra.mxu0 0
    %1327 = vmatprep.subr.bf16.mxu0 0
    %1328 = vmatpush1.bf16.msra.mxu0 0
    %1329 = vmatprep.subr.bf16.mxu0 0
    %1330 = vmatpush1.bf16.msra.mxu0 0
    %1331 = vmatprep.subr.bf16.mxu0 0
    %1332 = vmatpush1.bf16.msra.mxu0 0
    %1333 = vmatprep.mubr.bf16.mxu0 0
    %1334 = vmatmul.mubr.bf16.gmra.mrb[0].mxu0 %v1299
    %v1335 = vpop.f32.mrb[0].mxu0
    %v1336 = vadd.f32 0.0, %v1335
    %v1337 = vpop.f32.mrb[0].mxu0
    %v1338 = vpop.f32.mrb[0].mxu0
    %v1339 = vpop.f32.mrb[0].mxu0
    %1340 = vdwg.mxu0
    %v1341 = vadd.f32 %v1109, %v1336
    %v1342 = vmul.f32 %v1341, 0.5
    %v1343 = vtanh.pop %v1342
    %v1344 = vmul.f32 %v1343, 0.5
    %v1345 = vadd.f32 %v1344, 0.5
    %v1346 = vtanh.pop %v1341
    %v1347 = vmul.f32 %v1345, %v1287
    %1349 = vrot.lane.b32.xlu0 %v1346, 64
    %v1350 = vpop.permute.xlu0 %1349
    %v1352 = vmul.f32 %v1345, %v1350
    %1354 = vrot.lane.b32.xlu0 %v1352, 32
    %v1355 = vpop.permute.xlu0 %1354
    %v1357 = vadd.f32 %v1347, %v1355
    %v1358 = vtanh.pop %v1357
    %1360 = vrot.lane.b32.xlu0 %v1358, 64
    %v1361 = vpop.permute.xlu0 %1360
    %v1363 = vmul.f32 %v1345, %v1361
    %v1364 = vpack.c.bf16 %v1363, %v1363
    %1366 = vrot.lane.b32.xlu0 %v1364, 32
    %v1367 = vpop.permute.xlu0 %1366
    %v1369 = vsel %vm1158, %v1367, 0
    %1371 = vmatprep.subr.bf16.mxu0 0
    %1372 = vmatpush1.bf16.msra.mxu0 %v1153
    %1373 = vmatprep.subr.bf16.mxu0 0
    %1374 = vmatpush1.bf16.msra.mxu0 %v1155
    %1375 = vmatprep.subr.bf16.mxu0 0
    %1376 = vmatpush1.bf16.msra.mxu0 0
    %1377 = vmatprep.subr.bf16.mxu0 0
    %1378 = vmatpush1.bf16.msra.mxu0 0
    %1379 = vmatprep.subr.bf16.mxu0 0
    %1380 = vmatpush1.bf16.msra.mxu0 0
    %1381 = vmatprep.subr.bf16.mxu0 0
    %1382 = vmatpush1.bf16.msra.mxu0 0
    %1383 = vmatprep.subr.bf16.mxu0 0
    %1384 = vmatpush1.bf16.msra.mxu0 0
    %1385 = vmatprep.subr.bf16.mxu0 0
    %1386 = vmatpush1.bf16.msra.mxu0 0
    %1387 = vmatprep.subr.bf16.mxu0 0
    %1388 = vmatpush1.bf16.msra.mxu0 0
    %1389 = vmatprep.subr.bf16.mxu0 0
    %1390 = vmatpush1.bf16.msra.mxu0 0
    %1391 = vmatprep.subr.bf16.mxu0 0
    %1392 = vmatpush1.bf16.msra.mxu0 0
    %1393 = vmatprep.subr.bf16.mxu0 0
    %1394 = vmatpush1.bf16.msra.mxu0 0
    %1395 = vmatprep.subr.bf16.mxu0 0
    %1396 = vmatpush1.bf16.msra.mxu0 0
    %1397 = vmatprep.subr.bf16.mxu0 0
    %1398 = vmatpush1.bf16.msra.mxu0 0
    %1399 = vmatprep.subr.bf16.mxu0 0
    %1400 = vmatpush1.bf16.msra.mxu0 0
    %1401 = vmatprep.subr.bf16.mxu0 0
    %1402 = vmatpush1.bf16.msra.mxu0 0
    %1403 = vmatprep.mubr.bf16.mxu0 0
    %1404 = vmatmul.mubr.bf16.gmra.mrb[0].mxu0 %v1369
    %v1405 = vpop.f32.mrb[0].mxu0
    %v1406 = vadd.f32 0.0, %v1405
    %v1407 = vpop.f32.mrb[0].mxu0
    %v1408 = vpop.f32.mrb[0].mxu0
    %v1409 = vpop.f32.mrb[0].mxu0
    %1410 = vdwg.mxu0
    %v1411 = vadd.f32 %v1111, %v1406
    %v1412 = vmul.f32 %v1411, 0.5
    %v1413 = vtanh.pop %v1412
    %v1414 = vmul.f32 %v1413, 0.5
    %v1415 = vadd.f32 %v1414, 0.5
    %v1416 = vtanh.pop %v1411
    %v1417 = vmul.f32 %v1415, %v1357
    %1419 = vrot.lane.b32.xlu0 %v1416, 64
    %v1420 = vpop.permute.xlu0 %1419
    %v1422 = vmul.f32 %v1415, %v1420
    %1424 = vrot.lane.b32.xlu0 %v1422, 32
    %v1425 = vpop.permute.xlu0 %1424
    %v1427 = vadd.f32 %v1417, %v1425
    %v1428 = vtanh.pop %v1427
    %1430 = vrot.lane.b32.xlu0 %v1428, 64
    %v1431 = vpop.permute.xlu0 %1430
    %v1433 = vmul.f32 %v1415, %v1431
    %v1434 = vpack.c.bf16 %v1433, %v1433
    %1436 = vrot.lane.b32.xlu0 %v1434, 32
    %v1437 = vpop.permute.xlu0 %1436
    %v1439 = vsel %vm1158, %v1437, 0
    %1441 = vmatprep.subr.bf16.mxu0 0
    %1442 = vmatpush1.bf16.msra.mxu0 %v1153
    %1443 = vmatprep.subr.bf16.mxu0 0
    %1444 = vmatpush1.bf16.msra.mxu0 %v1155
    %1445 = vmatprep.subr.bf16.mxu0 0
    %1446 = vmatpush1.bf16.msra.mxu0 0
    %1447 = vmatprep.subr.bf16.mxu0 0
    %1448 = vmatpush1.bf16.msra.mxu0 0
    %1449 = vmatprep.subr.bf16.mxu0 0
    %1450 = vmatpush1.bf16.msra.mxu0 0
    %1451 = vmatprep.subr.bf16.mxu0 0
    %1452 = vmatpush1.bf16.msra.mxu0 0
    %1453 = vmatprep.subr.bf16.mxu0 0
    %1454 = vmatpush1.bf16.msra.mxu0 0
    %1455 = vmatprep.subr.bf16.mxu0 0
    %1456 = vmatpush1.bf16.msra.mxu0 0
    %1457 = vmatprep.subr.bf16.mxu0 0
    %1458 = vmatpush1.bf16.msra.mxu0 0
    %1459 = vmatprep.subr.bf16.mxu0 0
    %1460 = vmatpush1.bf16.msra.mxu0 0
    %1461 = vmatprep.subr.bf16.mxu0 0
    %1462 = vmatpush1.bf16.msra.mxu0 0
    %1463 = vmatprep.subr.bf16.mxu0 0
    %1464 = vmatpush1.bf16.msra.mxu0 0
    %1465 = vmatprep.subr.bf16.mxu0 0
    %1466 = vmatpush1.bf16.msra.mxu0 0
    %1467 = vmatprep.subr.bf16.mxu0 0
    %1468 = vmatpush1.bf16.msra.mxu0 0
    %1469 = vmatprep.subr.bf16.mxu0 0
    %1470 = vmatpush1.bf16.msra.mxu0 0
    %1471 = vmatprep.subr.bf16.mxu0 0
    %1472 = vmatpush1.bf16.msra.mxu0 0
    %1473 = vmatprep.mubr.bf16.mxu0 0
    %1474 = vmatmul.mubr.bf16.gmra.mrb[0].mxu0 %v1439
    %v1475 = vpop.f32.mrb[0].mxu0
    %v1476 = vadd.f32 0.0, %v1475
    %v1477 = vpop.f32.mrb[0].mxu0
    %v1478 = vpop.f32.mrb[0].mxu0
    %v1479 = vpop.f32.mrb[0].mxu0
    %1480 = vdwg.mxu0
    %v1481 = vadd.f32 %v1120, %v1476
    %v1482 = vmul.f32 %v1481, 0.5
    %v1483 = vtanh.pop %v1482
    %v1484 = vmul.f32 %v1483, 0.5
    %v1485 = vadd.f32 %v1484, 0.5
    %v1486 = vtanh.pop %v1481
    %v1487 = vmul.f32 %v1485, %v1427
    %1489 = vrot.lane.b32.xlu0 %v1486, 64
    %v1490 = vpop.permute.xlu0 %1489
    %v1492 = vmul.f32 %v1485, %v1490
    %1494 = vrot.lane.b32.xlu0 %v1492, 32
    %v1495 = vpop.permute.xlu0 %1494
    %v1497 = vadd.f32 %v1487, %v1495
    %v1498 = vtanh.pop %v1497
    %1500 = vrot.lane.b32.xlu0 %v1498, 64
    %v1501 = vpop.permute.xlu0 %1500
    %v1503 = vmul.f32 %v1485, %v1501
    %v1504 = vpack.c.bf16 %v1503, %v1503
    %1506 = vrot.lane.b32.xlu0 %v1504, 32
    %v1507 = vpop.permute.xlu0 %1506
    %v1509 = vsel %vm1158, %v1507, 0
    %1511 = vmatprep.subr.bf16.mxu0 0
    %1512 = vmatpush1.bf16.msra.mxu0 %v1153
    %1513 = vmatprep.subr.bf16.mxu0 0
    %1514 = vmatpush1.bf16.msra.mxu0 %v1155
    %1515 = vmatprep.subr.bf16.mxu0 0
    %1516 = vmatpush1.bf16.msra.mxu0 0
    %1517 = vmatprep.subr.bf16.mxu0 0
    %1518 = vmatpush1.bf16.msra.mxu0 0
    %1519 = vmatprep.subr.bf16.mxu0 0
    %1520 = vmatpush1.bf16.msra.mxu0 0
    %1521 = vmatprep.subr.bf16.mxu0 0
    %1522 = vmatpush1.bf16.msra.mxu0 0
    %1523 = vmatprep.subr.bf16.mxu0 0
    %1524 = vmatpush1.bf16.msra.mxu0 0
    %1525 = vmatprep.subr.bf16.mxu0 0
    %1526 = vmatpush1.bf16.msra.mxu0 0
    %1527 = vmatprep.subr.bf16.mxu0 0
    %1528 = vmatpush1.bf16.msra.mxu0 0
    %1529 = vmatprep.subr.bf16.mxu0 0
    %1530 = vmatpush1.bf16.msra.mxu0 0
    %1531 = vmatprep.subr.bf16.mxu0 0
    %1532 = vmatpush1.bf16.msra.mxu0 0
    %1533 = vmatprep.subr.bf16.mxu0 0
    %1534 = vmatpush1.bf16.msra.mxu0 0
    %1535 = vmatprep.subr.bf16.mxu0 0
    %1536 = vmatpush1.bf16.msra.mxu0 0
    %1537 = vmatprep.subr.bf16.mxu0 0
    %1538 = vmatpush1.bf16.msra.mxu0 0
    %1539 = vmatprep.subr.bf16.mxu0 0
    %1540 = vmatpush1.bf16.msra.mxu0 0
    %1541 = vmatprep.subr.bf16.mxu0 0
    %1542 = vmatpush1.bf16.msra.mxu0 0
    %1543 = vmatprep.mubr.bf16.mxu0 0
    %1544 = vmatmul.mubr.bf16.gmra.mrb[0].mxu0 %v1509
    %v1545 = vpop.f32.mrb[0].mxu0
    %v1546 = vadd.f32 0.0, %v1545
    %v1547 = vpop.f32.mrb[0].mxu0
    %v1548 = vpop.f32.mrb[0].mxu0
    %v1549 = vpop.f32.mrb[0].mxu0
    %1550 = vdwg.mxu0
    %v1551 = vadd.f32 %v1128, %v1546
    %v1552 = vmul.f32 %v1551, 0.5
    %v1553 = vtanh.pop %v1552
    %v1554 = vmul.f32 %v1553, 0.5
    %v1555 = vadd.f32 %v1554, 0.5
    %v1556 = vtanh.pop %v1551
    %v1557 = vmul.f32 %v1555, %v1497
    %1559 = vrot.lane.b32.xlu0 %v1556, 64
    %v1560 = vpop.permute.xlu0 %1559
    %v1562 = vmul.f32 %v1555, %v1560
    %1564 = vrot.lane.b32.xlu0 %v1562, 32
    %v1565 = vpop.permute.xlu0 %1564
    %v1567 = vadd.f32 %v1557, %v1565
    %v1568 = vtanh.pop %v1567
    %1570 = vrot.lane.b32.xlu0 %v1568, 64
    %v1571 = vpop.permute.xlu0 %1570
    %v1573 = vmul.f32 %v1555, %v1571
    %v1574 = vpack.c.bf16 %v1573, %v1573
    %1576 = vrot.lane.b32.xlu0 %v1574, 32
    %v1577 = vpop.permute.xlu0 %1576
    %v1579 = vsel %vm1158, %v1577, 0
    %1581 = vmatprep.subr.bf16.mxu0 0
    %1582 = vmatpush1.bf16.msra.mxu0 %v1153
    %1583 = vmatprep.subr.bf16.mxu0 0
    %1584 = vmatpush1.bf16.msra.mxu0 %v1155
    %1585 = vmatprep.subr.bf16.mxu0 0
    %1586 = vmatpush1.bf16.msra.mxu0 0
    %1587 = vmatprep.subr.bf16.mxu0 0
    %1588 = vmatpush1.bf16.msra.mxu0 0
    %1589 = vmatprep.subr.bf16.mxu0 0
    %1590 = vmatpush1.bf16.msra.mxu0 0
    %1591 = vmatprep.subr.bf16.mxu0 0
    %1592 = vmatpush1.bf16.msra.mxu0 0
    %1593 = vmatprep.subr.bf16.mxu0 0
    %1594 = vmatpush1.bf16.msra.mxu0 0
    %1595 = vmatprep.subr.bf16.mxu0 0
    %1596 = vmatpush1.bf16.msra.mxu0 0
    %1597 = vmatprep.subr.bf16.mxu0 0
    %1598 = vmatpush1.bf16.msra.mxu0 0
    %1599 = vmatprep.subr.bf16.mxu0 0
    %1600 = vmatpush1.bf16.msra.mxu0 0
    %1601 = vmatprep.subr.bf16.mxu0 0
    %1602 = vmatpush1.bf16.msra.mxu0 0
    %1603 = vmatprep.subr.bf16.mxu0 0
    %1604 = vmatpush1.bf16.msra.mxu0 0
    %1605 = vmatprep.subr.bf16.mxu0 0
    %1606 = vmatpush1.bf16.msra.mxu0 0
    %1607 = vmatprep.subr.bf16.mxu0 0
    %1608 = vmatpush1.bf16.msra.mxu0 0
    %1609 = vmatprep.subr.bf16.mxu0 0
    %1610 = vmatpush1.bf16.msra.mxu0 0
    %1611 = vmatprep.subr.bf16.mxu0 0
    %1612 = vmatpush1.bf16.msra.mxu0 0
    %1613 = vmatprep.mubr.bf16.mxu0 0
    %1614 = vmatmul.mubr.bf16.gmra.mrb[0].mxu0 %v1579
    %v1615 = vpop.f32.mrb[0].mxu0
    %v1616 = vadd.f32 0.0, %v1615
    %v1617 = vpop.f32.mrb[0].mxu0
    %v1618 = vpop.f32.mrb[0].mxu0
    %v1619 = vpop.f32.mrb[0].mxu0
    %1620 = vdwg.mxu0
    %v1621 = vadd.f32 %v1127, %v1616
    %v1622 = vmul.f32 %v1621, 0.5
    %v1623 = vtanh.pop %v1622
    %v1624 = vmul.f32 %v1623, 0.5
    %v1625 = vadd.f32 %v1624, 0.5
    %v1626 = vtanh.pop %v1621
    %v1627 = vmul.f32 %v1625, %v1567
    %1629 = vrot.lane.b32.xlu0 %v1626, 64
    %v1630 = vpop.permute.xlu0 %1629
    %v1632 = vmul.f32 %v1625, %v1630
    %1634 = vrot.lane.b32.xlu0 %v1632, 32
    %v1635 = vpop.permute.xlu0 %1634
    %v1637 = vadd.f32 %v1627, %v1635
    %v1638 = vtanh.pop %v1637
    %1640 = vrot.lane.b32.xlu0 %v1638, 64
    %v1641 = vpop.permute.xlu0 %1640
    %v1643 = vmul.f32 %v1625, %v1641
    %v1644 = vpack.c.bf16 %v1643, %v1643
    %1646 = vrot.lane.b32.xlu0 %v1644, 32
    %v1647 = vpop.permute.xlu0 %1646
    %v1649 = vsel %vm1158, %v1647, 0
    %1651 = vmatprep.subr.bf16.mxu0 0
    %1652 = vmatpush1.bf16.msra.mxu0 %v1153
    %1653 = vmatprep.subr.bf16.mxu0 0
    %1654 = vmatpush1.bf16.msra.mxu0 %v1155
    %1655 = vmatprep.subr.bf16.mxu0 0
    %1656 = vmatpush1.bf16.msra.mxu0 0
    %1657 = vmatprep.subr.bf16.mxu0 0
    %1658 = vmatpush1.bf16.msra.mxu0 0
    %1659 = vmatprep.subr.bf16.mxu0 0
    %1660 = vmatpush1.bf16.msra.mxu0 0
    %1661 = vmatprep.subr.bf16.mxu0 0
    %1662 = vmatpush1.bf16.msra.mxu0 0
    %1663 = vmatprep.subr.bf16.mxu0 0
    %1664 = vmatpush1.bf16.msra.mxu0 0
    %1665 = vmatprep.subr.bf16.mxu0 0
    %1666 = vmatpush1.bf16.msra.mxu0 0
    %1667 = vmatprep.subr.bf16.mxu0 0
    %1668 = vmatpush1.bf16.msra.mxu0 0
    %1669 = vmatprep.subr.bf16.mxu0 0
    %1670 = vmatpush1.bf16.msra.mxu0 0
    %1671 = vmatprep.subr.bf16.mxu0 0
    %1672 = vmatpush1.bf16.msra.mxu0 0
    %1673 = vmatprep.subr.bf16.mxu0 0
    %1674 = vmatpush1.bf16.msra.mxu0 0
    %1675 = vmatprep.subr.bf16.mxu0 0
    %1676 = vmatpush1.bf16.msra.mxu0 0
    %1677 = vmatprep.subr.bf16.mxu0 0
    %1678 = vmatpush1.bf16.msra.mxu0 0
    %1679 = vmatprep.subr.bf16.mxu0 0
    %1680 = vmatpush1.bf16.msra.mxu0 0
    %1681 = vmatprep.subr.bf16.mxu0 0
    %1682 = vmatpush1.bf16.msra.mxu0 0
    %1683 = vmatprep.mubr.bf16.mxu0 0
    %1684 = vmatmul.mubr.bf16.gmra.mrb[0].mxu0 %v1649
    %v1685 = vpop.f32.mrb[0].mxu0
    %v1686 = vadd.f32 0.0, %v1685
    %v1687 = vpop.f32.mrb[0].mxu0
    %v1688 = vpop.f32.mrb[0].mxu0
    %v1689 = vpop.f32.mrb[0].mxu0
    %1690 = vdwg.mxu0
    %v1691 = vadd.f32 %v1129, %v1686
    %v1692 = vmul.f32 %v1691, 0.5
    %v1693 = vtanh.pop %v1692
    %v1694 = vmul.f32 %v1693, 0.5
    %v1695 = vadd.f32 %v1694, 0.5
    %v1696 = vtanh.pop %v1691
    %v1697 = vmul.f32 %v1695, %v1637
    %1699 = vrot.lane.b32.xlu0 %v1696, 64
    %v1700 = vpop.permute.xlu0 %1699
    %v1702 = vmul.f32 %v1695, %v1700
    %1704 = vrot.lane.b32.xlu0 %v1702, 32
    %v1705 = vpop.permute.xlu0 %1704
    %v1707 = vadd.f32 %v1697, %v1705
    %v1708 = vtanh.pop %v1707
    %1710 = vrot.lane.b32.xlu0 %v1708, 64
    %v1711 = vpop.permute.xlu0 %1710
    %v1713 = vmul.f32 %v1695, %v1711
    %v1714 = vrot.slane %v1129, 2
    %v1716 = vmul.f32 %v1714, 0.5
    %v1717 = vtanh.pop %v1716
    %v1718 = vmul.f32 %v1717, 0.5
    %v1719 = vadd.f32 %v1718, 0.5
    %v1720 = vtanh.pop %v1714
    %v1721 = vmul.f32 %v1719, 0.0
    %1723 = vrot.lane.b32.xlu0 %v1720, 64
    %v1724 = vpop.permute.xlu0 %1723
    %v1726 = vmul.f32 %v1719, %v1724
    %1728 = vrot.lane.b32.xlu0 %v1726, 32
    %v1729 = vpop.permute.xlu0 %1728
    %v1731 = vadd.f32 %v1721, %v1729
    %v1732 = vtanh.pop %v1731
    %1734 = vrot.lane.b32.xlu0 %v1732, 64
    %v1735 = vpop.permute.xlu0 %1734
    %v1737 = vmul.f32 %v1719, %v1735
    %v1738 = vpack.c.bf16 %v1713, %v1713
    %v1739 = vpack.c.bf16 %v1737, %v1737
    %1741 = vrot.lane.b32.xlu0 %v1739, 32
    %v1742 = vpop.permute.xlu0 %1741
    %v1748 = vunpack.c.l.b16 %v59
    %v1749 = vunpack.c.l.b16 %v60
    %v1750 = vunpack.c.l.b16 %v61
    %v1751 = vunpack.c.l.b16 %v62
    %v1752 = vunpack.c.l.b16 %v63
    %v1753 = vpack.c.b16 %v1749, %v1748
    %v1754 = vpack.c.b16 %v1751, %v1750
    %v1755 = vpack.c.b16 %v1752, %v1752
    %v1756 = vrot.slane %v1753, 2
    %v1757 = vrot.slane %v1754, 2
    %v1758 = vsel %vm232, %v1756, %v1757
    %v1759 = vrot.slane %v1755, 2
    %v1760 = vsel %vm232, %v1757, %v1759
    %v1764 = vsel %vm1158, %v1742, 0
    %1766 = vmatprep.subr.bf16.mxu0 0
    %1767 = vmatpush1.bf16.msra.mxu0 %v1758
    %1768 = vmatprep.subr.bf16.mxu0 0
    %1769 = vmatpush1.bf16.msra.mxu0 %v1760
    %1770 = vmatprep.subr.bf16.mxu0 0
    %1771 = vmatpush1.bf16.msra.mxu0 0
    %1772 = vmatprep.subr.bf16.mxu0 0
    %1773 = vmatpush1.bf16.msra.mxu0 0
    %1774 = vmatprep.subr.bf16.mxu0 0
    %1775 = vmatpush1.bf16.msra.mxu0 0
    %1776 = vmatprep.subr.bf16.mxu0 0
    %1777 = vmatpush1.bf16.msra.mxu0 0
    %1778 = vmatprep.subr.bf16.mxu0 0
    %1779 = vmatpush1.bf16.msra.mxu0 0
    %1780 = vmatprep.subr.bf16.mxu0 0
    %1781 = vmatpush1.bf16.msra.mxu0 0
    %1782 = vmatprep.subr.bf16.mxu0 0
    %1783 = vmatpush1.bf16.msra.mxu0 0
    %1784 = vmatprep.subr.bf16.mxu0 0
    %1785 = vmatpush1.bf16.msra.mxu0 0
    %1786 = vmatprep.subr.bf16.mxu0 0
    %1787 = vmatpush1.bf16.msra.mxu0 0
    %1788 = vmatprep.subr.bf16.mxu0 0
    %1789 = vmatpush1.bf16.msra.mxu0 0
    %1790 = vmatprep.subr.bf16.mxu0 0
    %1791 = vmatpush1.bf16.msra.mxu0 0
    %1792 = vmatprep.subr.bf16.mxu0 0
    %1793 = vmatpush1.bf16.msra.mxu0 0
    %1794 = vmatprep.subr.bf16.mxu0 0
    %1795 = vmatpush1.bf16.msra.mxu0 0
    %1796 = vmatprep.subr.bf16.mxu0 0
    %1797 = vmatpush1.bf16.msra.mxu0 0
    %1798 = vmatprep.mubr.bf16.mxu0 0
    %1799 = vmatmul.mubr.bf16.gmra.mrb[0].mxu0 %v1764
    %v1800 = vpop.f32.mrb[0].mxu0
    %v1801 = vadd.f32 0.0, %v1800
    %v1802 = vpop.f32.mrb[0].mxu0
    %v1803 = vpop.f32.mrb[0].mxu0
    %v1804 = vpop.f32.mrb[0].mxu0
    %1805 = vdwg.mxu0
    %1807 = vrot.lane.b32.xlu0 %v1738, 32
    %v1808 = vpop.permute.xlu0 %1807
    %v1814 = vunpack.c.l.b16 %v54
    %v1815 = vunpack.c.l.b16 %v55
    %v1816 = vunpack.c.l.b16 %v56
    %v1817 = vunpack.c.l.b16 %v57
    %v1818 = vunpack.c.l.b16 %v58
    %v1819 = vpack.c.b16 %v1815, %v1814
    %v1820 = vpack.c.b16 %v1817, %v1816
    %v1821 = vpack.c.b16 %v1818, %v1818
    %v1822 = vrot.slane %v1819, 2
    %v1823 = vrot.slane %v1820, 2
    %v1824 = vsel %vm232, %v1822, %v1823
    %v1825 = vrot.slane %v1821, 2
    %v1826 = vsel %vm232, %v1823, %v1825
    %v1830 = vsel %vm1158, %v1808, 0
    %1832 = vmatprep.subr.bf16.mxu0 0
    %1833 = vmatpush1.bf16.msra.mxu0 %v1824
    %1834 = vmatprep.subr.bf16.mxu0 0
    %1835 = vmatpush1.bf16.msra.mxu0 %v1826
    %1836 = vmatprep.subr.bf16.mxu0 0
    %1837 = vmatpush1.bf16.msra.mxu0 0
    %1838 = vmatprep.subr.bf16.mxu0 0
    %1839 = vmatpush1.bf16.msra.mxu0 0
    %1840 = vmatprep.subr.bf16.mxu0 0
    %1841 = vmatpush1.bf16.msra.mxu0 0
    %1842 = vmatprep.subr.bf16.mxu0 0
    %1843 = vmatpush1.bf16.msra.mxu0 0
    %1844 = vmatprep.subr.bf16.mxu0 0
    %1845 = vmatpush1.bf16.msra.mxu0 0
    %1846 = vmatprep.subr.bf16.mxu0 0
    %1847 = vmatpush1.bf16.msra.mxu0 0
    %1848 = vmatprep.subr.bf16.mxu0 0
    %1849 = vmatpush1.bf16.msra.mxu0 0
    %1850 = vmatprep.subr.bf16.mxu0 0
    %1851 = vmatpush1.bf16.msra.mxu0 0
    %1852 = vmatprep.subr.bf16.mxu0 0
    %1853 = vmatpush1.bf16.msra.mxu0 0
    %1854 = vmatprep.subr.bf16.mxu0 0
    %1855 = vmatpush1.bf16.msra.mxu0 0
    %1856 = vmatprep.subr.bf16.mxu0 0
    %1857 = vmatpush1.bf16.msra.mxu0 0
    %1858 = vmatprep.subr.bf16.mxu0 0
    %1859 = vmatpush1.bf16.msra.mxu0 0
    %1860 = vmatprep.subr.bf16.mxu0 0
    %1861 = vmatpush1.bf16.msra.mxu0 0
    %1862 = vmatprep.subr.bf16.mxu0 0
    %1863 = vmatpush1.bf16.msra.mxu0 0
    %1864 = vmatprep.mubr.bf16.mxu0 0
    %1865 = vmatmul.mubr.bf16.gmra.mrb[0].mxu0 %v1830
    %v1866 = vpop.f32.mrb[0].mxu0
    %v1867 = vadd.f32 %v1801, %v1866
    %v1868 = vpop.f32.mrb[0].mxu0
    %v1869 = vpop.f32.mrb[0].mxu0
    %v1870 = vpop.f32.mrb[0].mxu0
    %1871 = vdwg.mxu0
    %v1872 = vlaneseq
    %v1873 = vshrl.u32 %v1872, 7
    %v1874 = vsub.s32 0, %v1873
    %v1875 = vrot.slane %v67, %v1874
    %v1876 = vadd.f32 %v1867, %v1875
    %1877 = vst [vmem:[#allocation6] sm:$0x3] %v1876
    // Predicated region
    $region18: #{tpu_custom_call.1} parent=1 // pred_check
      _
    $region19: #{tpu_custom_call.1} parent=1 // pred_check_branch
      %1879 = sbr.rel (0) target = $region21
    $region20: #{tpu_custom_call.1} parent=1 // pred_region
      %s1881 = ssub.s32 32, 32
      %1882 = vsyncadd [#allocation5], %s1881
      %s1884 = sshll.u32 [#allocation6], 4
      %s1885 = int_to_ptr.vmem [resolvable:$true] %s1884
      %1887 = dma.vmem_to_hbm [thread:$0]  %s1885, 32, %s3, [#allocation5]
    $region21: #{tpu_custom_call.1} parent=1 // pred_fallthru
      _
    // Predicated region
    $region22: #{tpu_custom_call.1} parent=1 // pred_check
      _
    $region23: #{tpu_custom_call.1} parent=1 // pred_check_branch
      %1889 = sbr.rel (0) target = $region25
    $region24: #{tpu_custom_call.1} parent=1 // pred_region
      %1890 = dma.done [#allocation5], 32
    $region25: #{tpu_custom_call.1} parent=1 // pred_fallthru
      _
    %1891 = vsyncpa [#allocation4], 1
    %1892 = vsyncpa [#allocation5], 1

</llo_original>
